<compile_context>
chip_gen: v7x
topology: tpu7x:2x2x1
jax: 0.10.0
libtpu: 0.0.40
codegen_flags: <defaults>
</compile_context>

<pallas_src>
import functools

import jax
import jax.numpy as jnp
import numpy as np
from jax.experimental import pallas as pl
from jax.experimental.pallas import tpu as pltpu


def _round_up(x, m):
    return ((x + m - 1) // m) * m


# ----------------------------------------------------------------------------
# Fused kernel: hoisted input projection + LSTM recurrence + output Linear.
# ----------------------------------------------------------------------------
def lstm_tag_kernel(e_ref, wx_ref, wh_ref, b_ref, wo_ref, bo_ref, out_ref,
                    h_scr, c_scr, xw_scr, hblk_scr, *, t_blk, b_tile):
    """
    Shapes (TB = t_blk * b_tile, rows ordered timestep-major: row = tt*b_tile + j):
      e_ref    : (TB, E_pad)        embedded inputs for this (batch_tile, time_block)
      wx_ref   : (E_pad, 4*H_pad)   input-projection weight (gate-padded)
      wh_ref   : (H_pad, 4*H_pad)   recurrent weight (gate-padded)
      b_ref    : (1, 4*H_pad)       fused bias b_ih + b_hh (f32)
      wo_ref   : (H_pad, V_pad)     output Linear weight (pre-transposed)
      bo_ref   : (1, V_pad)         output Linear bias (f32)
      out_ref  : (TB, V_pad)        logits
      h_scr    : (b_tile, H_pad)    carried hidden state (f32, VMEM scratch)
      c_scr    : (b_tile, H_pad)    carried cell state   (f32, VMEM scratch)
      xw_scr   : (TB, 4*H_pad)      hoisted input projection (f32)
      hblk_scr : (TB, H_pad)        this block's hidden states (f32)
    """
    H_pad = h_scr.shape[-1]
    mxu_dtype = wh_ref.dtype
    # Time-block index MUST remain the innermost ("arbitrary") grid axis for
    # the h/c scratch carry to be correct.
    t_idx = pl.program_id(1)

    @pl.when(t_idx == 0)
    def _():
        h_scr[...] = jnp.zeros_like(h_scr)
        c_scr[...] = jnp.zeros_like(c_scr)

    # 1) Hoisted input projection + bias: one large-M MXU matmul per grid step,
    #    off the serial critical path (bias folded here, not per timestep).
    xw_scr[...] = (
        jnp.dot(e_ref[...], wx_ref[...], preferred_element_type=jnp.float32)
        + b_ref[...])

    # 2) Serial recurrence: only h @ Wh per timestep (K = H_pad).
    def step(tt, carry):
        h, c = carry
        row0 = pl.multiple_of(tt * b_tile, b_tile)
        gates = (jnp.dot(h.astype(mxu_dtype), wh_ref[...],
                         preferred_element_type=jnp.float32)
                 + xw_scr[pl.ds(row0, b_tile), :])
        # PyTorch gate order: input, forget, cell (g), output.  Slices land on
        # 128-lane boundaries thanks to per-gate padding.
        i = jax.nn.sigmoid(gates[:, 0 * H_pad:1 * H_pad])
        f = jax.nn.sigmoid(gates[:, 1 * H_pad:2 * H_pad])
        g = jnp.tanh(gates[:, 2 * H_pad:3 * H_pad])
        o = jax.nn.sigmoid(gates[:, 3 * H_pad:4 * H_pad])
        c_new = f * c + i * g                       # f32 elementwise (v5e-safe)
        h_new = o * jnp.tanh(c_new)
        hblk_scr[pl.ds(row0, b_tile), :] = h_new
        return h_new, c_new

    h_fin, c_fin = jax.lax.fori_loop(
        0, t_blk, step, (h_scr[...], c_scr[...]), unroll=True)
    h_scr[...] = h_fin
    c_scr[...] = c_fin

    # 3) Fused output Linear over the whole block (no HBM round-trip of H).
    out_ref[...] = (
        jnp.dot(hblk_scr[...].astype(mxu_dtype), wo_ref[...],
                preferred_element_type=jnp.float32)
        + bo_ref[...])


# ----------------------------------------------------------------------------
# One-time parameter re-layout (call once, NOT per forward call).
# ----------------------------------------------------------------------------
def prepare_params(emb_table, w_ih, w_hh, b_ih, b_hh, w_out, b_out,
                   mxu_dtype=jnp.bfloat16):
    """mxu_dtype: dtype of MXU operands (bf16 for v6e/v7x perf, f32 exact)."""
    f32 = jnp.float32
    V_in, E = emb_table.shape
    H = w_hh.shape[1]
    V = w_out.shape[0]
    E_pad = _round_up(E, 128)
    H_pad = _round_up(H, 128)
    V_pad = _round_up(V, 128)

    emb_p = (jnp.zeros((V_in, E_pad), f32)
             .at[:, :E].set(jnp.asarray(emb_table, f32)).astype(mxu_dtype))

    # Gate-padded weights: gate k occupies output columns
    # [k*H_pad, k*H_pad + H); padded columns have zero weight and zero bias, so
    # padded hidden/cell lanes stay exactly 0 through the recurrence.
    w_ih_g = jnp.asarray(w_ih, f32).reshape(4, H, E)
    w_hh_g = jnp.asarray(w_hh, f32).reshape(4, H, H)
    b_g = (jnp.asarray(b_ih, f32) + jnp.asarray(b_hh, f32)).reshape(4, H)

    Wx = jnp.zeros((4, H_pad, E_pad), f32).at[:, :H, :E].set(w_ih_g)
    Wh = jnp.zeros((4, H_pad, H_pad), f32).at[:, :H, :H].set(w_hh_g)
    bp = jnp.zeros((4, H_pad), f32).at[:, :H].set(b_g)

    Wx_t = jnp.transpose(Wx, (2, 0, 1)).reshape(E_pad, 4 * H_pad).astype(mxu_dtype)
    Wh_t = jnp.transpose(Wh, (2, 0, 1)).reshape(H_pad, 4 * H_pad).astype(mxu_dtype)
    b_cat = bp.reshape(1, 4 * H_pad)                                   # f32

    w_out_p = (jnp.zeros((H_pad, V_pad), f32)
               .at[:H, :V].set(jnp.asarray(w_out, f32).T).astype(mxu_dtype))
    b_out_p = jnp.zeros((1, V_pad), f32).at[0, :V].set(jnp.asarray(b_out, f32))

    return dict(emb=emb_p, Wx=Wx_t, Wh=Wh_t, b=b_cat,
                w_out=w_out_p, b_out=b_out_p,
                E=E, H=H, V=V, E_pad=E_pad, H_pad=H_pad, V_pad=V_pad)


# ----------------------------------------------------------------------------
# Forward pass: Embedding gather (JAX glue) -> fused Pallas kernel.
# ----------------------------------------------------------------------------
def ner_tagger_forward(X, params, t_blk=16, pad_index=0):
    """X: (seq_len, batch) int32 token ids.  Returns (seq_len, batch, V) f32."""
    S, B = X.shape
    E_pad, H_pad, V_pad = params["E_pad"], params["H_pad"], params["V_pad"]
    V = params["V"]
    mxu_dtype = params["Wx"].dtype
    w_isz = jnp.dtype(mxu_dtype).itemsize

    # --- tile geometry -------------------------------------------------------
    B_pad = _round_up(max(B, 8), 8)
    if B_pad < 16:
        B_TILE = B_pad                    # single tile == full dim (layout-safe)
    else:
        # >= 2 batch tiles so both v7x TensorCores get work on the "parallel"
        # axis; cap at 256 rows (one full v6e/v7x MXU push).
        B_TILE = min(_round_up(pl.cdiv(B_pad, 2), 8), 256)
        B_pad = _round_up(B_pad, B_TILE)
    n_btiles = B_pad // B_TILE

    t_blk = max(8, min(int(t_blk), _round_up(S, 8)))   # bigger time blocks =>
    S_pad = _round_up(S, t_blk)                        # fewer grid-step costs
    n_tblocks = S_pad // t_blk
    TB = t_blk * B_TILE
    M_rows = n_btiles * S_pad * B_TILE                 # == S_pad * B_pad

    # --- embedding gather (plain-JAX glue) ------------------------------------
    # Pad the cheap int32 indices BEFORE the gather, then flatten
    # (batch_tile, time, row) into a single lane-dense row axis so every kernel
    # block is a plain 2-D tile (no in-kernel reshapes).
    X_p = jnp.full((S_pad, B_pad), pad_index, dtype=jnp.int32)
    X_p = X_p.at[:S, :B].set(X.astype(jnp.int32))
    Emb = params["emb"][X_p]                                  # (S_pad,B_pad,E_pad)
    Emb_r = (Emb.reshape(S_pad, n_btiles, B_TILE, E_pad)
                .transpose(1, 0, 2, 3)
                .reshape(M_rows, E_pad))

    # --- pallas call -----------------------------------------------------------
    e_idx = lambda b, t, nt=n_tblocks: (b * nt + t, 0)
    const_idx = lambda b, t: (0, 0)

    flops = 2 * S_pad * B_pad * (4 * H_pad * (E_pad + H_pad) + H_pad * V_pad)
    transcendentals = 5 * S_pad * B_pad * H_pad
    bytes_accessed = (M_rows * E_pad * w_isz + M_rows * V_pad * 4
                      + (E_pad + H_pad) * 4 * H_pad * w_isz
                      + H_pad * V_pad * w_isz + (4 * H_pad + V_pad) * 4)

    # VMEM budget: double-buffered blocks + weights + scratch, with headroom,
    # kept safely under v7x's 64 MiB physical VMEM.
    vmem_need = (2 * TB * E_pad * w_isz + 2 * TB * V_pad * 4
                 + 2 * ((E_pad + H_pad) * 4 * H_pad + H_pad * V_pad) * w_isz
                 + 2 * (4 * H_pad + V_pad) * 4
                 + (2 * B_TILE * H_pad + 5 * TB * H_pad) * 4)
    vmem_limit = int(min(max(2 * vmem_need, 16 << 20), 48 << 20))
    # TODO(synk): on v7x with large H, also single-buffer the constant-index
    # weight blocks (pipeline_mode=pl.Buffered(1)) to halve their VMEM share.

    kernel = functools.partial(lstm_tag_kernel, t_blk=t_blk, b_tile=B_TILE)

    logits_flat = pl.pallas_call(
        kernel,
        out_shape=jax.ShapeDtypeStruct((M_rows, V_pad), jnp.float32),
        grid=(n_btiles, n_tblocks),
        in_specs=[
            pl.BlockSpec((TB, E_pad), e_idx),
            pl.BlockSpec((E_pad, 4 * H_pad), const_idx),
            pl.BlockSpec((H_pad, 4 * H_pad), const_idx),
            pl.BlockSpec((1, 4 * H_pad), const_idx),
            pl.BlockSpec((H_pad, V_pad), const_idx),
            pl.BlockSpec((1, V_pad), const_idx),
        ],
        out_specs=pl.BlockSpec((TB, V_pad), e_idx),
        scratch_shapes=[
            pltpu.VMEM((B_TILE, H_pad), jnp.float32),      # h carry
            pltpu.VMEM((B_TILE, H_pad), jnp.float32),      # c carry
            pltpu.VMEM((TB, 4 * H_pad), jnp.float32),      # hoisted x-projection
            pltpu.VMEM((TB, H_pad), jnp.float32),          # block hidden states
        ],
        compiler_params=pltpu.CompilerParams(
            dimension_semantics=("parallel", "arbitrary"),
            vmem_limit_bytes=vmem_limit),
        cost_estimate=pl.CostEstimate(
            flops=int(flops), transcendentals=int(transcendentals),
            bytes_accessed=int(bytes_accessed)),
    )(Emb_r, params["Wx"], params["Wh"], params["b"],
      params["w_out"], params["b_out"])

    logits = (logits_flat.reshape(n_btiles, S_pad, B_TILE, V_pad)
                         .transpose(1, 0, 2, 3)
                         .reshape(S_pad, B_pad, V_pad))
    return logits[:S, :B, :V]


# ----------------------------------------------------------------------------
# Pure-JAX reference (lax.scan LSTM) for verification.
# ----------------------------------------------------------------------------
def _reference_forward(X, emb_table, w_ih, w_hh, b_ih, b_hh, w_out, b_out):
    Emb = emb_table[X]                       # (seq_len, batch, E)
    H = w_hh.shape[1]
    batch = X.shape[1]

    def step(carry, x_t):
        h, c = carry
        gates = x_t @ w_ih.T + h @ w_hh.T + b_ih + b_hh
        i = jax.nn.sigmoid(gates[:, 0 * H:1 * H])
        f = jax.nn.sigmoid(gates[:, 1 * H:2 * H])
        g = jnp.tanh(gates[:, 2 * H:3 * H])
        o = jax.nn.sigmoid(gates[:, 3 * H:4 * H])
        c_new = f * c + i * g
        h_new = o * jnp.tanh(c_new)
        return (h_new, c_new), h_new

    init = (jnp.zeros((batch, H), jnp.float32),
            jnp.zeros((batch, H), jnp.float32))
    _, Hseq = jax.lax.scan(step, init, Emb)
    return Hseq @ w_out.T + b_out


if __name__ == "__main__":
    # Small deterministic config consistent with the module
    # (invocab_size == outvocab_size in NERtagger).
    vocab_size = 16
    embedding_size = 32
    hidden_size = 32
    seq_len = 8
    batch = 2
    pad_index = 0

    key = jax.random.PRNGKey(0)
    k_emb, k_ih, k_hh, k_bih, k_bhh, k_wo, k_bo, k_x = jax.random.split(key, 8)

    emb_table = 0.1 * jax.random.normal(
        k_emb, (vocab_size, embedding_size), jnp.float32)
    emb_table = emb_table.at[pad_index].set(0.0)   # nn.Embedding padding_idx

    w_ih = 0.1 * jax.random.normal(k_ih, (4 * hidden_size, embedding_size), jnp.float32)
    w_hh = 0.1 * jax.random.normal(k_hh, (4 * hidden_size, hidden_size), jnp.float32)
    b_ih = 0.1 * jax.random.normal(k_bih, (4 * hidden_size,), jnp.float32)
    b_hh = 0.1 * jax.random.normal(k_bhh, (4 * hidden_size,), jnp.float32)
    w_out = 0.1 * jax.random.normal(k_wo, (vocab_size, hidden_size), jnp.float32)
    b_out = 0.1 * jax.random.normal(k_bo, (vocab_size,), jnp.float32)

    X = jax.random.randint(k_x, (seq_len, batch), 0, vocab_size, dtype=jnp.int32)

    ref = _reference_forward(X, emb_table, w_ih, w_hh, b_ih, b_hh, w_out, b_out)

    # Exact-math path (f32 MXU operands): tight tolerance.
    params_f32 = prepare_params(emb_table, w_ih, w_hh, b_ih, b_hh, w_out, b_out,
                                mxu_dtype=jnp.float32)
    logits_f32 = jax.block_until_ready(
        ner_tagger_forward(X, params_f32, pad_index=pad_index))
    np.testing.assert_allclose(np.asarray(logits_f32), np.asarray(ref),
                               rtol=1e-5, atol=1e-5)
    assert logits_f32.shape == (seq_len, batch, vocab_size)

    # Perf path for v6e/v7x (bf16 MXU operands, f32 gates/state): looser tol.
    params_bf16 = prepare_params(emb_table, w_ih, w_hh, b_ih, b_hh, w_out, b_out,
                                 mxu_dtype=jnp.bfloat16)
    logits_bf16 = jax.block_until_ready(
        ner_tagger_forward(X, params_bf16, pad_index=pad_index))
    np.testing.assert_allclose(np.asarray(logits_bf16), np.asarray(ref),
                               rtol=3e-2, atol=3e-2)

    # TODO(synk): the training loop / CrossEntropyLoss / Adam in the PyTorch
    # module are training-time code, not part of the forward pass.
    print("KERNEL_OK")
</pallas_src>

<mosaic_0001>
module attributes {stable_mosaic.version = 11 : i64} {
  func.func @lstm_tag_kernel(%arg0: i32, %arg1: i32, %arg2: memref<64x128xf32, #tpu.memory_space<vmem>>, %arg3: memref<128x512xf32, #tpu.memory_space<vmem>>, %arg4: memref<128x512xf32, #tpu.memory_space<vmem>>, %arg5: memref<1x512xf32, #tpu.memory_space<vmem>>, %arg6: memref<128x128xf32, #tpu.memory_space<vmem>>, %arg7: memref<1x128xf32, #tpu.memory_space<vmem>>, %arg8: memref<64x128xf32, #tpu.memory_space<vmem>>, %arg9: memref<8x128xf32, #tpu.memory_space<vmem>>, %arg10: memref<8x128xf32, #tpu.memory_space<vmem>>, %arg11: memref<64x512xf32, #tpu.memory_space<vmem>>, %arg12: memref<64x128xf32, #tpu.memory_space<vmem>>) attributes {dimension_semantics = [#tpu.dimension_semantics<parallel>, #tpu.dimension_semantics<arbitrary>], iteration_bounds = array<i64: 1, 1>, scalar_prefetch = 0 : i64, scratch_operands = 4 : i64, tpu.core_type = #tpu.core_type<tc>, window_params = [{transform_indices = @transform_0, window_bounds = array<i64: 64, 128>}, {pipeline_mode = #tpu.pipeline_mode<synchronous>, transform_indices = @transform_1, window_bounds = array<i64: 128, 512>}, {pipeline_mode = #tpu.pipeline_mode<synchronous>, transform_indices = @transform_2, window_bounds = array<i64: 128, 512>}, {pipeline_mode = #tpu.pipeline_mode<synchronous>, transform_indices = @transform_3, window_bounds = array<i64: 1, 512>}, {pipeline_mode = #tpu.pipeline_mode<synchronous>, transform_indices = @transform_4, window_bounds = array<i64: 128, 128>}, {pipeline_mode = #tpu.pipeline_mode<synchronous>, transform_indices = @transform_5, window_bounds = array<i64: 1, 128>}, {transform_indices = @transform_6, window_bounds = array<i64: 64, 128>}]} {
    %c0_i32 = arith.constant 0 : i32
    %0 = arith.cmpi eq, %arg1, %c0_i32 : i32
    %1 = arith.extui %0 : i1 to i32
    %c0_i32_0 = arith.constant 0 : i32
    %2 = arith.cmpi ne, %1, %c0_i32_0 : i32
    scf.if %2 {
      %cst_98 = arith.constant 0.000000e+00 : f32
      %293 = vector.broadcast %cst_98 : f32 to vector<8x128xf32>
      %c0_99 = arith.constant 0 : index
      %c0_100 = arith.constant 0 : index
      %294 = vector.load %arg9[%c0_99, %c0_100] : memref<8x128xf32, #tpu.memory_space<vmem>>, vector<8x128xf32>
      tpu.vector_store %arg9[%c0_99, %c0_100], %293 {strides = array<i32>} : memref<8x128xf32, #tpu.memory_space<vmem>>, vector<8x128xf32>,
      %cst_101 = arith.constant 0.000000e+00 : f32
      %295 = vector.broadcast %cst_101 : f32 to vector<8x128xf32>
      %c0_102 = arith.constant 0 : index
      %c0_103 = arith.constant 0 : index
      %296 = vector.load %arg10[%c0_102, %c0_103] : memref<8x128xf32, #tpu.memory_space<vmem>>, vector<8x128xf32>
      tpu.vector_store %arg10[%c0_102, %c0_103], %295 {strides = array<i32>} : memref<8x128xf32, #tpu.memory_space<vmem>>, vector<8x128xf32>,
    } else {
    }
    %c0 = arith.constant 0 : index
    %c0_1 = arith.constant 0 : index
    %3 = vector.load %arg2[%c0, %c0_1] : memref<64x128xf32, #tpu.memory_space<vmem>>, vector<64x128xf32>
    %c0_2 = arith.constant 0 : index
    %c0_3 = arith.constant 0 : index
    %4 = vector.load %arg3[%c0_2, %c0_3] : memref<128x512xf32, #tpu.memory_space<vmem>>, vector<128x512xf32>
    %cst = arith.constant dense<0.000000e+00> : vector<64x512xf32>
    %5 = tpu.matmul %3, %4, %cst {dimension_numbers = #tpu.dot_dimension_numbers<[1], [0], [0], [1], [0, 0, 1, 1], [], []>} : vector<64x128xf32>, vector<128x512xf32>, vector<64x512xf32> -> vector<64x512xf32>
    %c0_4 = arith.constant 0 : index
    %c0_5 = arith.constant 0 : index
    %6 = vector.load %arg5[%c0_4, %c0_5] : memref<1x512xf32, #tpu.memory_space<vmem>>, vector<1x512xf32>
    %7 = vector.broadcast %6 : vector<1x512xf32> to vector<64x512xf32>
    %8 = arith.addf %5, %7 : vector<64x512xf32>
    %c0_6 = arith.constant 0 : index
    %c0_7 = arith.constant 0 : index
    %9 = vector.load %arg11[%c0_6, %c0_7] : memref<64x512xf32, #tpu.memory_space<vmem>>, vector<64x512xf32>
    tpu.vector_store %arg11[%c0_6, %c0_7], %8 {strides = array<i32>} : memref<64x512xf32, #tpu.memory_space<vmem>>, vector<64x512xf32>,
    %c0_8 = arith.constant 0 : index
    %c0_9 = arith.constant 0 : index
    %10 = vector.load %arg9[%c0_8, %c0_9] : memref<8x128xf32, #tpu.memory_space<vmem>>, vector<8x128xf32>
    %c0_10 = arith.constant 0 : index
    %c0_11 = arith.constant 0 : index
    %11 = vector.load %arg10[%c0_10, %c0_11] : memref<8x128xf32, #tpu.memory_space<vmem>>, vector<8x128xf32>
    %c0_i32_12 = arith.constant 0 : i32
    %c8_i32 = arith.constant 8 : i32
    %12 = arith.muli %c0_i32_12, %c8_i32 : i32
    %13 = tpu.assume_multiple %12, 8 : i32
    %c0_13 = arith.constant 0 : index
    %c0_14 = arith.constant 0 : index
    %14 = vector.load %arg4[%c0_13, %c0_14] : memref<128x512xf32, #tpu.memory_space<vmem>>, vector<128x512xf32>
    %cst_15 = arith.constant dense<0.000000e+00> : vector<8x512xf32>
    %15 = tpu.matmul %10, %14, %cst_15 {dimension_numbers = #tpu.dot_dimension_numbers<[1], [0], [0], [1], [0, 0, 1, 1], [], []>} : vector<8x128xf32>, vector<128x512xf32>, vector<8x512xf32> -> vector<8x512xf32>
    %16 = arith.index_cast %13 : i32 to index
    %c0_16 = arith.constant 0 : index
    %17 = vector.load %arg11[%16, %c0_16] : memref<64x512xf32, #tpu.memory_space<vmem>>, vector<8x512xf32>
    %18 = arith.addf %15, %17 : vector<8x512xf32>
    %19 = vector.extract_strided_slice %18 {offsets = [0, 0], sizes = [8, 128], strides = [1, 1]} : vector<8x512xf32> to vector<8x128xf32>
    %20 = arith.negf %19 : vector<8x128xf32>
    %21 = math.exp %20 : vector<8x128xf32>
    %cst_17 = arith.constant 1.000000e+00 : f32
    %22 = vector.broadcast %cst_17 : f32 to vector<8x128xf32>
    %23 = arith.addf %22, %21 : vector<8x128xf32>
    %24 = arith.divf %22, %23 : vector<8x128xf32>
    %25 = vector.extract_strided_slice %18 {offsets = [0, 128], sizes = [8, 128], strides = [1, 1]} : vector<8x512xf32> to vector<8x128xf32>
    %26 = arith.negf %25 : vector<8x128xf32>
    %27 = math.exp %26 : vector<8x128xf32>
    %cst_18 = arith.constant 1.000000e+00 : f32
    %28 = vector.broadcast %cst_18 : f32 to vector<8x128xf32>
    %29 = arith.addf %28, %27 : vector<8x128xf32>
    %30 = arith.divf %28, %29 : vector<8x128xf32>
    %31 = vector.extract_strided_slice %18 {offsets = [0, 256], sizes = [8, 128], strides = [1, 1]} : vector<8x512xf32> to vector<8x128xf32>
    %32 = math.tanh %31 : vector<8x128xf32>
    %33 = vector.extract_strided_slice %18 {offsets = [0, 384], sizes = [8, 128], strides = [1, 1]} : vector<8x512xf32> to vector<8x128xf32>
    %34 = arith.negf %33 : vector<8x128xf32>
    %35 = math.exp %34 : vector<8x128xf32>
    %cst_19 = arith.constant 1.000000e+00 : f32
    %36 = vector.broadcast %cst_19 : f32 to vector<8x128xf32>
    %37 = arith.addf %36, %35 : vector<8x128xf32>
    %38 = arith.divf %36, %37 : vector<8x128xf32>
    %39 = arith.mulf %30, %11 : vector<8x128xf32>
    %40 = arith.mulf %24, %32 : vector<8x128xf32>
    %41 = arith.addf %39, %40 : vector<8x128xf32>
    %42 = math.tanh %41 : vector<8x128xf32>
    %43 = arith.mulf %38, %42 : vector<8x128xf32>
    %44 = arith.index_cast %13 : i32 to index
    %c0_20 = arith.constant 0 : index
    %45 = vector.load %arg12[%44, %c0_20] : memref<64x128xf32, #tpu.memory_space<vmem>>, vector<8x128xf32>
    tpu.vector_store %arg12[%44, %c0_20], %43 {strides = array<i32>} : memref<64x128xf32, #tpu.memory_space<vmem>>, vector<8x128xf32>,
    %c1_i32 = arith.constant 1 : i32
    %c8_i32_21 = arith.constant 8 : i32
    %46 = arith.muli %c1_i32, %c8_i32_21 : i32
    %47 = tpu.assume_multiple %46, 8 : i32
    %c0_22 = arith.constant 0 : index
    %c0_23 = arith.constant 0 : index
    %48 = vector.load %arg4[%c0_22, %c0_23] : memref<128x512xf32, #tpu.memory_space<vmem>>, vector<128x512xf32>
    %cst_24 = arith.constant dense<0.000000e+00> : vector<8x512xf32>
    %49 = tpu.matmul %43, %48, %cst_24 {dimension_numbers = #tpu.dot_dimension_numbers<[1], [0], [0], [1], [0, 0, 1, 1], [], []>} : vector<8x128xf32>, vector<128x512xf32>, vector<8x512xf32> -> vector<8x512xf32>
    %50 = arith.index_cast %47 : i32 to index
    %c0_25 = arith.constant 0 : index
    %51 = vector.load %arg11[%50, %c0_25] : memref<64x512xf32, #tpu.memory_space<vmem>>, vector<8x512xf32>
    %52 = arith.addf %49, %51 : vector<8x512xf32>
    %53 = vector.extract_strided_slice %52 {offsets = [0, 0], sizes = [8, 128], strides = [1, 1]} : vector<8x512xf32> to vector<8x128xf32>
    %54 = arith.negf %53 : vector<8x128xf32>
    %55 = math.exp %54 : vector<8x128xf32>
    %cst_26 = arith.constant 1.000000e+00 : f32
    %56 = vector.broadcast %cst_26 : f32 to vector<8x128xf32>
    %57 = arith.addf %56, %55 : vector<8x128xf32>
    %58 = arith.divf %56, %57 : vector<8x128xf32>
    %59 = vector.extract_strided_slice %52 {offsets = [0, 128], sizes = [8, 128], strides = [1, 1]} : vector<8x512xf32> to vector<8x128xf32>
    %60 = arith.negf %59 : vector<8x128xf32>
    %61 = math.exp %60 : vector<8x128xf32>
    %cst_27 = arith.constant 1.000000e+00 : f32
    %62 = vector.broadcast %cst_27 : f32 to vector<8x128xf32>
    %63 = arith.addf %62, %61 : vector<8x128xf32>
    %64 = arith.divf %62, %63 : vector<8x128xf32>
    %65 = vector.extract_strided_slice %52 {offsets = [0, 256], sizes = [8, 128], strides = [1, 1]} : vector<8x512xf32> to vector<8x128xf32>
    %66 = math.tanh %65 : vector<8x128xf32>
    %67 = vector.extract_strided_slice %52 {offsets = [0, 384], sizes = [8, 128], strides = [1, 1]} : vector<8x512xf32> to vector<8x128xf32>
    %68 = arith.negf %67 : vector<8x128xf32>
    %69 = math.exp %68 : vector<8x128xf32>
    %cst_28 = arith.constant 1.000000e+00 : f32
    %70 = vector.broadcast %cst_28 : f32 to vector<8x128xf32>
    %71 = arith.addf %70, %69 : vector<8x128xf32>
    %72 = arith.divf %70, %71 : vector<8x128xf32>
    %73 = arith.mulf %64, %41 : vector<8x128xf32>
    %74 = arith.mulf %58, %66 : vector<8x128xf32>
    %75 = arith.addf %73, %74 : vector<8x128xf32>
    %76 = math.tanh %75 : vector<8x128xf32>
    %77 = arith.mulf %72, %76 : vector<8x128xf32>
    %78 = arith.index_cast %47 : i32 to index
    %c0_29 = arith.constant 0 : index
    %79 = vector.load %arg12[%78, %c0_29] : memref<64x128xf32, #tpu.memory_space<vmem>>, vector<8x128xf32>
    tpu.vector_store %arg12[%78, %c0_29], %77 {strides = array<i32>} : memref<64x128xf32, #tpu.memory_space<vmem>>, vector<8x128xf32>,
    %c2_i32 = arith.constant 2 : i32
    %c8_i32_30 = arith.constant 8 : i32
    %80 = arith.muli %c2_i32, %c8_i32_30 : i32
    %81 = tpu.assume_multiple %80, 8 : i32
    %c0_31 = arith.constant 0 : index
    %c0_32 = arith.constant 0 : index
    %82 = vector.load %arg4[%c0_31, %c0_32] : memref<128x512xf32, #tpu.memory_space<vmem>>, vector<128x512xf32>
    %cst_33 = arith.constant dense<0.000000e+00> : vector<8x512xf32>
    %83 = tpu.matmul %77, %82, %cst_33 {dimension_numbers = #tpu.dot_dimension_numbers<[1], [0], [0], [1], [0, 0, 1, 1], [], []>} : vector<8x128xf32>, vector<128x512xf32>, vector<8x512xf32> -> vector<8x512xf32>
    %84 = arith.index_cast %81 : i32 to index
    %c0_34 = arith.constant 0 : index
    %85 = vector.load %arg11[%84, %c0_34] : memref<64x512xf32, #tpu.memory_space<vmem>>, vector<8x512xf32>
    %86 = arith.addf %83, %85 : vector<8x512xf32>
    %87 = vector.extract_strided_slice %86 {offsets = [0, 0], sizes = [8, 128], strides = [1, 1]} : vector<8x512xf32> to vector<8x128xf32>
    %88 = arith.negf %87 : vector<8x128xf32>
    %89 = math.exp %88 : vector<8x128xf32>
    %cst_35 = arith.constant 1.000000e+00 : f32
    %90 = vector.broadcast %cst_35 : f32 to vector<8x128xf32>
    %91 = arith.addf %90, %89 : vector<8x128xf32>
    %92 = arith.divf %90, %91 : vector<8x128xf32>
    %93 = vector.extract_strided_slice %86 {offsets = [0, 128], sizes = [8, 128], strides = [1, 1]} : vector<8x512xf32> to vector<8x128xf32>
    %94 = arith.negf %93 : vector<8x128xf32>
    %95 = math.exp %94 : vector<8x128xf32>
    %cst_36 = arith.constant 1.000000e+00 : f32
    %96 = vector.broadcast %cst_36 : f32 to vector<8x128xf32>
    %97 = arith.addf %96, %95 : vector<8x128xf32>
    %98 = arith.divf %96, %97 : vector<8x128xf32>
    %99 = vector.extract_strided_slice %86 {offsets = [0, 256], sizes = [8, 128], strides = [1, 1]} : vector<8x512xf32> to vector<8x128xf32>
    %100 = math.tanh %99 : vector<8x128xf32>
    %101 = vector.extract_strided_slice %86 {offsets = [0, 384], sizes = [8, 128], strides = [1, 1]} : vector<8x512xf32> to vector<8x128xf32>
    %102 = arith.negf %101 : vector<8x128xf32>
    %103 = math.exp %102 : vector<8x128xf32>
    %cst_37 = arith.constant 1.000000e+00 : f32
    %104 = vector.broadcast %cst_37 : f32 to vector<8x128xf32>
    %105 = arith.addf %104, %103 : vector<8x128xf32>
    %106 = arith.divf %104, %105 : vector<8x128xf32>
    %107 = arith.mulf %98, %75 : vector<8x128xf32>
    %108 = arith.mulf %92, %100 : vector<8x128xf32>
    %109 = arith.addf %107, %108 : vector<8x128xf32>
    %110 = math.tanh %109 : vector<8x128xf32>
    %111 = arith.mulf %106, %110 : vector<8x128xf32>
    %112 = arith.index_cast %81 : i32 to index
    %c0_38 = arith.constant 0 : index
    %113 = vector.load %arg12[%112, %c0_38] : memref<64x128xf32, #tpu.memory_space<vmem>>, vector<8x128xf32>
    tpu.vector_store %arg12[%112, %c0_38], %111 {strides = array<i32>} : memref<64x128xf32, #tpu.memory_space<vmem>>, vector<8x128xf32>,
    %c3_i32 = arith.constant 3 : i32
    %c8_i32_39 = arith.constant 8 : i32
    %114 = arith.muli %c3_i32, %c8_i32_39 : i32
    %115 = tpu.assume_multiple %114, 8 : i32
    %c0_40 = arith.constant 0 : index
    %c0_41 = arith.constant 0 : index
    %116 = vector.load %arg4[%c0_40, %c0_41] : memref<128x512xf32, #tpu.memory_space<vmem>>, vector<128x512xf32>
    %cst_42 = arith.constant dense<0.000000e+00> : vector<8x512xf32>
    %117 = tpu.matmul %111, %116, %cst_42 {dimension_numbers = #tpu.dot_dimension_numbers<[1], [0], [0], [1], [0, 0, 1, 1], [], []>} : vector<8x128xf32>, vector<128x512xf32>, vector<8x512xf32> -> vector<8x512xf32>
    %118 = arith.index_cast %115 : i32 to index
    %c0_43 = arith.constant 0 : index
    %119 = vector.load %arg11[%118, %c0_43] : memref<64x512xf32, #tpu.memory_space<vmem>>, vector<8x512xf32>
    %120 = arith.addf %117, %119 : vector<8x512xf32>
    %121 = vector.extract_strided_slice %120 {offsets = [0, 0], sizes = [8, 128], strides = [1, 1]} : vector<8x512xf32> to vector<8x128xf32>
    %122 = arith.negf %121 : vector<8x128xf32>
    %123 = math.exp %122 : vector<8x128xf32>
    %cst_44 = arith.constant 1.000000e+00 : f32
    %124 = vector.broadcast %cst_44 : f32 to vector<8x128xf32>
    %125 = arith.addf %124, %123 : vector<8x128xf32>
    %126 = arith.divf %124, %125 : vector<8x128xf32>
    %127 = vector.extract_strided_slice %120 {offsets = [0, 128], sizes = [8, 128], strides = [1, 1]} : vector<8x512xf32> to vector<8x128xf32>
    %128 = arith.negf %127 : vector<8x128xf32>
    %129 = math.exp %128 : vector<8x128xf32>
    %cst_45 = arith.constant 1.000000e+00 : f32
    %130 = vector.broadcast %cst_45 : f32 to vector<8x128xf32>
    %131 = arith.addf %130, %129 : vector<8x128xf32>
    %132 = arith.divf %130, %131 : vector<8x128xf32>
    %133 = vector.extract_strided_slice %120 {offsets = [0, 256], sizes = [8, 128], strides = [1, 1]} : vector<8x512xf32> to vector<8x128xf32>
    %134 = math.tanh %133 : vector<8x128xf32>
    %135 = vector.extract_strided_slice %120 {offsets = [0, 384], sizes = [8, 128], strides = [1, 1]} : vector<8x512xf32> to vector<8x128xf32>
    %136 = arith.negf %135 : vector<8x128xf32>
    %137 = math.exp %136 : vector<8x128xf32>
    %cst_46 = arith.constant 1.000000e+00 : f32
    %138 = vector.broadcast %cst_46 : f32 to vector<8x128xf32>
    %139 = arith.addf %138, %137 : vector<8x128xf32>
    %140 = arith.divf %138, %139 : vector<8x128xf32>
    %141 = arith.mulf %132, %109 : vector<8x128xf32>
    %142 = arith.mulf %126, %134 : vector<8x128xf32>
    %143 = arith.addf %141, %142 : vector<8x128xf32>
    %144 = math.tanh %143 : vector<8x128xf32>
    %145 = arith.mulf %140, %144 : vector<8x128xf32>
    %146 = arith.index_cast %115 : i32 to index
    %c0_47 = arith.constant 0 : index
    %147 = vector.load %arg12[%146, %c0_47] : memref<64x128xf32, #tpu.memory_space<vmem>>, vector<8x128xf32>
    tpu.vector_store %arg12[%146, %c0_47], %145 {strides = array<i32>} : memref<64x128xf32, #tpu.memory_space<vmem>>, vector<8x128xf32>,
    %c4_i32 = arith.constant 4 : i32
    %c8_i32_48 = arith.constant 8 : i32
    %148 = arith.muli %c4_i32, %c8_i32_48 : i32
    %149 = tpu.assume_multiple %148, 8 : i32
    %c0_49 = arith.constant 0 : index
    %c0_50 = arith.constant 0 : index
    %150 = vector.load %arg4[%c0_49, %c0_50] : memref<128x512xf32, #tpu.memory_space<vmem>>, vector<128x512xf32>
    %cst_51 = arith.constant dense<0.000000e+00> : vector<8x512xf32>
    %151 = tpu.matmul %145, %150, %cst_51 {dimension_numbers = #tpu.dot_dimension_numbers<[1], [0], [0], [1], [0, 0, 1, 1], [], []>} : vector<8x128xf32>, vector<128x512xf32>, vector<8x512xf32> -> vector<8x512xf32>
    %152 = arith.index_cast %149 : i32 to index
    %c0_52 = arith.constant 0 : index
    %153 = vector.load %arg11[%152, %c0_52] : memref<64x512xf32, #tpu.memory_space<vmem>>, vector<8x512xf32>
    %154 = arith.addf %151, %153 : vector<8x512xf32>
    %155 = vector.extract_strided_slice %154 {offsets = [0, 0], sizes = [8, 128], strides = [1, 1]} : vector<8x512xf32> to vector<8x128xf32>
    %156 = arith.negf %155 : vector<8x128xf32>
    %157 = math.exp %156 : vector<8x128xf32>
    %cst_53 = arith.constant 1.000000e+00 : f32
    %158 = vector.broadcast %cst_53 : f32 to vector<8x128xf32>
    %159 = arith.addf %158, %157 : vector<8x128xf32>
    %160 = arith.divf %158, %159 : vector<8x128xf32>
    %161 = vector.extract_strided_slice %154 {offsets = [0, 128], sizes = [8, 128], strides = [1, 1]} : vector<8x512xf32> to vector<8x128xf32>
    %162 = arith.negf %161 : vector<8x128xf32>
    %163 = math.exp %162 : vector<8x128xf32>
    %cst_54 = arith.constant 1.000000e+00 : f32
    %164 = vector.broadcast %cst_54 : f32 to vector<8x128xf32>
    %165 = arith.addf %164, %163 : vector<8x128xf32>
    %166 = arith.divf %164, %165 : vector<8x128xf32>
    %167 = vector.extract_strided_slice %154 {offsets = [0, 256], sizes = [8, 128], strides = [1, 1]} : vector<8x512xf32> to vector<8x128xf32>
    %168 = math.tanh %167 : vector<8x128xf32>
    %169 = vector.extract_strided_slice %154 {offsets = [0, 384], sizes = [8, 128], strides = [1, 1]} : vector<8x512xf32> to vector<8x128xf32>
    %170 = arith.negf %169 : vector<8x128xf32>
    %171 = math.exp %170 : vector<8x128xf32>
    %cst_55 = arith.constant 1.000000e+00 : f32
    %172 = vector.broadcast %cst_55 : f32 to vector<8x128xf32>
    %173 = arith.addf %172, %171 : vector<8x128xf32>
    %174 = arith.divf %172, %173 : vector<8x128xf32>
    %175 = arith.mulf %166, %143 : vector<8x128xf32>
    %176 = arith.mulf %160, %168 : vector<8x128xf32>
    %177 = arith.addf %175, %176 : vector<8x128xf32>
    %178 = math.tanh %177 : vector<8x128xf32>
    %179 = arith.mulf %174, %178 : vector<8x128xf32>
    %180 = arith.index_cast %149 : i32 to index
    %c0_56 = arith.constant 0 : index
    %181 = vector.load %arg12[%180, %c0_56] : memref<64x128xf32, #tpu.memory_space<vmem>>, vector<8x128xf32>
    tpu.vector_store %arg12[%180, %c0_56], %179 {strides = array<i32>} : memref<64x128xf32, #tpu.memory_space<vmem>>, vector<8x128xf32>,
    %c5_i32 = arith.constant 5 : i32
    %c8_i32_57 = arith.constant 8 : i32
    %182 = arith.muli %c5_i32, %c8_i32_57 : i32
    %183 = tpu.assume_multiple %182, 8 : i32
    %c0_58 = arith.constant 0 : index
    %c0_59 = arith.constant 0 : index
    %184 = vector.load %arg4[%c0_58, %c0_59] : memref<128x512xf32, #tpu.memory_space<vmem>>, vector<128x512xf32>
    %cst_60 = arith.constant dense<0.000000e+00> : vector<8x512xf32>
    %185 = tpu.matmul %179, %184, %cst_60 {dimension_numbers = #tpu.dot_dimension_numbers<[1], [0], [0], [1], [0, 0, 1, 1], [], []>} : vector<8x128xf32>, vector<128x512xf32>, vector<8x512xf32> -> vector<8x512xf32>
    %186 = arith.index_cast %183 : i32 to index
    %c0_61 = arith.constant 0 : index
    %187 = vector.load %arg11[%186, %c0_61] : memref<64x512xf32, #tpu.memory_space<vmem>>, vector<8x512xf32>
    %188 = arith.addf %185, %187 : vector<8x512xf32>
    %189 = vector.extract_strided_slice %188 {offsets = [0, 0], sizes = [8, 128], strides = [1, 1]} : vector<8x512xf32> to vector<8x128xf32>
    %190 = arith.negf %189 : vector<8x128xf32>
    %191 = math.exp %190 : vector<8x128xf32>
    %cst_62 = arith.constant 1.000000e+00 : f32
    %192 = vector.broadcast %cst_62 : f32 to vector<8x128xf32>
    %193 = arith.addf %192, %191 : vector<8x128xf32>
    %194 = arith.divf %192, %193 : vector<8x128xf32>
    %195 = vector.extract_strided_slice %188 {offsets = [0, 128], sizes = [8, 128], strides = [1, 1]} : vector<8x512xf32> to vector<8x128xf32>
    %196 = arith.negf %195 : vector<8x128xf32>
    %197 = math.exp %196 : vector<8x128xf32>
    %cst_63 = arith.constant 1.000000e+00 : f32
    %198 = vector.broadcast %cst_63 : f32 to vector<8x128xf32>
    %199 = arith.addf %198, %197 : vector<8x128xf32>
    %200 = arith.divf %198, %199 : vector<8x128xf32>
    %201 = vector.extract_strided_slice %188 {offsets = [0, 256], sizes = [8, 128], strides = [1, 1]} : vector<8x512xf32> to vector<8x128xf32>
    %202 = math.tanh %201 : vector<8x128xf32>
    %203 = vector.extract_strided_slice %188 {offsets = [0, 384], sizes = [8, 128], strides = [1, 1]} : vector<8x512xf32> to vector<8x128xf32>
    %204 = arith.negf %203 : vector<8x128xf32>
    %205 = math.exp %204 : vector<8x128xf32>
    %cst_64 = arith.constant 1.000000e+00 : f32
    %206 = vector.broadcast %cst_64 : f32 to vector<8x128xf32>
    %207 = arith.addf %206, %205 : vector<8x128xf32>
    %208 = arith.divf %206, %207 : vector<8x128xf32>
    %209 = arith.mulf %200, %177 : vector<8x128xf32>
    %210 = arith.mulf %194, %202 : vector<8x128xf32>
    %211 = arith.addf %209, %210 : vector<8x128xf32>
    %212 = math.tanh %211 : vector<8x128xf32>
    %213 = arith.mulf %208, %212 : vector<8x128xf32>
    %214 = arith.index_cast %183 : i32 to index
    %c0_65 = arith.constant 0 : index
    %215 = vector.load %arg12[%214, %c0_65] : memref<64x128xf32, #tpu.memory_space<vmem>>, vector<8x128xf32>
    tpu.vector_store %arg12[%214, %c0_65], %213 {strides = array<i32>} : memref<64x128xf32, #tpu.memory_space<vmem>>, vector<8x128xf32>,
    %c6_i32 = arith.constant 6 : i32
    %c8_i32_66 = arith.constant 8 : i32
    %216 = arith.muli %c6_i32, %c8_i32_66 : i32
    %217 = tpu.assume_multiple %216, 8 : i32
    %c0_67 = arith.constant 0 : index
    %c0_68 = arith.constant 0 : index
    %218 = vector.load %arg4[%c0_67, %c0_68] : memref<128x512xf32, #tpu.memory_space<vmem>>, vector<128x512xf32>
    %cst_69 = arith.constant dense<0.000000e+00> : vector<8x512xf32>
    %219 = tpu.matmul %213, %218, %cst_69 {dimension_numbers = #tpu.dot_dimension_numbers<[1], [0], [0], [1], [0, 0, 1, 1], [], []>} : vector<8x128xf32>, vector<128x512xf32>, vector<8x512xf32> -> vector<8x512xf32>
    %220 = arith.index_cast %217 : i32 to index
    %c0_70 = arith.constant 0 : index
    %221 = vector.load %arg11[%220, %c0_70] : memref<64x512xf32, #tpu.memory_space<vmem>>, vector<8x512xf32>
    %222 = arith.addf %219, %221 : vector<8x512xf32>
    %223 = vector.extract_strided_slice %222 {offsets = [0, 0], sizes = [8, 128], strides = [1, 1]} : vector<8x512xf32> to vector<8x128xf32>
    %224 = arith.negf %223 : vector<8x128xf32>
    %225 = math.exp %224 : vector<8x128xf32>
    %cst_71 = arith.constant 1.000000e+00 : f32
    %226 = vector.broadcast %cst_71 : f32 to vector<8x128xf32>
    %227 = arith.addf %226, %225 : vector<8x128xf32>
    %228 = arith.divf %226, %227 : vector<8x128xf32>
    %229 = vector.extract_strided_slice %222 {offsets = [0, 128], sizes = [8, 128], strides = [1, 1]} : vector<8x512xf32> to vector<8x128xf32>
    %230 = arith.negf %229 : vector<8x128xf32>
    %231 = math.exp %230 : vector<8x128xf32>
    %cst_72 = arith.constant 1.000000e+00 : f32
    %232 = vector.broadcast %cst_72 : f32 to vector<8x128xf32>
    %233 = arith.addf %232, %231 : vector<8x128xf32>
    %234 = arith.divf %232, %233 : vector<8x128xf32>
    %235 = vector.extract_strided_slice %222 {offsets = [0, 256], sizes = [8, 128], strides = [1, 1]} : vector<8x512xf32> to vector<8x128xf32>
    %236 = math.tanh %235 : vector<8x128xf32>
    %237 = vector.extract_strided_slice %222 {offsets = [0, 384], sizes = [8, 128], strides = [1, 1]} : vector<8x512xf32> to vector<8x128xf32>
    %238 = arith.negf %237 : vector<8x128xf32>
    %239 = math.exp %238 : vector<8x128xf32>
    %cst_73 = arith.constant 1.000000e+00 : f32
    %240 = vector.broadcast %cst_73 : f32 to vector<8x128xf32>
    %241 = arith.addf %240, %239 : vector<8x128xf32>
    %242 = arith.divf %240, %241 : vector<8x128xf32>
    %243 = arith.mulf %234, %211 : vector<8x128xf32>
    %244 = arith.mulf %228, %236 : vector<8x128xf32>
    %245 = arith.addf %243, %244 : vector<8x128xf32>
    %246 = math.tanh %245 : vector<8x128xf32>
    %247 = arith.mulf %242, %246 : vector<8x128xf32>
    %248 = arith.index_cast %217 : i32 to index
    %c0_74 = arith.constant 0 : index
    %249 = vector.load %arg12[%248, %c0_74] : memref<64x128xf32, #tpu.memory_space<vmem>>, vector<8x128xf32>
    tpu.vector_store %arg12[%248, %c0_74], %247 {strides = array<i32>} : memref<64x128xf32, #tpu.memory_space<vmem>>, vector<8x128xf32>,
    %c7_i32 = arith.constant 7 : i32
    %c8_i32_75 = arith.constant 8 : i32
    %250 = arith.muli %c7_i32, %c8_i32_75 : i32
    %251 = tpu.assume_multiple %250, 8 : i32
    %c0_76 = arith.constant 0 : index
    %c0_77 = arith.constant 0 : index
    %252 = vector.load %arg4[%c0_76, %c0_77] : memref<128x512xf32, #tpu.memory_space<vmem>>, vector<128x512xf32>
    %cst_78 = arith.constant dense<0.000000e+00> : vector<8x512xf32>
    %253 = tpu.matmul %247, %252, %cst_78 {dimension_numbers = #tpu.dot_dimension_numbers<[1], [0], [0], [1], [0, 0, 1, 1], [], []>} : vector<8x128xf32>, vector<128x512xf32>, vector<8x512xf32> -> vector<8x512xf32>
    %254 = arith.index_cast %251 : i32 to index
    %c0_79 = arith.constant 0 : index
    %255 = vector.load %arg11[%254, %c0_79] : memref<64x512xf32, #tpu.memory_space<vmem>>, vector<8x512xf32>
    %256 = arith.addf %253, %255 : vector<8x512xf32>
    %257 = vector.extract_strided_slice %256 {offsets = [0, 0], sizes = [8, 128], strides = [1, 1]} : vector<8x512xf32> to vector<8x128xf32>
    %258 = arith.negf %257 : vector<8x128xf32>
    %259 = math.exp %258 : vector<8x128xf32>
    %cst_80 = arith.constant 1.000000e+00 : f32
    %260 = vector.broadcast %cst_80 : f32 to vector<8x128xf32>
    %261 = arith.addf %260, %259 : vector<8x128xf32>
    %262 = arith.divf %260, %261 : vector<8x128xf32>
    %263 = vector.extract_strided_slice %256 {offsets = [0, 128], sizes = [8, 128], strides = [1, 1]} : vector<8x512xf32> to vector<8x128xf32>
    %264 = arith.negf %263 : vector<8x128xf32>
    %265 = math.exp %264 : vector<8x128xf32>
    %cst_81 = arith.constant 1.000000e+00 : f32
    %266 = vector.broadcast %cst_81 : f32 to vector<8x128xf32>
    %267 = arith.addf %266, %265 : vector<8x128xf32>
    %268 = arith.divf %266, %267 : vector<8x128xf32>
    %269 = vector.extract_strided_slice %256 {offsets = [0, 256], sizes = [8, 128], strides = [1, 1]} : vector<8x512xf32> to vector<8x128xf32>
    %270 = math.tanh %269 : vector<8x128xf32>
    %271 = vector.extract_strided_slice %256 {offsets = [0, 384], sizes = [8, 128], strides = [1, 1]} : vector<8x512xf32> to vector<8x128xf32>
    %272 = arith.negf %271 : vector<8x128xf32>
    %273 = math.exp %272 : vector<8x128xf32>
    %cst_82 = arith.constant 1.000000e+00 : f32
    %274 = vector.broadcast %cst_82 : f32 to vector<8x128xf32>
    %275 = arith.addf %274, %273 : vector<8x128xf32>
    %276 = arith.divf %274, %275 : vector<8x128xf32>
    %277 = arith.mulf %268, %245 : vector<8x128xf32>
    %278 = arith.mulf %262, %270 : vector<8x128xf32>
    %279 = arith.addf %277, %278 : vector<8x128xf32>
    %280 = math.tanh %279 : vector<8x128xf32>
    %281 = arith.mulf %276, %280 : vector<8x128xf32>
    %282 = arith.index_cast %251 : i32 to index
    %c0_83 = arith.constant 0 : index
    %283 = vector.load %arg12[%282, %c0_83] : memref<64x128xf32, #tpu.memory_space<vmem>>, vector<8x128xf32>
    tpu.vector_store %arg12[%282, %c0_83], %281 {strides = array<i32>} : memref<64x128xf32, #tpu.memory_space<vmem>>, vector<8x128xf32>,
    %c8_i32_84 = arith.constant 8 : i32
    %c0_85 = arith.constant 0 : index
    %c0_86 = arith.constant 0 : index
    %284 = vector.load %arg9[%c0_85, %c0_86] : memref<8x128xf32, #tpu.memory_space<vmem>>, vector<8x128xf32>
    tpu.vector_store %arg9[%c0_85, %c0_86], %281 {strides = array<i32>} : memref<8x128xf32, #tpu.memory_space<vmem>>, vector<8x128xf32>,
    %c0_87 = arith.constant 0 : index
    %c0_88 = arith.constant 0 : index
    %285 = vector.load %arg10[%c0_87, %c0_88] : memref<8x128xf32, #tpu.memory_space<vmem>>, vector<8x128xf32>
    tpu.vector_store %arg10[%c0_87, %c0_88], %279 {strides = array<i32>} : memref<8x128xf32, #tpu.memory_space<vmem>>, vector<8x128xf32>,
    %c0_89 = arith.constant 0 : index
    %c0_90 = arith.constant 0 : index
    %286 = vector.load %arg12[%c0_89, %c0_90] : memref<64x128xf32, #tpu.memory_space<vmem>>, vector<64x128xf32>
    %c0_91 = arith.constant 0 : index
    %c0_92 = arith.constant 0 : index
    %287 = vector.load %arg6[%c0_91, %c0_92] : memref<128x128xf32, #tpu.memory_space<vmem>>, vector<128x128xf32>
    %cst_93 = arith.constant dense<0.000000e+00> : vector<64x128xf32>
    %288 = tpu.matmul %286, %287, %cst_93 {dimension_numbers = #tpu.dot_dimension_numbers<[1], [0], [0], [1], [0, 0, 1, 1], [], []>} : vector<64x128xf32>, vector<128x128xf32>, vector<64x128xf32> -> vector<64x128xf32>
    %c0_94 = arith.constant 0 : index
    %c0_95 = arith.constant 0 : index
    %289 = vector.load %arg7[%c0_94, %c0_95] : memref<1x128xf32, #tpu.memory_space<vmem>>, vector<1x128xf32>
    %290 = vector.broadcast %289 : vector<1x128xf32> to vector<64x128xf32>
    %291 = arith.addf %288, %290 : vector<64x128xf32>
    %c0_96 = arith.constant 0 : index
    %c0_97 = arith.constant 0 : index
    %292 = vector.load %arg8[%c0_96, %c0_97] : memref<64x128xf32, #tpu.memory_space<vmem>>, vector<64x128xf32>
    tpu.vector_store %arg8[%c0_96, %c0_97], %291 {strides = array<i32>} : memref<64x128xf32, #tpu.memory_space<vmem>>, vector<64x128xf32>,
    return
  }
  func.func @transform_0(%arg0: i32, %arg1: i32) -> (i32, i32) {
    %c1_i32 = arith.constant 1 : i32
    %0 = arith.muli %arg0, %c1_i32 : i32
    %1 = arith.addi %0, %arg1 : i32
    %c0_i32 = arith.constant 0 : i32
    %c0_i32_0 = arith.constant 0 : i32
    return %1, %c0_i32 : i32, i32
  }
  func.func @transform_1(%arg0: i32, %arg1: i32) -> (i32, i32) {
    %c0_i32 = arith.constant 0 : i32
    %c0_i32_0 = arith.constant 0 : i32
    %c0_i32_1 = arith.constant 0 : i32
    return %c0_i32, %c0_i32_0 : i32, i32
  }
  func.func @transform_2(%arg0: i32, %arg1: i32) -> (i32, i32) {
    %c0_i32 = arith.constant 0 : i32
    %c0_i32_0 = arith.constant 0 : i32
    %c0_i32_1 = arith.constant 0 : i32
    return %c0_i32, %c0_i32_0 : i32, i32
  }
  func.func @transform_3(%arg0: i32, %arg1: i32) -> (i32, i32) {
    %c0_i32 = arith.constant 0 : i32
    %c0_i32_0 = arith.constant 0 : i32
    %c0_i32_1 = arith.constant 0 : i32
    return %c0_i32, %c0_i32_0 : i32, i32
  }
  func.func @transform_4(%arg0: i32, %arg1: i32) -> (i32, i32) {
    %c0_i32 = arith.constant 0 : i32
    %c0_i32_0 = arith.constant 0 : i32
    %c0_i32_1 = arith.constant 0 : i32
    return %c0_i32, %c0_i32_0 : i32, i32
  }
  func.func @transform_5(%arg0: i32, %arg1: i32) -> (i32, i32) {
    %c0_i32 = arith.constant 0 : i32
    %c0_i32_0 = arith.constant 0 : i32
    %c0_i32_1 = arith.constant 0 : i32
    return %c0_i32, %c0_i32_0 : i32, i32
  }
  func.func @transform_6(%arg0: i32, %arg1: i32) -> (i32, i32) {
    %c1_i32 = arith.constant 1 : i32
    %0 = arith.muli %arg0, %c1_i32 : i32
    %1 = arith.addi %0, %arg1 : i32
    %c0_i32 = arith.constant 0 : i32
    %c0_i32_0 = arith.constant 0 : i32
    return %1, %c0_i32 : i32, i32
  }
}

</mosaic_0001>

<llo_original>
// kernel: tpu_custom_call.1
$region0: #{tpu_custom_call.1}
  #allocation0 [shape = 'u32[]', space=smem, size = 0x4, offset = 0x4, fixed_abs, tag = 'smem constant byte address 0x4 - core index']
  #allocation1 [shape = 'u32[144,128]{1,0:T(1,128)}', space=vmem, size = 0x12000, scoped, tag = 'internal scratch']
  #allocation2 [shape = 'f32[8,128]{1,0:T(8,128)}', space=vmem, size = 0x1000, scoped, tag = 'scratch operand']
  #allocation3 [shape = 'f32[8,128]{1,0:T(8,128)}', space=vmem, size = 0x1000, scoped, tag = 'scratch operand']
  #allocation4 [shape = 'f32[64,512]{1,0:T(8,128)}', space=vmem, size = 0x20000, scoped, tag = 'scratch operand']
  #allocation5 [shape = 'f32[64,128]{1,0:T(8,128)}', space=vmem, size = 0x8000, scoped, tag = 'scratch operand']
  %s0 = inlined_call_operand.hbm [shape: f32[64,128], index: 0, kind: input, shape index: {}]
  %s1 = inlined_call_operand.hbm [shape: f32[128,512], index: 1, kind: input, shape index: {}]
  %s2 = inlined_call_operand.hbm [shape: f32[128,512], index: 2, kind: input, shape index: {}]
  %s3 = inlined_call_operand.vmem [shape: f32[1,512], index: 3, kind: input, shape index: {}]
  %s4 = inlined_call_operand.hbm [shape: f32[128,128], index: 4, kind: input, shape index: {}]
  %s5 = inlined_call_operand.vmem [shape: f32[1,128], index: 5, kind: input, shape index: {}]
  %s6 = inlined_call_operand.hbm [shape: f32[64,128], index: 6, kind: output, shape index: {}]
  %s7 = sld [smem:[#allocation0]]
  $region54: #{tpu_custom_call.1} parent=0
    _
  %s9 = ssub.s32 1, %s7
  %s10 = scalar_select 0, %s9, %s7
  $region1: #{tpu_custom_call.1} parent=0
    #allocation6 [shape = 'u8[32768]{0}', space=vmem, size = 0x8000, scoped, tag = 'input window, operand 0, single buffered']
    #allocation7 [shape = 's32[1]{0}', space=sflag, size = 0x4, scoped, tag = 'scoped memory for tpu_custom_call.1']
    #allocation8 [shape = 's32[1]{0}', space=sflag, size = 0x4, scoped, tag = 'scoped memory for tpu_custom_call.1']
    #allocation9 [shape = 'u8[262144]{0}', space=vmem, size = 0x40000, scoped, tag = 'input window, operand 1, single buffered']
    #allocation10 [shape = 's32[1]{0}', space=sflag, size = 0x4, scoped, tag = 'scoped memory for tpu_custom_call.1']
    #allocation11 [shape = 'u8[262144]{0}', space=vmem, size = 0x40000, scoped, tag = 'input window, operand 2, single buffered']
    #allocation12 [shape = 'u8[65536]{0}', space=vmem, size = 0x10000, scoped, tag = 'input window, operand 4, single buffered']
    #allocation13 [shape = 's32[1]{0}', space=sflag, size = 0x4, scoped, tag = 'scoped memory for tpu_custom_call.1']
    #allocation14 [shape = 'u8[32768]{0}', space=vmem, size = 0x8000, scoped, tag = 'output window, operand 0, single buffered']
    %11 = vsyncpa [#allocation7], 0
    %12 = vsyncpa [#allocation10], 0
    %13 = vsyncpa [#allocation13], 0
    %14 = vsyncpa [#allocation8], 0
    // Predicated region
    $region2: #{tpu_custom_call.1} parent=1 // pred_check
      _
    $region3: #{tpu_custom_call.1} parent=1 // pred_check_branch
      %16 = sbr.rel (0) target = $region5
    $region4: #{tpu_custom_call.1} parent=1 // pred_region
      %s17 = sadd.s32 0, 0
      %s18 = smul.u32 8, %s17
      %s20 = ssub.s32 1024, 1024
      %21 = vsyncadd [#allocation7], %s20
      %s22 = smul.addr %s18, 128
      %s23 = scalar_lea.hbm %s0, %s22
      %s24 = sshll.u32 [#allocation6], 4
      %s25 = int_to_ptr.vmem [resolvable:$true] %s24
      %30 = dma.hbm_to_vmem [thread:$0]  %s23, 1024, %s25, [#allocation7], 128, 128, 8
    $region5: #{tpu_custom_call.1} parent=1 // pred_fallthru
      _
    // Predicated region
    $region6: #{tpu_custom_call.1} parent=1 // pred_check
      _
    $region7: #{tpu_custom_call.1} parent=1 // pred_check_branch
      %32 = sbr.rel (0) target = $region9
    $region8: #{tpu_custom_call.1} parent=1 // pred_region
      %s34 = ssub.s32 8192, 8192
      %35 = vsyncadd [#allocation10], %s34
      %s36 = sshll.u32 [#allocation9], 4
      %s37 = int_to_ptr.vmem [resolvable:$true] %s36
      %42 = dma.hbm_to_vmem [thread:$0]  %s1, 8192, %s37, [#allocation10], 512, 512, 32
    $region9: #{tpu_custom_call.1} parent=1 // pred_fallthru
      _
    // Predicated region
    $region10: #{tpu_custom_call.1} parent=1 // pred_check
      _
    $region11: #{tpu_custom_call.1} parent=1 // pred_check_branch
      %44 = sbr.rel (0) target = $region13
    $region12: #{tpu_custom_call.1} parent=1 // pred_region
      %s46 = ssub.s32 8192, 8192
      %47 = vsyncadd [#allocation10], %s46
      %s48 = sshll.u32 [#allocation11], 4
      %s49 = int_to_ptr.vmem [resolvable:$true] %s48
      %54 = dma.hbm_to_vmem [thread:$0]  %s2, 8192, %s49, [#allocation10], 512, 512, 32
    $region13: #{tpu_custom_call.1} parent=1 // pred_fallthru
      _
    // Predicated region
    $region14: #{tpu_custom_call.1} parent=1 // pred_check
      _
    $region15: #{tpu_custom_call.1} parent=1 // pred_check_branch
      %56 = sbr.rel (0) target = $region17
    $region16: #{tpu_custom_call.1} parent=1 // pred_region
      _
    $region17: #{tpu_custom_call.1} parent=1 // pred_fallthru
      _
    // Predicated region
    $region18: #{tpu_custom_call.1} parent=1 // pred_check
      _
    $region19: #{tpu_custom_call.1} parent=1 // pred_check_branch
      %58 = sbr.rel (0) target = $region21
    $region20: #{tpu_custom_call.1} parent=1 // pred_region
      %s60 = ssub.s32 2048, 2048
      %61 = vsyncadd [#allocation13], %s60
      %s62 = sshll.u32 [#allocation12], 4
      %s63 = int_to_ptr.vmem [resolvable:$true] %s62
      %68 = dma.hbm_to_vmem [thread:$0]  %s4, 2048, %s63, [#allocation13], 128, 128, 8
    $region21: #{tpu_custom_call.1} parent=1 // pred_fallthru
      _
    // Predicated region
    $region22: #{tpu_custom_call.1} parent=1 // pred_check
      _
    $region23: #{tpu_custom_call.1} parent=1 // pred_check_branch
      %70 = sbr.rel (0) target = $region25
    $region24: #{tpu_custom_call.1} parent=1 // pred_region
      _
    $region25: #{tpu_custom_call.1} parent=1 // pred_fallthru
      _
    // Predicated region
    $region26: #{tpu_custom_call.1} parent=1 // pred_check
      _
    $region27: #{tpu_custom_call.1} parent=1 // pred_check_branch
      %72 = sbr.rel (0) target = $region29
    $region28: #{tpu_custom_call.1} parent=1 // pred_region
      %73 = dma.done [#allocation7], 1024
    $region29: #{tpu_custom_call.1} parent=1 // pred_fallthru
      _
    // Predicated region
    $region30: #{tpu_custom_call.1} parent=1 // pred_check
      _
    $region31: #{tpu_custom_call.1} parent=1 // pred_check_branch
      %75 = sbr.rel (0) target = $region33
    $region32: #{tpu_custom_call.1} parent=1 // pred_region
      %76 = dma.done [#allocation10], 8192
    $region33: #{tpu_custom_call.1} parent=1 // pred_fallthru
      _
    // Predicated region
    $region34: #{tpu_custom_call.1} parent=1 // pred_check
      _
    $region35: #{tpu_custom_call.1} parent=1 // pred_check_branch
      %78 = sbr.rel (0) target = $region37
    $region36: #{tpu_custom_call.1} parent=1 // pred_region
      %79 = dma.done [#allocation10], 8192
    $region37: #{tpu_custom_call.1} parent=1 // pred_fallthru
      _
    // Predicated region
    $region38: #{tpu_custom_call.1} parent=1 // pred_check
      _
    $region39: #{tpu_custom_call.1} parent=1 // pred_check_branch
      %81 = sbr.rel (0) target = $region41
    $region40: #{tpu_custom_call.1} parent=1 // pred_region
      %82 = dma.done [#allocation13], 2048
    $region41: #{tpu_custom_call.1} parent=1 // pred_fallthru
      _
    %s83 = sadd.s32 0, 0
    %s84 = smul.u32 8, %s83
    %s85 = sadd.s32 0, 0
    %s86 = smul.u32 8, %s85
    %p87 = scmp.eq.s32.totalorder 0, 0
    // Predicated region
    $region42: #{tpu_custom_call.1} parent=1 // pred_check
      %p88 = pneg %p87
    $region43: #{tpu_custom_call.1} parent=1 // pred_check_branch
      %90 = sbr.rel (%p88) target = $region45
    $region44: #{tpu_custom_call.1} parent=1 // pred_region
      %91 = vst [vmem:[#allocation2] sm:$0xff] 0.0
      %92 = vst [vmem:[#allocation3] sm:$0xff] 0.0
    $region45: #{tpu_custom_call.1} parent=1 // pred_fallthru
      _
    %v93 = vld [vmem:[#allocation6] sm:$0xff]
    %v94 = vld [vmem:[#allocation6 + $0x8] sm:$0xff]
    %v95 = vld [vmem:[#allocation6 + $0x10] sm:$0xff]
    %v96 = vld [vmem:[#allocation6 + $0x18] sm:$0xff]
    %v97 = vld [vmem:[#allocation6 + $0x20] sm:$0xff]
    %v98 = vld [vmem:[#allocation6 + $0x28] sm:$0xff]
    %v99 = vld [vmem:[#allocation6 + $0x30] sm:$0xff]
    %v100 = vld [vmem:[#allocation6 + $0x38] sm:$0xff]
    %v101 = vld [vmem:[#allocation9] sm:$0xff]
    %v102 = vld [vmem:[#allocation9 + $0x8] sm:$0xff]
    %v103 = vld [vmem:[#allocation9 + $0x10] sm:$0xff]
    %v104 = vld [vmem:[#allocation9 + $0x18] sm:$0xff]
    %v105 = vld [vmem:[#allocation9 + $0x20] sm:$0xff]
    %v106 = vld [vmem:[#allocation9 + $0x28] sm:$0xff]
    %v107 = vld [vmem:[#allocation9 + $0x30] sm:$0xff]
    %v108 = vld [vmem:[#allocation9 + $0x38] sm:$0xff]
    %v109 = vld [vmem:[#allocation9 + $0x40] sm:$0xff]
    %v110 = vld [vmem:[#allocation9 + $0x48] sm:$0xff]
    %v111 = vld [vmem:[#allocation9 + $0x50] sm:$0xff]
    %v112 = vld [vmem:[#allocation9 + $0x58] sm:$0xff]
    %v113 = vld [vmem:[#allocation9 + $0x60] sm:$0xff]
    %v114 = vld [vmem:[#allocation9 + $0x68] sm:$0xff]
    %v115 = vld [vmem:[#allocation9 + $0x70] sm:$0xff]
    %v116 = vld [vmem:[#allocation9 + $0x78] sm:$0xff]
    %v117 = vld [vmem:[#allocation9 + $0x80] sm:$0xff]
    %v118 = vld [vmem:[#allocation9 + $0x88] sm:$0xff]
    %v119 = vld [vmem:[#allocation9 + $0x90] sm:$0xff]
    %v120 = vld [vmem:[#allocation9 + $0x98] sm:$0xff]
    %v121 = vld [vmem:[#allocation9 + $0xa0] sm:$0xff]
    %v122 = vld [vmem:[#allocation9 + $0xa8] sm:$0xff]
    %v123 = vld [vmem:[#allocation9 + $0xb0] sm:$0xff]
    %v124 = vld [vmem:[#allocation9 + $0xb8] sm:$0xff]
    %v125 = vld [vmem:[#allocation9 + $0xc0] sm:$0xff]
    %v126 = vld [vmem:[#allocation9 + $0xc8] sm:$0xff]
    %v127 = vld [vmem:[#allocation9 + $0xd0] sm:$0xff]
    %v128 = vld [vmem:[#allocation9 + $0xd8] sm:$0xff]
    %v129 = vld [vmem:[#allocation9 + $0xe0] sm:$0xff]
    %v130 = vld [vmem:[#allocation9 + $0xe8] sm:$0xff]
    %v131 = vld [vmem:[#allocation9 + $0xf0] sm:$0xff]
    %v132 = vld [vmem:[#allocation9 + $0xf8] sm:$0xff]
    %v133 = vld [vmem:[#allocation9 + $0x100] sm:$0xff]
    %v134 = vld [vmem:[#allocation9 + $0x108] sm:$0xff]
    %v135 = vld [vmem:[#allocation9 + $0x110] sm:$0xff]
    %v136 = vld [vmem:[#allocation9 + $0x118] sm:$0xff]
    %v137 = vld [vmem:[#allocation9 + $0x120] sm:$0xff]
    %v138 = vld [vmem:[#allocation9 + $0x128] sm:$0xff]
    %v139 = vld [vmem:[#allocation9 + $0x130] sm:$0xff]
    %v140 = vld [vmem:[#allocation9 + $0x138] sm:$0xff]
    %v141 = vld [vmem:[#allocation9 + $0x140] sm:$0xff]
    %v142 = vld [vmem:[#allocation9 + $0x148] sm:$0xff]
    %v143 = vld [vmem:[#allocation9 + $0x150] sm:$0xff]
    %v144 = vld [vmem:[#allocation9 + $0x158] sm:$0xff]
    %v145 = vld [vmem:[#allocation9 + $0x160] sm:$0xff]
    %v146 = vld [vmem:[#allocation9 + $0x168] sm:$0xff]
    %v147 = vld [vmem:[#allocation9 + $0x170] sm:$0xff]
    %v148 = vld [vmem:[#allocation9 + $0x178] sm:$0xff]
    %v149 = vld [vmem:[#allocation9 + $0x180] sm:$0xff]
    %v150 = vld [vmem:[#allocation9 + $0x188] sm:$0xff]
    %v151 = vld [vmem:[#allocation9 + $0x190] sm:$0xff]
    %v152 = vld [vmem:[#allocation9 + $0x198] sm:$0xff]
    %v153 = vld [vmem:[#allocation9 + $0x1a0] sm:$0xff]
    %v154 = vld [vmem:[#allocation9 + $0x1a8] sm:$0xff]
    %v155 = vld [vmem:[#allocation9 + $0x1b0] sm:$0xff]
    %v156 = vld [vmem:[#allocation9 + $0x1b8] sm:$0xff]
    %v157 = vld [vmem:[#allocation9 + $0x1c0] sm:$0xff]
    %v158 = vld [vmem:[#allocation9 + $0x1c8] sm:$0xff]
    %v159 = vld [vmem:[#allocation9 + $0x1d0] sm:$0xff]
    %v160 = vld [vmem:[#allocation9 + $0x1d8] sm:$0xff]
    %v161 = vld [vmem:[#allocation9 + $0x1e0] sm:$0xff]
    %v162 = vld [vmem:[#allocation9 + $0x1e8] sm:$0xff]
    %v163 = vld [vmem:[#allocation9 + $0x1f0] sm:$0xff]
    %v164 = vld [vmem:[#allocation9 + $0x1f8] sm:$0xff]
    %v165 = vld [vmem:[%s3] sm:$0xf]
    %v167 = vlaneseq
    %v168 = vshrl.u32 %v167, 7
    %v169 = vsub.s32 0, %v168
    %v170 = vrot.slane %v165, %v169
    %v171 = vlaneseq
    %v172 = vshrl.u32 %v171, 7
    %v173 = vsub.s32 1, %v172
    %v174 = vrot.slane %v165, %v173
    %v175 = vlaneseq
    %v176 = vshrl.u32 %v175, 7
    %v177 = vsub.s32 2, %v176
    %v178 = vrot.slane %v165, %v177
    %v179 = vlaneseq
    %v180 = vshrl.u32 %v179, 7
    %v181 = vsub.s32 3, %v180
    %v182 = vrot.slane %v165, %v181
    %187 = vmatprep.subr.mxu0 %v102
    %188 = vmatpush1.msra.mxu0 %v101
    %189 = vmatprep.subr.mxu0 %v106
    %190 = vmatpush1.msra.mxu0 %v105
    %191 = vmatprep.subr.mxu0 %v110
    %192 = vmatpush1.msra.mxu0 %v109
    %193 = vmatprep.subr.mxu0 %v114
    %194 = vmatpush1.msra.mxu0 %v113
    %195 = vmatprep.subr.mxu0 %v118
    %196 = vmatpush1.msra.mxu0 %v117
    %197 = vmatprep.subr.mxu0 %v122
    %198 = vmatpush1.msra.mxu0 %v121
    %199 = vmatprep.subr.mxu0 %v126
    %200 = vmatpush1.msra.mxu0 %v125
    %201 = vmatprep.subr.mxu0 %v130
    %202 = vmatpush1.msra.mxu0 %v129
    %203 = vmatprep.subr.mxu0 %v134
    %204 = vmatpush1.msra.mxu0 %v133
    %205 = vmatprep.subr.mxu0 %v138
    %206 = vmatpush1.msra.mxu0 %v137
    %207 = vmatprep.subr.mxu0 %v142
    %208 = vmatpush1.msra.mxu0 %v141
    %209 = vmatprep.subr.mxu0 %v146
    %210 = vmatpush1.msra.mxu0 %v145
    %211 = vmatprep.subr.mxu0 %v150
    %212 = vmatpush1.msra.mxu0 %v149
    %213 = vmatprep.subr.mxu0 %v154
    %214 = vmatpush1.msra.mxu0 %v153
    %215 = vmatprep.subr.mxu0 %v158
    %216 = vmatpush1.msra.mxu0 %v157
    %217 = vmatprep.subr.mxu0 %v162
    %218 = vmatpush1.msra.mxu0 %v161
    %219 = vmatprep.subr.mxu0 0.0
    %220 = vmatpush1.msra.mxu0 0.0
    %221 = vmatprep.subr.mxu0 0.0
    %222 = vmatpush1.msra.mxu0 0.0
    %223 = vmatprep.subr.mxu0 0.0
    %224 = vmatpush1.msra.mxu0 0.0
    %225 = vmatprep.subr.mxu0 0.0
    %226 = vmatpush1.msra.mxu0 0.0
    %227 = vmatprep.subr.mxu0 0.0
    %228 = vmatpush1.msra.mxu0 0.0
    %229 = vmatprep.subr.mxu0 0.0
    %230 = vmatpush1.msra.mxu0 0.0
    %231 = vmatprep.subr.mxu0 0.0
    %232 = vmatpush1.msra.mxu0 0.0
    %233 = vmatprep.subr.mxu0 0.0
    %234 = vmatpush1.msra.mxu0 0.0
    %235 = vmatprep.subr.mxu0 0.0
    %236 = vmatpush1.msra.mxu0 0.0
    %237 = vmatprep.subr.mxu0 0.0
    %238 = vmatpush1.msra.mxu0 0.0
    %239 = vmatprep.subr.mxu0 0.0
    %240 = vmatpush1.msra.mxu0 0.0
    %241 = vmatprep.subr.mxu0 0.0
    %242 = vmatpush1.msra.mxu0 0.0
    %243 = vmatprep.subr.mxu0 0.0
    %244 = vmatpush1.msra.mxu0 0.0
    %245 = vmatprep.subr.mxu0 0.0
    %246 = vmatpush1.msra.mxu0 0.0
    %247 = vmatprep.subr.mxu0 0.0
    %248 = vmatpush1.msra.mxu0 0.0
    %249 = vmatprep.subr.mxu0 0.0
    %250 = vmatpush1.msra.mxu0 0.0
    %251 = vmatprep.mubr.f32.mxu0 0.0
    %252 = vmatmul.mubr.f32.gmra.mrb[0].mxu0 %v93
    %v253 = vpop.f32.mrb[0].mxu0
    %v254 = vadd.f32 %v170, %v253
    %v255 = vpop.f32.mrb[0].mxu0
    %v256 = vadd.f32 %v174, %v255
    %257 = vmatprep.mubr.f32.mxu0 0.0
    %258 = vmatmul.mubr.f32.gmra.mrb[0].mxu0 %v94
    %v259 = vpop.f32.mrb[0].mxu0
    %v260 = vadd.f32 %v170, %v259
    %v261 = vpop.f32.mrb[0].mxu0
    %v262 = vadd.f32 %v174, %v261
    %263 = vmatprep.mubr.f32.mxu0 0.0
    %264 = vmatmul.mubr.f32.gmra.mrb[0].mxu0 %v95
    %v265 = vpop.f32.mrb[0].mxu0
    %v266 = vadd.f32 %v170, %v265
    %v267 = vpop.f32.mrb[0].mxu0
    %v268 = vadd.f32 %v174, %v267
    %269 = vmatprep.mubr.f32.mxu0 0.0
    %270 = vmatmul.mubr.f32.gmra.mrb[0].mxu0 %v96
    %v271 = vpop.f32.mrb[0].mxu0
    %v272 = vadd.f32 %v170, %v271
    %v273 = vpop.f32.mrb[0].mxu0
    %v274 = vadd.f32 %v174, %v273
    %275 = vmatprep.mubr.f32.mxu0 0.0
    %276 = vmatmul.mubr.f32.gmra.mrb[0].mxu0 %v97
    %v277 = vpop.f32.mrb[0].mxu0
    %v278 = vadd.f32 %v170, %v277
    %v279 = vpop.f32.mrb[0].mxu0
    %v280 = vadd.f32 %v174, %v279
    %281 = vmatprep.mubr.f32.mxu0 0.0
    %282 = vmatmul.mubr.f32.gmra.mrb[0].mxu0 %v98
    %v283 = vpop.f32.mrb[0].mxu0
    %v284 = vadd.f32 %v170, %v283
    %v285 = vpop.f32.mrb[0].mxu0
    %v286 = vadd.f32 %v174, %v285
    %287 = vmatprep.mubr.f32.mxu0 0.0
    %288 = vmatmul.mubr.f32.gmra.mrb[0].mxu0 %v99
    %v289 = vpop.f32.mrb[0].mxu0
    %v290 = vadd.f32 %v170, %v289
    %v291 = vpop.f32.mrb[0].mxu0
    %v292 = vadd.f32 %v174, %v291
    %293 = vmatprep.mubr.f32.mxu0 0.0
    %294 = vmatmul.mubr.f32.gmra.mrb[0].mxu0 %v100
    %v295 = vpop.f32.mrb[0].mxu0
    %v296 = vadd.f32 %v170, %v295
    %v297 = vpop.f32.mrb[0].mxu0
    %v298 = vadd.f32 %v174, %v297
    %299 = vdwg.mxu0
    %300 = vmatprep.subr.mxu0 %v104
    %301 = vmatpush1.msra.mxu0 %v103
    %302 = vmatprep.subr.mxu0 %v108
    %303 = vmatpush1.msra.mxu0 %v107
    %304 = vmatprep.subr.mxu0 %v112
    %305 = vmatpush1.msra.mxu0 %v111
    %306 = vmatprep.subr.mxu0 %v116
    %307 = vmatpush1.msra.mxu0 %v115
    %308 = vmatprep.subr.mxu0 %v120
    %309 = vmatpush1.msra.mxu0 %v119
    %310 = vmatprep.subr.mxu0 %v124
    %311 = vmatpush1.msra.mxu0 %v123
    %312 = vmatprep.subr.mxu0 %v128
    %313 = vmatpush1.msra.mxu0 %v127
    %314 = vmatprep.subr.mxu0 %v132
    %315 = vmatpush1.msra.mxu0 %v131
    %316 = vmatprep.subr.mxu0 %v136
    %317 = vmatpush1.msra.mxu0 %v135
    %318 = vmatprep.subr.mxu0 %v140
    %319 = vmatpush1.msra.mxu0 %v139
    %320 = vmatprep.subr.mxu0 %v144
    %321 = vmatpush1.msra.mxu0 %v143
    %322 = vmatprep.subr.mxu0 %v148
    %323 = vmatpush1.msra.mxu0 %v147
    %324 = vmatprep.subr.mxu0 %v152
    %325 = vmatpush1.msra.mxu0 %v151
    %326 = vmatprep.subr.mxu0 %v156
    %327 = vmatpush1.msra.mxu0 %v155
    %328 = vmatprep.subr.mxu0 %v160
    %329 = vmatpush1.msra.mxu0 %v159
    %330 = vmatprep.subr.mxu0 %v164
    %331 = vmatpush1.msra.mxu0 %v163
    %332 = vmatprep.subr.mxu0 0.0
    %333 = vmatpush1.msra.mxu0 0.0
    %334 = vmatprep.subr.mxu0 0.0
    %335 = vmatpush1.msra.mxu0 0.0
    %336 = vmatprep.subr.mxu0 0.0
    %337 = vmatpush1.msra.mxu0 0.0
    %338 = vmatprep.subr.mxu0 0.0
    %339 = vmatpush1.msra.mxu0 0.0
    %340 = vmatprep.subr.mxu0 0.0
    %341 = vmatpush1.msra.mxu0 0.0
    %342 = vmatprep.subr.mxu0 0.0
    %343 = vmatpush1.msra.mxu0 0.0
    %344 = vmatprep.subr.mxu0 0.0
    %345 = vmatpush1.msra.mxu0 0.0
    %346 = vmatprep.subr.mxu0 0.0
    %347 = vmatpush1.msra.mxu0 0.0
    %348 = vmatprep.subr.mxu0 0.0
    %349 = vmatpush1.msra.mxu0 0.0
    %350 = vmatprep.subr.mxu0 0.0
    %351 = vmatpush1.msra.mxu0 0.0
    %352 = vmatprep.subr.mxu0 0.0
    %353 = vmatpush1.msra.mxu0 0.0
    %354 = vmatprep.subr.mxu0 0.0
    %355 = vmatpush1.msra.mxu0 0.0
    %356 = vmatprep.subr.mxu0 0.0
    %357 = vmatpush1.msra.mxu0 0.0
    %358 = vmatprep.subr.mxu0 0.0
    %359 = vmatpush1.msra.mxu0 0.0
    %360 = vmatprep.subr.mxu0 0.0
    %361 = vmatpush1.msra.mxu0 0.0
    %362 = vmatprep.subr.mxu0 0.0
    %363 = vmatpush1.msra.mxu0 0.0
    %364 = vmatprep.mubr.f32.mxu0 0.0
    %365 = vmatmul.mubr.f32.gmra.mrb[0].mxu0 %v93
    %v366 = vpop.f32.mrb[0].mxu0
    %v367 = vadd.f32 %v178, %v366
    %v368 = vpop.f32.mrb[0].mxu0
    %v369 = vadd.f32 %v182, %v368
    %370 = vmatprep.mubr.f32.mxu0 0.0
    %371 = vmatmul.mubr.f32.gmra.mrb[0].mxu0 %v94
    %v372 = vpop.f32.mrb[0].mxu0
    %v373 = vadd.f32 %v178, %v372
    %v374 = vpop.f32.mrb[0].mxu0
    %v375 = vadd.f32 %v182, %v374
    %376 = vmatprep.mubr.f32.mxu0 0.0
    %377 = vmatmul.mubr.f32.gmra.mrb[0].mxu0 %v95
    %v378 = vpop.f32.mrb[0].mxu0
    %v379 = vadd.f32 %v178, %v378
    %v380 = vpop.f32.mrb[0].mxu0
    %v381 = vadd.f32 %v182, %v380
    %382 = vmatprep.mubr.f32.mxu0 0.0
    %383 = vmatmul.mubr.f32.gmra.mrb[0].mxu0 %v96
    %v384 = vpop.f32.mrb[0].mxu0
    %v385 = vadd.f32 %v178, %v384
    %v386 = vpop.f32.mrb[0].mxu0
    %v387 = vadd.f32 %v182, %v386
    %388 = vmatprep.mubr.f32.mxu0 0.0
    %389 = vmatmul.mubr.f32.gmra.mrb[0].mxu0 %v97
    %v390 = vpop.f32.mrb[0].mxu0
    %v391 = vadd.f32 %v178, %v390
    %v392 = vpop.f32.mrb[0].mxu0
    %v393 = vadd.f32 %v182, %v392
    %394 = vmatprep.mubr.f32.mxu0 0.0
    %395 = vmatmul.mubr.f32.gmra.mrb[0].mxu0 %v98
    %v396 = vpop.f32.mrb[0].mxu0
    %v397 = vadd.f32 %v178, %v396
    %v398 = vpop.f32.mrb[0].mxu0
    %v399 = vadd.f32 %v182, %v398
    %400 = vmatprep.mubr.f32.mxu0 0.0
    %401 = vmatmul.mubr.f32.gmra.mrb[0].mxu0 %v99
    %v402 = vpop.f32.mrb[0].mxu0
    %v403 = vadd.f32 %v178, %v402
    %v404 = vpop.f32.mrb[0].mxu0
    %v405 = vadd.f32 %v182, %v404
    %406 = vmatprep.mubr.f32.mxu0 0.0
    %407 = vmatmul.mubr.f32.gmra.mrb[0].mxu0 %v100
    %v408 = vpop.f32.mrb[0].mxu0
    %v409 = vadd.f32 %v178, %v408
    %v410 = vpop.f32.mrb[0].mxu0
    %v411 = vadd.f32 %v182, %v410
    %412 = vdwg.mxu0
    %413 = vst [vmem:[#allocation4] sm:$0xff] %v254
    %414 = vst [vmem:[#allocation4 + $0x8] sm:$0xff] %v256
    %415 = vst [vmem:[#allocation4 + $0x10] sm:$0xff] %v367
    %416 = vst [vmem:[#allocation4 + $0x18] sm:$0xff] %v369
    %417 = vst [vmem:[#allocation4 + $0x20] sm:$0xff] %v260
    %418 = vst [vmem:[#allocation4 + $0x28] sm:$0xff] %v262
    %419 = vst [vmem:[#allocation4 + $0x30] sm:$0xff] %v373
    %420 = vst [vmem:[#allocation4 + $0x38] sm:$0xff] %v375
    %421 = vst [vmem:[#allocation4 + $0x40] sm:$0xff] %v266
    %422 = vst [vmem:[#allocation4 + $0x48] sm:$0xff] %v268
    %423 = vst [vmem:[#allocation4 + $0x50] sm:$0xff] %v379
    %424 = vst [vmem:[#allocation4 + $0x58] sm:$0xff] %v381
    %425 = vst [vmem:[#allocation4 + $0x60] sm:$0xff] %v272
    %426 = vst [vmem:[#allocation4 + $0x68] sm:$0xff] %v274
    %427 = vst [vmem:[#allocation4 + $0x70] sm:$0xff] %v385
    %428 = vst [vmem:[#allocation4 + $0x78] sm:$0xff] %v387
    %429 = vst [vmem:[#allocation4 + $0x80] sm:$0xff] %v278
    %430 = vst [vmem:[#allocation4 + $0x88] sm:$0xff] %v280
    %431 = vst [vmem:[#allocation4 + $0x90] sm:$0xff] %v391
    %432 = vst [vmem:[#allocation4 + $0x98] sm:$0xff] %v393
    %433 = vst [vmem:[#allocation4 + $0xa0] sm:$0xff] %v284
    %434 = vst [vmem:[#allocation4 + $0xa8] sm:$0xff] %v286
    %435 = vst [vmem:[#allocation4 + $0xb0] sm:$0xff] %v397
    %436 = vst [vmem:[#allocation4 + $0xb8] sm:$0xff] %v399
    %437 = vst [vmem:[#allocation4 + $0xc0] sm:$0xff] %v290
    %438 = vst [vmem:[#allocation4 + $0xc8] sm:$0xff] %v292
    %439 = vst [vmem:[#allocation4 + $0xd0] sm:$0xff] %v403
    %440 = vst [vmem:[#allocation4 + $0xd8] sm:$0xff] %v405
    %441 = vst [vmem:[#allocation4 + $0xe0] sm:$0xff] %v296
    %442 = vst [vmem:[#allocation4 + $0xe8] sm:$0xff] %v298
    %443 = vst [vmem:[#allocation4 + $0xf0] sm:$0xff] %v409
    %444 = vst [vmem:[#allocation4 + $0xf8] sm:$0xff] %v411
    %v445 = vld [vmem:[#allocation2] sm:$0xff]
    %v446 = vld [vmem:[#allocation3] sm:$0xff]
    %v447 = vld [vmem:[#allocation11] sm:$0xff]
    %v448 = vld [vmem:[#allocation11 + $0x8] sm:$0xff]
    %v449 = vld [vmem:[#allocation11 + $0x10] sm:$0xff]
    %v450 = vld [vmem:[#allocation11 + $0x18] sm:$0xff]
    %v451 = vld [vmem:[#allocation11 + $0x20] sm:$0xff]
    %v452 = vld [vmem:[#allocation11 + $0x28] sm:$0xff]
    %v453 = vld [vmem:[#allocation11 + $0x30] sm:$0xff]
    %v454 = vld [vmem:[#allocation11 + $0x38] sm:$0xff]
    %v455 = vld [vmem:[#allocation11 + $0x40] sm:$0xff]
    %v456 = vld [vmem:[#allocation11 + $0x48] sm:$0xff]
    %v457 = vld [vmem:[#allocation11 + $0x50] sm:$0xff]
    %v458 = vld [vmem:[#allocation11 + $0x58] sm:$0xff]
    %v459 = vld [vmem:[#allocation11 + $0x60] sm:$0xff]
    %v460 = vld [vmem:[#allocation11 + $0x68] sm:$0xff]
    %v461 = vld [vmem:[#allocation11 + $0x70] sm:$0xff]
    %v462 = vld [vmem:[#allocation11 + $0x78] sm:$0xff]
    %v463 = vld [vmem:[#allocation11 + $0x80] sm:$0xff]
    %v464 = vld [vmem:[#allocation11 + $0x88] sm:$0xff]
    %v465 = vld [vmem:[#allocation11 + $0x90] sm:$0xff]
    %v466 = vld [vmem:[#allocation11 + $0x98] sm:$0xff]
    %v467 = vld [vmem:[#allocation11 + $0xa0] sm:$0xff]
    %v468 = vld [vmem:[#allocation11 + $0xa8] sm:$0xff]
    %v469 = vld [vmem:[#allocation11 + $0xb0] sm:$0xff]
    %v470 = vld [vmem:[#allocation11 + $0xb8] sm:$0xff]
    %v471 = vld [vmem:[#allocation11 + $0xc0] sm:$0xff]
    %v472 = vld [vmem:[#allocation11 + $0xc8] sm:$0xff]
    %v473 = vld [vmem:[#allocation11 + $0xd0] sm:$0xff]
    %v474 = vld [vmem:[#allocation11 + $0xd8] sm:$0xff]
    %v475 = vld [vmem:[#allocation11 + $0xe0] sm:$0xff]
    %v476 = vld [vmem:[#allocation11 + $0xe8] sm:$0xff]
    %v477 = vld [vmem:[#allocation11 + $0xf0] sm:$0xff]
    %v478 = vld [vmem:[#allocation11 + $0xf8] sm:$0xff]
    %v479 = vld [vmem:[#allocation11 + $0x100] sm:$0xff]
    %v480 = vld [vmem:[#allocation11 + $0x108] sm:$0xff]
    %v481 = vld [vmem:[#allocation11 + $0x110] sm:$0xff]
    %v482 = vld [vmem:[#allocation11 + $0x118] sm:$0xff]
    %v483 = vld [vmem:[#allocation11 + $0x120] sm:$0xff]
    %v484 = vld [vmem:[#allocation11 + $0x128] sm:$0xff]
    %v485 = vld [vmem:[#allocation11 + $0x130] sm:$0xff]
    %v486 = vld [vmem:[#allocation11 + $0x138] sm:$0xff]
    %v487 = vld [vmem:[#allocation11 + $0x140] sm:$0xff]
    %v488 = vld [vmem:[#allocation11 + $0x148] sm:$0xff]
    %v489 = vld [vmem:[#allocation11 + $0x150] sm:$0xff]
    %v490 = vld [vmem:[#allocation11 + $0x158] sm:$0xff]
    %v491 = vld [vmem:[#allocation11 + $0x160] sm:$0xff]
    %v492 = vld [vmem:[#allocation11 + $0x168] sm:$0xff]
    %v493 = vld [vmem:[#allocation11 + $0x170] sm:$0xff]
    %v494 = vld [vmem:[#allocation11 + $0x178] sm:$0xff]
    %v495 = vld [vmem:[#allocation11 + $0x180] sm:$0xff]
    %v496 = vld [vmem:[#allocation11 + $0x188] sm:$0xff]
    %v497 = vld [vmem:[#allocation11 + $0x190] sm:$0xff]
    %v498 = vld [vmem:[#allocation11 + $0x198] sm:$0xff]
    %v499 = vld [vmem:[#allocation11 + $0x1a0] sm:$0xff]
    %v500 = vld [vmem:[#allocation11 + $0x1a8] sm:$0xff]
    %v501 = vld [vmem:[#allocation11 + $0x1b0] sm:$0xff]
    %v502 = vld [vmem:[#allocation11 + $0x1b8] sm:$0xff]
    %v503 = vld [vmem:[#allocation11 + $0x1c0] sm:$0xff]
    %v504 = vld [vmem:[#allocation11 + $0x1c8] sm:$0xff]
    %v505 = vld [vmem:[#allocation11 + $0x1d0] sm:$0xff]
    %v506 = vld [vmem:[#allocation11 + $0x1d8] sm:$0xff]
    %v507 = vld [vmem:[#allocation11 + $0x1e0] sm:$0xff]
    %v508 = vld [vmem:[#allocation11 + $0x1e8] sm:$0xff]
    %v509 = vld [vmem:[#allocation11 + $0x1f0] sm:$0xff]
    %v510 = vld [vmem:[#allocation11 + $0x1f8] sm:$0xff]
    %s511 = smul.u32 0, 4
    %s512 = smul.addr %s511, 8
    %s513 = scalar_lea.vmem [#allocation4], %s512
    %v514 = vld [vmem:[%s513] sm:$0xff]
    %v515 = vld [vmem:[%s513 + $0x8] sm:$0xff]
    %v516 = vld [vmem:[%s513 + $0x10] sm:$0xff]
    %v517 = vld [vmem:[%s513 + $0x18] sm:$0xff]
    %518 = vmatprep.subr.mxu0 %v448
    %519 = vmatpush1.msra.mxu0 %v447
    %520 = vmatprep.subr.mxu0 %v452
    %521 = vmatpush1.msra.mxu0 %v451
    %522 = vmatprep.subr.mxu0 %v456
    %523 = vmatpush1.msra.mxu0 %v455
    %524 = vmatprep.subr.mxu0 %v460
    %525 = vmatpush1.msra.mxu0 %v459
    %526 = vmatprep.subr.mxu0 %v464
    %527 = vmatpush1.msra.mxu0 %v463
    %528 = vmatprep.subr.mxu0 %v468
    %529 = vmatpush1.msra.mxu0 %v467
    %530 = vmatprep.subr.mxu0 %v472
    %531 = vmatpush1.msra.mxu0 %v471
    %532 = vmatprep.subr.mxu0 %v476
    %533 = vmatpush1.msra.mxu0 %v475
    %534 = vmatprep.subr.mxu0 %v480
    %535 = vmatpush1.msra.mxu0 %v479
    %536 = vmatprep.subr.mxu0 %v484
    %537 = vmatpush1.msra.mxu0 %v483
    %538 = vmatprep.subr.mxu0 %v488
    %539 = vmatpush1.msra.mxu0 %v487
    %540 = vmatprep.subr.mxu0 %v492
    %541 = vmatpush1.msra.mxu0 %v491
    %542 = vmatprep.subr.mxu0 %v496
    %543 = vmatpush1.msra.mxu0 %v495
    %544 = vmatprep.subr.mxu0 %v500
    %545 = vmatpush1.msra.mxu0 %v499
    %546 = vmatprep.subr.mxu0 %v504
    %547 = vmatpush1.msra.mxu0 %v503
    %548 = vmatprep.subr.mxu0 %v508
    %549 = vmatpush1.msra.mxu0 %v507
    %550 = vmatprep.subr.mxu0 0.0
    %551 = vmatpush1.msra.mxu0 0.0
    %552 = vmatprep.subr.mxu0 0.0
    %553 = vmatpush1.msra.mxu0 0.0
    %554 = vmatprep.subr.mxu0 0.0
    %555 = vmatpush1.msra.mxu0 0.0
    %556 = vmatprep.subr.mxu0 0.0
    %557 = vmatpush1.msra.mxu0 0.0
    %558 = vmatprep.subr.mxu0 0.0
    %559 = vmatpush1.msra.mxu0 0.0
    %560 = vmatprep.subr.mxu0 0.0
    %561 = vmatpush1.msra.mxu0 0.0
    %562 = vmatprep.subr.mxu0 0.0
    %563 = vmatpush1.msra.mxu0 0.0
    %564 = vmatprep.subr.mxu0 0.0
    %565 = vmatpush1.msra.mxu0 0.0
    %566 = vmatprep.subr.mxu0 0.0
    %567 = vmatpush1.msra.mxu0 0.0
    %568 = vmatprep.subr.mxu0 0.0
    %569 = vmatpush1.msra.mxu0 0.0
    %570 = vmatprep.subr.mxu0 0.0
    %571 = vmatpush1.msra.mxu0 0.0
    %572 = vmatprep.subr.mxu0 0.0
    %573 = vmatpush1.msra.mxu0 0.0
    %574 = vmatprep.subr.mxu0 0.0
    %575 = vmatpush1.msra.mxu0 0.0
    %576 = vmatprep.subr.mxu0 0.0
    %577 = vmatpush1.msra.mxu0 0.0
    %578 = vmatprep.subr.mxu0 0.0
    %579 = vmatpush1.msra.mxu0 0.0
    %580 = vmatprep.subr.mxu0 0.0
    %581 = vmatpush1.msra.mxu0 0.0
    %582 = vmatprep.mubr.f32.mxu0 0.0
    %583 = vmatmul.mubr.f32.gmra.mrb[0].mxu0 %v445
    %v584 = vpop.f32.mrb[0].mxu0
    %v585 = vadd.f32 %v514, %v584
    %v586 = vpop.f32.mrb[0].mxu0
    %v587 = vadd.f32 %v515, %v586
    %588 = vdwg.mxu0
    %589 = vmatprep.subr.mxu0 %v450
    %590 = vmatpush1.msra.mxu0 %v449
    %591 = vmatprep.subr.mxu0 %v454
    %592 = vmatpush1.msra.mxu0 %v453
    %593 = vmatprep.subr.mxu0 %v458
    %594 = vmatpush1.msra.mxu0 %v457
    %595 = vmatprep.subr.mxu0 %v462
    %596 = vmatpush1.msra.mxu0 %v461
    %597 = vmatprep.subr.mxu0 %v466
    %598 = vmatpush1.msra.mxu0 %v465
    %599 = vmatprep.subr.mxu0 %v470
    %600 = vmatpush1.msra.mxu0 %v469
    %601 = vmatprep.subr.mxu0 %v474
    %602 = vmatpush1.msra.mxu0 %v473
    %603 = vmatprep.subr.mxu0 %v478
    %604 = vmatpush1.msra.mxu0 %v477
    %605 = vmatprep.subr.mxu0 %v482
    %606 = vmatpush1.msra.mxu0 %v481
    %607 = vmatprep.subr.mxu0 %v486
    %608 = vmatpush1.msra.mxu0 %v485
    %609 = vmatprep.subr.mxu0 %v490
    %610 = vmatpush1.msra.mxu0 %v489
    %611 = vmatprep.subr.mxu0 %v494
    %612 = vmatpush1.msra.mxu0 %v493
    %613 = vmatprep.subr.mxu0 %v498
    %614 = vmatpush1.msra.mxu0 %v497
    %615 = vmatprep.subr.mxu0 %v502
    %616 = vmatpush1.msra.mxu0 %v501
    %617 = vmatprep.subr.mxu0 %v506
    %618 = vmatpush1.msra.mxu0 %v505
    %619 = vmatprep.subr.mxu0 %v510
    %620 = vmatpush1.msra.mxu0 %v509
    %621 = vmatprep.subr.mxu0 0.0
    %622 = vmatpush1.msra.mxu0 0.0
    %623 = vmatprep.subr.mxu0 0.0
    %624 = vmatpush1.msra.mxu0 0.0
    %625 = vmatprep.subr.mxu0 0.0
    %626 = vmatpush1.msra.mxu0 0.0
    %627 = vmatprep.subr.mxu0 0.0
    %628 = vmatpush1.msra.mxu0 0.0
    %629 = vmatprep.subr.mxu0 0.0
    %630 = vmatpush1.msra.mxu0 0.0
    %631 = vmatprep.subr.mxu0 0.0
    %632 = vmatpush1.msra.mxu0 0.0
    %633 = vmatprep.subr.mxu0 0.0
    %634 = vmatpush1.msra.mxu0 0.0
    %635 = vmatprep.subr.mxu0 0.0
    %636 = vmatpush1.msra.mxu0 0.0
    %637 = vmatprep.subr.mxu0 0.0
    %638 = vmatpush1.msra.mxu0 0.0
    %639 = vmatprep.subr.mxu0 0.0
    %640 = vmatpush1.msra.mxu0 0.0
    %641 = vmatprep.subr.mxu0 0.0
    %642 = vmatpush1.msra.mxu0 0.0
    %643 = vmatprep.subr.mxu0 0.0
    %644 = vmatpush1.msra.mxu0 0.0
    %645 = vmatprep.subr.mxu0 0.0
    %646 = vmatpush1.msra.mxu0 0.0
    %647 = vmatprep.subr.mxu0 0.0
    %648 = vmatpush1.msra.mxu0 0.0
    %649 = vmatprep.subr.mxu0 0.0
    %650 = vmatpush1.msra.mxu0 0.0
    %651 = vmatprep.subr.mxu0 0.0
    %652 = vmatpush1.msra.mxu0 0.0
    %653 = vmatprep.mubr.f32.mxu0 0.0
    %654 = vmatmul.mubr.f32.gmra.mrb[0].mxu0 %v445
    %v655 = vpop.f32.mrb[0].mxu0
    %v656 = vadd.f32 %v516, %v655
    %v657 = vpop.f32.mrb[0].mxu0
    %v658 = vadd.f32 %v517, %v657
    %659 = vdwg.mxu0
    %v660 = vxor.u32 %v585, 2147483648
    %v661 = vmul.f32 %v660, 1.442695
    %v662 = vpow.pop %v661
    %v663 = vadd.f32 %v662, 1.0
    %v664 = vrcp.pop %v663
    %v665 = vmul.f32 1.0, %v664
    %v666 = vxor.u32 %v587, 2147483648
    %v667 = vmul.f32 %v666, 1.442695
    %v668 = vpow.pop %v667
    %v669 = vadd.f32 %v668, 1.0
    %v670 = vrcp.pop %v669
    %v671 = vmul.f32 1.0, %v670
    %v672 = vtanh.pop %v656
    %v673 = vxor.u32 %v658, 2147483648
    %v674 = vmul.f32 %v673, 1.442695
    %v675 = vpow.pop %v674
    %v676 = vadd.f32 %v675, 1.0
    %v677 = vrcp.pop %v676
    %v678 = vmul.f32 1.0, %v677
    %v679 = vmul.f32 %v671, %v446
    %v680 = vmul.f32 %v665, %v672
    %v681 = vadd.f32 %v679, %v680
    %v682 = vtanh.pop %v681
    %v683 = vmul.f32 %v678, %v682
    %684 = vst [vmem:[#allocation5] sm:$0xff] %v683
    %v685 = vld [vmem:[#allocation11] sm:$0xff]
    %v686 = vld [vmem:[#allocation11 + $0x8] sm:$0xff]
    %v687 = vld [vmem:[#allocation11 + $0x10] sm:$0xff]
    %v688 = vld [vmem:[#allocation11 + $0x18] sm:$0xff]
    %v689 = vld [vmem:[#allocation11 + $0x20] sm:$0xff]
    %v690 = vld [vmem:[#allocation11 + $0x28] sm:$0xff]
    %v691 = vld [vmem:[#allocation11 + $0x30] sm:$0xff]
    %v692 = vld [vmem:[#allocation11 + $0x38] sm:$0xff]
    %v693 = vld [vmem:[#allocation11 + $0x40] sm:$0xff]
    %v694 = vld [vmem:[#allocation11 + $0x48] sm:$0xff]
    %v695 = vld [vmem:[#allocation11 + $0x50] sm:$0xff]
    %v696 = vld [vmem:[#allocation11 + $0x58] sm:$0xff]
    %v697 = vld [vmem:[#allocation11 + $0x60] sm:$0xff]
    %v698 = vld [vmem:[#allocation11 + $0x68] sm:$0xff]
    %v699 = vld [vmem:[#allocation11 + $0x70] sm:$0xff]
    %v700 = vld [vmem:[#allocation11 + $0x78] sm:$0xff]
    %v701 = vld [vmem:[#allocation11 + $0x80] sm:$0xff]
    %v702 = vld [vmem:[#allocation11 + $0x88] sm:$0xff]
    %v703 = vld [vmem:[#allocation11 + $0x90] sm:$0xff]
    %v704 = vld [vmem:[#allocation11 + $0x98] sm:$0xff]
    %v705 = vld [vmem:[#allocation11 + $0xa0] sm:$0xff]
    %v706 = vld [vmem:[#allocation11 + $0xa8] sm:$0xff]
    %v707 = vld [vmem:[#allocation11 + $0xb0] sm:$0xff]
    %v708 = vld [vmem:[#allocation11 + $0xb8] sm:$0xff]
    %v709 = vld [vmem:[#allocation11 + $0xc0] sm:$0xff]
    %v710 = vld [vmem:[#allocation11 + $0xc8] sm:$0xff]
    %v711 = vld [vmem:[#allocation11 + $0xd0] sm:$0xff]
    %v712 = vld [vmem:[#allocation11 + $0xd8] sm:$0xff]
    %v713 = vld [vmem:[#allocation11 + $0xe0] sm:$0xff]
    %v714 = vld [vmem:[#allocation11 + $0xe8] sm:$0xff]
    %v715 = vld [vmem:[#allocation11 + $0xf0] sm:$0xff]
    %v716 = vld [vmem:[#allocation11 + $0xf8] sm:$0xff]
    %v717 = vld [vmem:[#allocation11 + $0x100] sm:$0xff]
    %v718 = vld [vmem:[#allocation11 + $0x108] sm:$0xff]
    %v719 = vld [vmem:[#allocation11 + $0x110] sm:$0xff]
    %v720 = vld [vmem:[#allocation11 + $0x118] sm:$0xff]
    %v721 = vld [vmem:[#allocation11 + $0x120] sm:$0xff]
    %v722 = vld [vmem:[#allocation11 + $0x128] sm:$0xff]
    %v723 = vld [vmem:[#allocation11 + $0x130] sm:$0xff]
    %v724 = vld [vmem:[#allocation11 + $0x138] sm:$0xff]
    %v725 = vld [vmem:[#allocation11 + $0x140] sm:$0xff]
    %v726 = vld [vmem:[#allocation11 + $0x148] sm:$0xff]
    %v727 = vld [vmem:[#allocation11 + $0x150] sm:$0xff]
    %v728 = vld [vmem:[#allocation11 + $0x158] sm:$0xff]
    %v729 = vld [vmem:[#allocation11 + $0x160] sm:$0xff]
    %v730 = vld [vmem:[#allocation11 + $0x168] sm:$0xff]
    %v731 = vld [vmem:[#allocation11 + $0x170] sm:$0xff]
    %v732 = vld [vmem:[#allocation11 + $0x178] sm:$0xff]
    %v733 = vld [vmem:[#allocation11 + $0x180] sm:$0xff]
    %v734 = vld [vmem:[#allocation11 + $0x188] sm:$0xff]
    %v735 = vld [vmem:[#allocation11 + $0x190] sm:$0xff]
    %v736 = vld [vmem:[#allocation11 + $0x198] sm:$0xff]
    %v737 = vld [vmem:[#allocation11 + $0x1a0] sm:$0xff]
    %v738 = vld [vmem:[#allocation11 + $0x1a8] sm:$0xff]
    %v739 = vld [vmem:[#allocation11 + $0x1b0] sm:$0xff]
    %v740 = vld [vmem:[#allocation11 + $0x1b8] sm:$0xff]
    %v741 = vld [vmem:[#allocation11 + $0x1c0] sm:$0xff]
    %v742 = vld [vmem:[#allocation11 + $0x1c8] sm:$0xff]
    %v743 = vld [vmem:[#allocation11 + $0x1d0] sm:$0xff]
    %v744 = vld [vmem:[#allocation11 + $0x1d8] sm:$0xff]
    %v745 = vld [vmem:[#allocation11 + $0x1e0] sm:$0xff]
    %v746 = vld [vmem:[#allocation11 + $0x1e8] sm:$0xff]
    %v747 = vld [vmem:[#allocation11 + $0x1f0] sm:$0xff]
    %v748 = vld [vmem:[#allocation11 + $0x1f8] sm:$0xff]
    %s749 = smul.u32 1, 4
    %s750 = smul.addr %s749, 8
    %s751 = scalar_lea.vmem [#allocation4], %s750
    %v752 = vld [vmem:[%s751] sm:$0xff]
    %v753 = vld [vmem:[%s751 + $0x8] sm:$0xff]
    %v754 = vld [vmem:[%s751 + $0x10] sm:$0xff]
    %v755 = vld [vmem:[%s751 + $0x18] sm:$0xff]
    %756 = vmatprep.subr.mxu0 %v686
    %757 = vmatpush1.msra.mxu0 %v685
    %758 = vmatprep.subr.mxu0 %v690
    %759 = vmatpush1.msra.mxu0 %v689
    %760 = vmatprep.subr.mxu0 %v694
    %761 = vmatpush1.msra.mxu0 %v693
    %762 = vmatprep.subr.mxu0 %v698
    %763 = vmatpush1.msra.mxu0 %v697
    %764 = vmatprep.subr.mxu0 %v702
    %765 = vmatpush1.msra.mxu0 %v701
    %766 = vmatprep.subr.mxu0 %v706
    %767 = vmatpush1.msra.mxu0 %v705
    %768 = vmatprep.subr.mxu0 %v710
    %769 = vmatpush1.msra.mxu0 %v709
    %770 = vmatprep.subr.mxu0 %v714
    %771 = vmatpush1.msra.mxu0 %v713
    %772 = vmatprep.subr.mxu0 %v718
    %773 = vmatpush1.msra.mxu0 %v717
    %774 = vmatprep.subr.mxu0 %v722
    %775 = vmatpush1.msra.mxu0 %v721
    %776 = vmatprep.subr.mxu0 %v726
    %777 = vmatpush1.msra.mxu0 %v725
    %778 = vmatprep.subr.mxu0 %v730
    %779 = vmatpush1.msra.mxu0 %v729
    %780 = vmatprep.subr.mxu0 %v734
    %781 = vmatpush1.msra.mxu0 %v733
    %782 = vmatprep.subr.mxu0 %v738
    %783 = vmatpush1.msra.mxu0 %v737
    %784 = vmatprep.subr.mxu0 %v742
    %785 = vmatpush1.msra.mxu0 %v741
    %786 = vmatprep.subr.mxu0 %v746
    %787 = vmatpush1.msra.mxu0 %v745
    %788 = vmatprep.subr.mxu0 0.0
    %789 = vmatpush1.msra.mxu0 0.0
    %790 = vmatprep.subr.mxu0 0.0
    %791 = vmatpush1.msra.mxu0 0.0
    %792 = vmatprep.subr.mxu0 0.0
    %793 = vmatpush1.msra.mxu0 0.0
    %794 = vmatprep.subr.mxu0 0.0
    %795 = vmatpush1.msra.mxu0 0.0
    %796 = vmatprep.subr.mxu0 0.0
    %797 = vmatpush1.msra.mxu0 0.0
    %798 = vmatprep.subr.mxu0 0.0
    %799 = vmatpush1.msra.mxu0 0.0
    %800 = vmatprep.subr.mxu0 0.0
    %801 = vmatpush1.msra.mxu0 0.0
    %802 = vmatprep.subr.mxu0 0.0
    %803 = vmatpush1.msra.mxu0 0.0
    %804 = vmatprep.subr.mxu0 0.0
    %805 = vmatpush1.msra.mxu0 0.0
    %806 = vmatprep.subr.mxu0 0.0
    %807 = vmatpush1.msra.mxu0 0.0
    %808 = vmatprep.subr.mxu0 0.0
    %809 = vmatpush1.msra.mxu0 0.0
    %810 = vmatprep.subr.mxu0 0.0
    %811 = vmatpush1.msra.mxu0 0.0
    %812 = vmatprep.subr.mxu0 0.0
    %813 = vmatpush1.msra.mxu0 0.0
    %814 = vmatprep.subr.mxu0 0.0
    %815 = vmatpush1.msra.mxu0 0.0
    %816 = vmatprep.subr.mxu0 0.0
    %817 = vmatpush1.msra.mxu0 0.0
    %818 = vmatprep.subr.mxu0 0.0
    %819 = vmatpush1.msra.mxu0 0.0
    %820 = vmatprep.mubr.f32.mxu0 0.0
    %821 = vmatmul.mubr.f32.gmra.mrb[0].mxu0 %v683
    %v822 = vpop.f32.mrb[0].mxu0
    %v823 = vadd.f32 %v752, %v822
    %v824 = vpop.f32.mrb[0].mxu0
    %v825 = vadd.f32 %v753, %v824
    %826 = vdwg.mxu0
    %827 = vmatprep.subr.mxu0 %v688
    %828 = vmatpush1.msra.mxu0 %v687
    %829 = vmatprep.subr.mxu0 %v692
    %830 = vmatpush1.msra.mxu0 %v691
    %831 = vmatprep.subr.mxu0 %v696
    %832 = vmatpush1.msra.mxu0 %v695
    %833 = vmatprep.subr.mxu0 %v700
    %834 = vmatpush1.msra.mxu0 %v699
    %835 = vmatprep.subr.mxu0 %v704
    %836 = vmatpush1.msra.mxu0 %v703
    %837 = vmatprep.subr.mxu0 %v708
    %838 = vmatpush1.msra.mxu0 %v707
    %839 = vmatprep.subr.mxu0 %v712
    %840 = vmatpush1.msra.mxu0 %v711
    %841 = vmatprep.subr.mxu0 %v716
    %842 = vmatpush1.msra.mxu0 %v715
    %843 = vmatprep.subr.mxu0 %v720
    %844 = vmatpush1.msra.mxu0 %v719
    %845 = vmatprep.subr.mxu0 %v724
    %846 = vmatpush1.msra.mxu0 %v723
    %847 = vmatprep.subr.mxu0 %v728
    %848 = vmatpush1.msra.mxu0 %v727
    %849 = vmatprep.subr.mxu0 %v732
    %850 = vmatpush1.msra.mxu0 %v731
    %851 = vmatprep.subr.mxu0 %v736
    %852 = vmatpush1.msra.mxu0 %v735
    %853 = vmatprep.subr.mxu0 %v740
    %854 = vmatpush1.msra.mxu0 %v739
    %855 = vmatprep.subr.mxu0 %v744
    %856 = vmatpush1.msra.mxu0 %v743
    %857 = vmatprep.subr.mxu0 %v748
    %858 = vmatpush1.msra.mxu0 %v747
    %859 = vmatprep.subr.mxu0 0.0
    %860 = vmatpush1.msra.mxu0 0.0
    %861 = vmatprep.subr.mxu0 0.0
    %862 = vmatpush1.msra.mxu0 0.0
    %863 = vmatprep.subr.mxu0 0.0
    %864 = vmatpush1.msra.mxu0 0.0
    %865 = vmatprep.subr.mxu0 0.0
    %866 = vmatpush1.msra.mxu0 0.0
    %867 = vmatprep.subr.mxu0 0.0
    %868 = vmatpush1.msra.mxu0 0.0
    %869 = vmatprep.subr.mxu0 0.0
    %870 = vmatpush1.msra.mxu0 0.0
    %871 = vmatprep.subr.mxu0 0.0
    %872 = vmatpush1.msra.mxu0 0.0
    %873 = vmatprep.subr.mxu0 0.0
    %874 = vmatpush1.msra.mxu0 0.0
    %875 = vmatprep.subr.mxu0 0.0
    %876 = vmatpush1.msra.mxu0 0.0
    %877 = vmatprep.subr.mxu0 0.0
    %878 = vmatpush1.msra.mxu0 0.0
    %879 = vmatprep.subr.mxu0 0.0
    %880 = vmatpush1.msra.mxu0 0.0
    %881 = vmatprep.subr.mxu0 0.0
    %882 = vmatpush1.msra.mxu0 0.0
    %883 = vmatprep.subr.mxu0 0.0
    %884 = vmatpush1.msra.mxu0 0.0
    %885 = vmatprep.subr.mxu0 0.0
    %886 = vmatpush1.msra.mxu0 0.0
    %887 = vmatprep.subr.mxu0 0.0
    %888 = vmatpush1.msra.mxu0 0.0
    %889 = vmatprep.subr.mxu0 0.0
    %890 = vmatpush1.msra.mxu0 0.0
    %891 = vmatprep.mubr.f32.mxu0 0.0
    %892 = vmatmul.mubr.f32.gmra.mrb[0].mxu0 %v683
    %v893 = vpop.f32.mrb[0].mxu0
    %v894 = vadd.f32 %v754, %v893
    %v895 = vpop.f32.mrb[0].mxu0
    %v896 = vadd.f32 %v755, %v895
    %897 = vdwg.mxu0
    %v898 = vxor.u32 %v823, 2147483648
    %v899 = vmul.f32 %v898, 1.442695
    %v900 = vpow.pop %v899
    %v901 = vadd.f32 %v900, 1.0
    %v902 = vrcp.pop %v901
    %v903 = vmul.f32 1.0, %v902
    %v904 = vxor.u32 %v825, 2147483648
    %v905 = vmul.f32 %v904, 1.442695
    %v906 = vpow.pop %v905
    %v907 = vadd.f32 %v906, 1.0
    %v908 = vrcp.pop %v907
    %v909 = vmul.f32 1.0, %v908
    %v910 = vtanh.pop %v894
    %v911 = vxor.u32 %v896, 2147483648
    %v912 = vmul.f32 %v911, 1.442695
    %v913 = vpow.pop %v912
    %v914 = vadd.f32 %v913, 1.0
    %v915 = vrcp.pop %v914
    %v916 = vmul.f32 1.0, %v915
    %v917 = vmul.f32 %v909, %v681
    %v918 = vmul.f32 %v903, %v910
    %v919 = vadd.f32 %v917, %v918
    %v920 = vtanh.pop %v919
    %v921 = vmul.f32 %v916, %v920
    %s922 = scalar_lea.vmem [#allocation5], 8
    %923 = vst [vmem:[%s922] sm:$0xff] %v921
    %v924 = vld [vmem:[#allocation11] sm:$0xff]
    %v925 = vld [vmem:[#allocation11 + $0x8] sm:$0xff]
    %v926 = vld [vmem:[#allocation11 + $0x10] sm:$0xff]
    %v927 = vld [vmem:[#allocation11 + $0x18] sm:$0xff]
    %v928 = vld [vmem:[#allocation11 + $0x20] sm:$0xff]
    %v929 = vld [vmem:[#allocation11 + $0x28] sm:$0xff]
    %v930 = vld [vmem:[#allocation11 + $0x30] sm:$0xff]
    %v931 = vld [vmem:[#allocation11 + $0x38] sm:$0xff]
    %v932 = vld [vmem:[#allocation11 + $0x40] sm:$0xff]
    %v933 = vld [vmem:[#allocation11 + $0x48] sm:$0xff]
    %v934 = vld [vmem:[#allocation11 + $0x50] sm:$0xff]
    %v935 = vld [vmem:[#allocation11 + $0x58] sm:$0xff]
    %v936 = vld [vmem:[#allocation11 + $0x60] sm:$0xff]
    %v937 = vld [vmem:[#allocation11 + $0x68] sm:$0xff]
    %v938 = vld [vmem:[#allocation11 + $0x70] sm:$0xff]
    %v939 = vld [vmem:[#allocation11 + $0x78] sm:$0xff]
    %v940 = vld [vmem:[#allocation11 + $0x80] sm:$0xff]
    %v941 = vld [vmem:[#allocation11 + $0x88] sm:$0xff]
    %v942 = vld [vmem:[#allocation11 + $0x90] sm:$0xff]
    %v943 = vld [vmem:[#allocation11 + $0x98] sm:$0xff]
    %v944 = vld [vmem:[#allocation11 + $0xa0] sm:$0xff]
    %v945 = vld [vmem:[#allocation11 + $0xa8] sm:$0xff]
    %v946 = vld [vmem:[#allocation11 + $0xb0] sm:$0xff]
    %v947 = vld [vmem:[#allocation11 + $0xb8] sm:$0xff]
    %v948 = vld [vmem:[#allocation11 + $0xc0] sm:$0xff]
    %v949 = vld [vmem:[#allocation11 + $0xc8] sm:$0xff]
    %v950 = vld [vmem:[#allocation11 + $0xd0] sm:$0xff]
    %v951 = vld [vmem:[#allocation11 + $0xd8] sm:$0xff]
    %v952 = vld [vmem:[#allocation11 + $0xe0] sm:$0xff]
    %v953 = vld [vmem:[#allocation11 + $0xe8] sm:$0xff]
    %v954 = vld [vmem:[#allocation11 + $0xf0] sm:$0xff]
    %v955 = vld [vmem:[#allocation11 + $0xf8] sm:$0xff]
    %v956 = vld [vmem:[#allocation11 + $0x100] sm:$0xff]
    %v957 = vld [vmem:[#allocation11 + $0x108] sm:$0xff]
    %v958 = vld [vmem:[#allocation11 + $0x110] sm:$0xff]
    %v959 = vld [vmem:[#allocation11 + $0x118] sm:$0xff]
    %v960 = vld [vmem:[#allocation11 + $0x120] sm:$0xff]
    %v961 = vld [vmem:[#allocation11 + $0x128] sm:$0xff]
    %v962 = vld [vmem:[#allocation11 + $0x130] sm:$0xff]
    %v963 = vld [vmem:[#allocation11 + $0x138] sm:$0xff]
    %v964 = vld [vmem:[#allocation11 + $0x140] sm:$0xff]
    %v965 = vld [vmem:[#allocation11 + $0x148] sm:$0xff]
    %v966 = vld [vmem:[#allocation11 + $0x150] sm:$0xff]
    %v967 = vld [vmem:[#allocation11 + $0x158] sm:$0xff]
    %v968 = vld [vmem:[#allocation11 + $0x160] sm:$0xff]
    %v969 = vld [vmem:[#allocation11 + $0x168] sm:$0xff]
    %v970 = vld [vmem:[#allocation11 + $0x170] sm:$0xff]
    %v971 = vld [vmem:[#allocation11 + $0x178] sm:$0xff]
    %v972 = vld [vmem:[#allocation11 + $0x180] sm:$0xff]
    %v973 = vld [vmem:[#allocation11 + $0x188] sm:$0xff]
    %v974 = vld [vmem:[#allocation11 + $0x190] sm:$0xff]
    %v975 = vld [vmem:[#allocation11 + $0x198] sm:$0xff]
    %v976 = vld [vmem:[#allocation11 + $0x1a0] sm:$0xff]
    %v977 = vld [vmem:[#allocation11 + $0x1a8] sm:$0xff]
    %v978 = vld [vmem:[#allocation11 + $0x1b0] sm:$0xff]
    %v979 = vld [vmem:[#allocation11 + $0x1b8] sm:$0xff]
    %v980 = vld [vmem:[#allocation11 + $0x1c0] sm:$0xff]
    %v981 = vld [vmem:[#allocation11 + $0x1c8] sm:$0xff]
    %v982 = vld [vmem:[#allocation11 + $0x1d0] sm:$0xff]
    %v983 = vld [vmem:[#allocation11 + $0x1d8] sm:$0xff]
    %v984 = vld [vmem:[#allocation11 + $0x1e0] sm:$0xff]
    %v985 = vld [vmem:[#allocation11 + $0x1e8] sm:$0xff]
    %v986 = vld [vmem:[#allocation11 + $0x1f0] sm:$0xff]
    %v987 = vld [vmem:[#allocation11 + $0x1f8] sm:$0xff]
    %s988 = smul.u32 2, 4
    %s989 = smul.addr %s988, 8
    %s990 = scalar_lea.vmem [#allocation4], %s989
    %v991 = vld [vmem:[%s990] sm:$0xff]
    %v992 = vld [vmem:[%s990 + $0x8] sm:$0xff]
    %v993 = vld [vmem:[%s990 + $0x10] sm:$0xff]
    %v994 = vld [vmem:[%s990 + $0x18] sm:$0xff]
    %995 = vmatprep.subr.mxu0 %v925
    %996 = vmatpush1.msra.mxu0 %v924
    %997 = vmatprep.subr.mxu0 %v929
    %998 = vmatpush1.msra.mxu0 %v928
    %999 = vmatprep.subr.mxu0 %v933
    %1000 = vmatpush1.msra.mxu0 %v932
    %1001 = vmatprep.subr.mxu0 %v937
    %1002 = vmatpush1.msra.mxu0 %v936
    %1003 = vmatprep.subr.mxu0 %v941
    %1004 = vmatpush1.msra.mxu0 %v940
    %1005 = vmatprep.subr.mxu0 %v945
    %1006 = vmatpush1.msra.mxu0 %v944
    %1007 = vmatprep.subr.mxu0 %v949
    %1008 = vmatpush1.msra.mxu0 %v948
    %1009 = vmatprep.subr.mxu0 %v953
    %1010 = vmatpush1.msra.mxu0 %v952
    %1011 = vmatprep.subr.mxu0 %v957
    %1012 = vmatpush1.msra.mxu0 %v956
    %1013 = vmatprep.subr.mxu0 %v961
    %1014 = vmatpush1.msra.mxu0 %v960
    %1015 = vmatprep.subr.mxu0 %v965
    %1016 = vmatpush1.msra.mxu0 %v964
    %1017 = vmatprep.subr.mxu0 %v969
    %1018 = vmatpush1.msra.mxu0 %v968
    %1019 = vmatprep.subr.mxu0 %v973
    %1020 = vmatpush1.msra.mxu0 %v972
    %1021 = vmatprep.subr.mxu0 %v977
    %1022 = vmatpush1.msra.mxu0 %v976
    %1023 = vmatprep.subr.mxu0 %v981
    %1024 = vmatpush1.msra.mxu0 %v980
    %1025 = vmatprep.subr.mxu0 %v985
    %1026 = vmatpush1.msra.mxu0 %v984
    %1027 = vmatprep.subr.mxu0 0.0
    %1028 = vmatpush1.msra.mxu0 0.0
    %1029 = vmatprep.subr.mxu0 0.0
    %1030 = vmatpush1.msra.mxu0 0.0
    %1031 = vmatprep.subr.mxu0 0.0
    %1032 = vmatpush1.msra.mxu0 0.0
    %1033 = vmatprep.subr.mxu0 0.0
    %1034 = vmatpush1.msra.mxu0 0.0
    %1035 = vmatprep.subr.mxu0 0.0
    %1036 = vmatpush1.msra.mxu0 0.0
    %1037 = vmatprep.subr.mxu0 0.0
    %1038 = vmatpush1.msra.mxu0 0.0
    %1039 = vmatprep.subr.mxu0 0.0
    %1040 = vmatpush1.msra.mxu0 0.0
    %1041 = vmatprep.subr.mxu0 0.0
    %1042 = vmatpush1.msra.mxu0 0.0
    %1043 = vmatprep.subr.mxu0 0.0
    %1044 = vmatpush1.msra.mxu0 0.0
    %1045 = vmatprep.subr.mxu0 0.0
    %1046 = vmatpush1.msra.mxu0 0.0
    %1047 = vmatprep.subr.mxu0 0.0
    %1048 = vmatpush1.msra.mxu0 0.0
    %1049 = vmatprep.subr.mxu0 0.0
    %1050 = vmatpush1.msra.mxu0 0.0
    %1051 = vmatprep.subr.mxu0 0.0
    %1052 = vmatpush1.msra.mxu0 0.0
    %1053 = vmatprep.subr.mxu0 0.0
    %1054 = vmatpush1.msra.mxu0 0.0
    %1055 = vmatprep.subr.mxu0 0.0
    %1056 = vmatpush1.msra.mxu0 0.0
    %1057 = vmatprep.subr.mxu0 0.0
    %1058 = vmatpush1.msra.mxu0 0.0
    %1059 = vmatprep.mubr.f32.mxu0 0.0
    %1060 = vmatmul.mubr.f32.gmra.mrb[0].mxu0 %v921
    %v1061 = vpop.f32.mrb[0].mxu0
    %v1062 = vadd.f32 %v991, %v1061
    %v1063 = vpop.f32.mrb[0].mxu0
    %v1064 = vadd.f32 %v992, %v1063
    %1065 = vdwg.mxu0
    %1066 = vmatprep.subr.mxu0 %v927
    %1067 = vmatpush1.msra.mxu0 %v926
    %1068 = vmatprep.subr.mxu0 %v931
    %1069 = vmatpush1.msra.mxu0 %v930
    %1070 = vmatprep.subr.mxu0 %v935
    %1071 = vmatpush1.msra.mxu0 %v934
    %1072 = vmatprep.subr.mxu0 %v939
    %1073 = vmatpush1.msra.mxu0 %v938
    %1074 = vmatprep.subr.mxu0 %v943
    %1075 = vmatpush1.msra.mxu0 %v942
    %1076 = vmatprep.subr.mxu0 %v947
    %1077 = vmatpush1.msra.mxu0 %v946
    %1078 = vmatprep.subr.mxu0 %v951
    %1079 = vmatpush1.msra.mxu0 %v950
    %1080 = vmatprep.subr.mxu0 %v955
    %1081 = vmatpush1.msra.mxu0 %v954
    %1082 = vmatprep.subr.mxu0 %v959
    %1083 = vmatpush1.msra.mxu0 %v958
    %1084 = vmatprep.subr.mxu0 %v963
    %1085 = vmatpush1.msra.mxu0 %v962
    %1086 = vmatprep.subr.mxu0 %v967
    %1087 = vmatpush1.msra.mxu0 %v966
    %1088 = vmatprep.subr.mxu0 %v971
    %1089 = vmatpush1.msra.mxu0 %v970
    %1090 = vmatprep.subr.mxu0 %v975
    %1091 = vmatpush1.msra.mxu0 %v974
    %1092 = vmatprep.subr.mxu0 %v979
    %1093 = vmatpush1.msra.mxu0 %v978
    %1094 = vmatprep.subr.mxu0 %v983
    %1095 = vmatpush1.msra.mxu0 %v982
    %1096 = vmatprep.subr.mxu0 %v987
    %1097 = vmatpush1.msra.mxu0 %v986
    %1098 = vmatprep.subr.mxu0 0.0
    %1099 = vmatpush1.msra.mxu0 0.0
    %1100 = vmatprep.subr.mxu0 0.0
    %1101 = vmatpush1.msra.mxu0 0.0
    %1102 = vmatprep.subr.mxu0 0.0
    %1103 = vmatpush1.msra.mxu0 0.0
    %1104 = vmatprep.subr.mxu0 0.0
    %1105 = vmatpush1.msra.mxu0 0.0
    %1106 = vmatprep.subr.mxu0 0.0
    %1107 = vmatpush1.msra.mxu0 0.0
    %1108 = vmatprep.subr.mxu0 0.0
    %1109 = vmatpush1.msra.mxu0 0.0
    %1110 = vmatprep.subr.mxu0 0.0
    %1111 = vmatpush1.msra.mxu0 0.0
    %1112 = vmatprep.subr.mxu0 0.0
    %1113 = vmatpush1.msra.mxu0 0.0
    %1114 = vmatprep.subr.mxu0 0.0
    %1115 = vmatpush1.msra.mxu0 0.0
    %1116 = vmatprep.subr.mxu0 0.0
    %1117 = vmatpush1.msra.mxu0 0.0
    %1118 = vmatprep.subr.mxu0 0.0
    %1119 = vmatpush1.msra.mxu0 0.0
    %1120 = vmatprep.subr.mxu0 0.0
    %1121 = vmatpush1.msra.mxu0 0.0
    %1122 = vmatprep.subr.mxu0 0.0
    %1123 = vmatpush1.msra.mxu0 0.0
    %1124 = vmatprep.subr.mxu0 0.0
    %1125 = vmatpush1.msra.mxu0 0.0
    %1126 = vmatprep.subr.mxu0 0.0
    %1127 = vmatpush1.msra.mxu0 0.0
    %1128 = vmatprep.subr.mxu0 0.0
    %1129 = vmatpush1.msra.mxu0 0.0
    %1130 = vmatprep.mubr.f32.mxu0 0.0
    %1131 = vmatmul.mubr.f32.gmra.mrb[0].mxu0 %v921
    %v1132 = vpop.f32.mrb[0].mxu0
    %v1133 = vadd.f32 %v993, %v1132
    %v1134 = vpop.f32.mrb[0].mxu0
    %v1135 = vadd.f32 %v994, %v1134
    %1136 = vdwg.mxu0
    %v1137 = vxor.u32 %v1062, 2147483648
    %v1138 = vmul.f32 %v1137, 1.442695
    %v1139 = vpow.pop %v1138
    %v1140 = vadd.f32 %v1139, 1.0
    %v1141 = vrcp.pop %v1140
    %v1142 = vmul.f32 1.0, %v1141
    %v1143 = vxor.u32 %v1064, 2147483648
    %v1144 = vmul.f32 %v1143, 1.442695
    %v1145 = vpow.pop %v1144
    %v1146 = vadd.f32 %v1145, 1.0
    %v1147 = vrcp.pop %v1146
    %v1148 = vmul.f32 1.0, %v1147
    %v1149 = vtanh.pop %v1133
    %v1150 = vxor.u32 %v1135, 2147483648
    %v1151 = vmul.f32 %v1150, 1.442695
    %v1152 = vpow.pop %v1151
    %v1153 = vadd.f32 %v1152, 1.0
    %v1154 = vrcp.pop %v1153
    %v1155 = vmul.f32 1.0, %v1154
    %v1156 = vmul.f32 %v1148, %v919
    %v1157 = vmul.f32 %v1142, %v1149
    %v1158 = vadd.f32 %v1156, %v1157
    %v1159 = vtanh.pop %v1158
    %v1160 = vmul.f32 %v1155, %v1159
    %s1161 = scalar_lea.vmem [#allocation5], 16
    %1162 = vst [vmem:[%s1161] sm:$0xff] %v1160
    %v1163 = vld [vmem:[#allocation11] sm:$0xff]
    %v1164 = vld [vmem:[#allocation11 + $0x8] sm:$0xff]
    %v1165 = vld [vmem:[#allocation11 + $0x10] sm:$0xff]
    %v1166 = vld [vmem:[#allocation11 + $0x18] sm:$0xff]
    %v1167 = vld [vmem:[#allocation11 + $0x20] sm:$0xff]
    %v1168 = vld [vmem:[#allocation11 + $0x28] sm:$0xff]
    %v1169 = vld [vmem:[#allocation11 + $0x30] sm:$0xff]
    %v1170 = vld [vmem:[#allocation11 + $0x38] sm:$0xff]
    %v1171 = vld [vmem:[#allocation11 + $0x40] sm:$0xff]
    %v1172 = vld [vmem:[#allocation11 + $0x48] sm:$0xff]
    %v1173 = vld [vmem:[#allocation11 + $0x50] sm:$0xff]
    %v1174 = vld [vmem:[#allocation11 + $0x58] sm:$0xff]
    %v1175 = vld [vmem:[#allocation11 + $0x60] sm:$0xff]
    %v1176 = vld [vmem:[#allocation11 + $0x68] sm:$0xff]
    %v1177 = vld [vmem:[#allocation11 + $0x70] sm:$0xff]
    %v1178 = vld [vmem:[#allocation11 + $0x78] sm:$0xff]
    %v1179 = vld [vmem:[#allocation11 + $0x80] sm:$0xff]
    %v1180 = vld [vmem:[#allocation11 + $0x88] sm:$0xff]
    %v1181 = vld [vmem:[#allocation11 + $0x90] sm:$0xff]
    %v1182 = vld [vmem:[#allocation11 + $0x98] sm:$0xff]
    %v1183 = vld [vmem:[#allocation11 + $0xa0] sm:$0xff]
    %v1184 = vld [vmem:[#allocation11 + $0xa8] sm:$0xff]
    %v1185 = vld [vmem:[#allocation11 + $0xb0] sm:$0xff]
    %v1186 = vld [vmem:[#allocation11 + $0xb8] sm:$0xff]
    %v1187 = vld [vmem:[#allocation11 + $0xc0] sm:$0xff]
    %v1188 = vld [vmem:[#allocation11 + $0xc8] sm:$0xff]
    %v1189 = vld [vmem:[#allocation11 + $0xd0] sm:$0xff]
    %v1190 = vld [vmem:[#allocation11 + $0xd8] sm:$0xff]
    %v1191 = vld [vmem:[#allocation11 + $0xe0] sm:$0xff]
    %v1192 = vld [vmem:[#allocation11 + $0xe8] sm:$0xff]
    %v1193 = vld [vmem:[#allocation11 + $0xf0] sm:$0xff]
    %v1194 = vld [vmem:[#allocation11 + $0xf8] sm:$0xff]
    %v1195 = vld [vmem:[#allocation11 + $0x100] sm:$0xff]
    %v1196 = vld [vmem:[#allocation11 + $0x108] sm:$0xff]
    %v1197 = vld [vmem:[#allocation11 + $0x110] sm:$0xff]
    %v1198 = vld [vmem:[#allocation11 + $0x118] sm:$0xff]
    %v1199 = vld [vmem:[#allocation11 + $0x120] sm:$0xff]
    %v1200 = vld [vmem:[#allocation11 + $0x128] sm:$0xff]
    %v1201 = vld [vmem:[#allocation11 + $0x130] sm:$0xff]
    %v1202 = vld [vmem:[#allocation11 + $0x138] sm:$0xff]
    %v1203 = vld [vmem:[#allocation11 + $0x140] sm:$0xff]
    %v1204 = vld [vmem:[#allocation11 + $0x148] sm:$0xff]
    %v1205 = vld [vmem:[#allocation11 + $0x150] sm:$0xff]
    %v1206 = vld [vmem:[#allocation11 + $0x158] sm:$0xff]
    %v1207 = vld [vmem:[#allocation11 + $0x160] sm:$0xff]
    %v1208 = vld [vmem:[#allocation11 + $0x168] sm:$0xff]
    %v1209 = vld [vmem:[#allocation11 + $0x170] sm:$0xff]
    %v1210 = vld [vmem:[#allocation11 + $0x178] sm:$0xff]
    %v1211 = vld [vmem:[#allocation11 + $0x180] sm:$0xff]
    %v1212 = vld [vmem:[#allocation11 + $0x188] sm:$0xff]
    %v1213 = vld [vmem:[#allocation11 + $0x190] sm:$0xff]
    %v1214 = vld [vmem:[#allocation11 + $0x198] sm:$0xff]
    %v1215 = vld [vmem:[#allocation11 + $0x1a0] sm:$0xff]
    %v1216 = vld [vmem:[#allocation11 + $0x1a8] sm:$0xff]
    %v1217 = vld [vmem:[#allocation11 + $0x1b0] sm:$0xff]
    %v1218 = vld [vmem:[#allocation11 + $0x1b8] sm:$0xff]
    %v1219 = vld [vmem:[#allocation11 + $0x1c0] sm:$0xff]
    %v1220 = vld [vmem:[#allocation11 + $0x1c8] sm:$0xff]
    %v1221 = vld [vmem:[#allocation11 + $0x1d0] sm:$0xff]
    %v1222 = vld [vmem:[#allocation11 + $0x1d8] sm:$0xff]
    %v1223 = vld [vmem:[#allocation11 + $0x1e0] sm:$0xff]
    %v1224 = vld [vmem:[#allocation11 + $0x1e8] sm:$0xff]
    %v1225 = vld [vmem:[#allocation11 + $0x1f0] sm:$0xff]
    %v1226 = vld [vmem:[#allocation11 + $0x1f8] sm:$0xff]
    %s1227 = smul.u32 3, 4
    %s1228 = smul.addr %s1227, 8
    %s1229 = scalar_lea.vmem [#allocation4], %s1228
    %v1230 = vld [vmem:[%s1229] sm:$0xff]
    %v1231 = vld [vmem:[%s1229 + $0x8] sm:$0xff]
    %v1232 = vld [vmem:[%s1229 + $0x10] sm:$0xff]
    %v1233 = vld [vmem:[%s1229 + $0x18] sm:$0xff]
    %1234 = vmatprep.subr.mxu0 %v1164
    %1235 = vmatpush1.msra.mxu0 %v1163
    %1236 = vmatprep.subr.mxu0 %v1168
    %1237 = vmatpush1.msra.mxu0 %v1167
    %1238 = vmatprep.subr.mxu0 %v1172
    %1239 = vmatpush1.msra.mxu0 %v1171
    %1240 = vmatprep.subr.mxu0 %v1176
    %1241 = vmatpush1.msra.mxu0 %v1175
    %1242 = vmatprep.subr.mxu0 %v1180
    %1243 = vmatpush1.msra.mxu0 %v1179
    %1244 = vmatprep.subr.mxu0 %v1184
    %1245 = vmatpush1.msra.mxu0 %v1183
    %1246 = vmatprep.subr.mxu0 %v1188
    %1247 = vmatpush1.msra.mxu0 %v1187
    %1248 = vmatprep.subr.mxu0 %v1192
    %1249 = vmatpush1.msra.mxu0 %v1191
    %1250 = vmatprep.subr.mxu0 %v1196
    %1251 = vmatpush1.msra.mxu0 %v1195
    %1252 = vmatprep.subr.mxu0 %v1200
    %1253 = vmatpush1.msra.mxu0 %v1199
    %1254 = vmatprep.subr.mxu0 %v1204
    %1255 = vmatpush1.msra.mxu0 %v1203
    %1256 = vmatprep.subr.mxu0 %v1208
    %1257 = vmatpush1.msra.mxu0 %v1207
    %1258 = vmatprep.subr.mxu0 %v1212
    %1259 = vmatpush1.msra.mxu0 %v1211
    %1260 = vmatprep.subr.mxu0 %v1216
    %1261 = vmatpush1.msra.mxu0 %v1215
    %1262 = vmatprep.subr.mxu0 %v1220
    %1263 = vmatpush1.msra.mxu0 %v1219
    %1264 = vmatprep.subr.mxu0 %v1224
    %1265 = vmatpush1.msra.mxu0 %v1223
    %1266 = vmatprep.subr.mxu0 0.0
    %1267 = vmatpush1.msra.mxu0 0.0
    %1268 = vmatprep.subr.mxu0 0.0
    %1269 = vmatpush1.msra.mxu0 0.0
    %1270 = vmatprep.subr.mxu0 0.0
    %1271 = vmatpush1.msra.mxu0 0.0
    %1272 = vmatprep.subr.mxu0 0.0
    %1273 = vmatpush1.msra.mxu0 0.0
    %1274 = vmatprep.subr.mxu0 0.0
    %1275 = vmatpush1.msra.mxu0 0.0
    %1276 = vmatprep.subr.mxu0 0.0
    %1277 = vmatpush1.msra.mxu0 0.0
    %1278 = vmatprep.subr.mxu0 0.0
    %1279 = vmatpush1.msra.mxu0 0.0
    %1280 = vmatprep.subr.mxu0 0.0
    %1281 = vmatpush1.msra.mxu0 0.0
    %1282 = vmatprep.subr.mxu0 0.0
    %1283 = vmatpush1.msra.mxu0 0.0
    %1284 = vmatprep.subr.mxu0 0.0
    %1285 = vmatpush1.msra.mxu0 0.0
    %1286 = vmatprep.subr.mxu0 0.0
    %1287 = vmatpush1.msra.mxu0 0.0
    %1288 = vmatprep.subr.mxu0 0.0
    %1289 = vmatpush1.msra.mxu0 0.0
    %1290 = vmatprep.subr.mxu0 0.0
    %1291 = vmatpush1.msra.mxu0 0.0
    %1292 = vmatprep.subr.mxu0 0.0
    %1293 = vmatpush1.msra.mxu0 0.0
    %1294 = vmatprep.subr.mxu0 0.0
    %1295 = vmatpush1.msra.mxu0 0.0
    %1296 = vmatprep.subr.mxu0 0.0
    %1297 = vmatpush1.msra.mxu0 0.0
    %1298 = vmatprep.mubr.f32.mxu0 0.0
    %1299 = vmatmul.mubr.f32.gmra.mrb[0].mxu0 %v1160
    %v1300 = vpop.f32.mrb[0].mxu0
    %v1301 = vadd.f32 %v1230, %v1300
    %v1302 = vpop.f32.mrb[0].mxu0
    %v1303 = vadd.f32 %v1231, %v1302
    %1304 = vdwg.mxu0
    %1305 = vmatprep.subr.mxu0 %v1166
    %1306 = vmatpush1.msra.mxu0 %v1165
    %1307 = vmatprep.subr.mxu0 %v1170
    %1308 = vmatpush1.msra.mxu0 %v1169
    %1309 = vmatprep.subr.mxu0 %v1174
    %1310 = vmatpush1.msra.mxu0 %v1173
    %1311 = vmatprep.subr.mxu0 %v1178
    %1312 = vmatpush1.msra.mxu0 %v1177
    %1313 = vmatprep.subr.mxu0 %v1182
    %1314 = vmatpush1.msra.mxu0 %v1181
    %1315 = vmatprep.subr.mxu0 %v1186
    %1316 = vmatpush1.msra.mxu0 %v1185
    %1317 = vmatprep.subr.mxu0 %v1190
    %1318 = vmatpush1.msra.mxu0 %v1189
    %1319 = vmatprep.subr.mxu0 %v1194
    %1320 = vmatpush1.msra.mxu0 %v1193
    %1321 = vmatprep.subr.mxu0 %v1198
    %1322 = vmatpush1.msra.mxu0 %v1197
    %1323 = vmatprep.subr.mxu0 %v1202
    %1324 = vmatpush1.msra.mxu0 %v1201
    %1325 = vmatprep.subr.mxu0 %v1206
    %1326 = vmatpush1.msra.mxu0 %v1205
    %1327 = vmatprep.subr.mxu0 %v1210
    %1328 = vmatpush1.msra.mxu0 %v1209
    %1329 = vmatprep.subr.mxu0 %v1214
    %1330 = vmatpush1.msra.mxu0 %v1213
    %1331 = vmatprep.subr.mxu0 %v1218
    %1332 = vmatpush1.msra.mxu0 %v1217
    %1333 = vmatprep.subr.mxu0 %v1222
    %1334 = vmatpush1.msra.mxu0 %v1221
    %1335 = vmatprep.subr.mxu0 %v1226
    %1336 = vmatpush1.msra.mxu0 %v1225
    %1337 = vmatprep.subr.mxu0 0.0
    %1338 = vmatpush1.msra.mxu0 0.0
    %1339 = vmatprep.subr.mxu0 0.0
    %1340 = vmatpush1.msra.mxu0 0.0
    %1341 = vmatprep.subr.mxu0 0.0
    %1342 = vmatpush1.msra.mxu0 0.0
    %1343 = vmatprep.subr.mxu0 0.0
    %1344 = vmatpush1.msra.mxu0 0.0
    %1345 = vmatprep.subr.mxu0 0.0
    %1346 = vmatpush1.msra.mxu0 0.0
    %1347 = vmatprep.subr.mxu0 0.0
    %1348 = vmatpush1.msra.mxu0 0.0
    %1349 = vmatprep.subr.mxu0 0.0
    %1350 = vmatpush1.msra.mxu0 0.0
    %1351 = vmatprep.subr.mxu0 0.0
    %1352 = vmatpush1.msra.mxu0 0.0
    %1353 = vmatprep.subr.mxu0 0.0
    %1354 = vmatpush1.msra.mxu0 0.0
    %1355 = vmatprep.subr.mxu0 0.0
    %1356 = vmatpush1.msra.mxu0 0.0
    %1357 = vmatprep.subr.mxu0 0.0
    %1358 = vmatpush1.msra.mxu0 0.0
    %1359 = vmatprep.subr.mxu0 0.0
    %1360 = vmatpush1.msra.mxu0 0.0
    %1361 = vmatprep.subr.mxu0 0.0
    %1362 = vmatpush1.msra.mxu0 0.0
    %1363 = vmatprep.subr.mxu0 0.0
    %1364 = vmatpush1.msra.mxu0 0.0
    %1365 = vmatprep.subr.mxu0 0.0
    %1366 = vmatpush1.msra.mxu0 0.0
    %1367 = vmatprep.subr.mxu0 0.0
    %1368 = vmatpush1.msra.mxu0 0.0
    %1369 = vmatprep.mubr.f32.mxu0 0.0
    %1370 = vmatmul.mubr.f32.gmra.mrb[0].mxu0 %v1160
    %v1371 = vpop.f32.mrb[0].mxu0
    %v1372 = vadd.f32 %v1232, %v1371
    %v1373 = vpop.f32.mrb[0].mxu0
    %v1374 = vadd.f32 %v1233, %v1373
    %1375 = vdwg.mxu0
    %v1376 = vxor.u32 %v1301, 2147483648
    %v1377 = vmul.f32 %v1376, 1.442695
    %v1378 = vpow.pop %v1377
    %v1379 = vadd.f32 %v1378, 1.0
    %v1380 = vrcp.pop %v1379
    %v1381 = vmul.f32 1.0, %v1380
    %v1382 = vxor.u32 %v1303, 2147483648
    %v1383 = vmul.f32 %v1382, 1.442695
    %v1384 = vpow.pop %v1383
    %v1385 = vadd.f32 %v1384, 1.0
    %v1386 = vrcp.pop %v1385
    %v1387 = vmul.f32 1.0, %v1386
    %v1388 = vtanh.pop %v1372
    %v1389 = vxor.u32 %v1374, 2147483648
    %v1390 = vmul.f32 %v1389, 1.442695
    %v1391 = vpow.pop %v1390
    %v1392 = vadd.f32 %v1391, 1.0
    %v1393 = vrcp.pop %v1392
    %v1394 = vmul.f32 1.0, %v1393
    %v1395 = vmul.f32 %v1387, %v1158
    %v1396 = vmul.f32 %v1381, %v1388
    %v1397 = vadd.f32 %v1395, %v1396
    %v1398 = vtanh.pop %v1397
    %v1399 = vmul.f32 %v1394, %v1398
    %s1400 = scalar_lea.vmem [#allocation5], 24
    %1401 = vst [vmem:[%s1400] sm:$0xff] %v1399
    %v1402 = vld [vmem:[#allocation11] sm:$0xff]
    %v1403 = vld [vmem:[#allocation11 + $0x8] sm:$0xff]
    %v1404 = vld [vmem:[#allocation11 + $0x10] sm:$0xff]
    %v1405 = vld [vmem:[#allocation11 + $0x18] sm:$0xff]
    %v1406 = vld [vmem:[#allocation11 + $0x20] sm:$0xff]
    %v1407 = vld [vmem:[#allocation11 + $0x28] sm:$0xff]
    %v1408 = vld [vmem:[#allocation11 + $0x30] sm:$0xff]
    %v1409 = vld [vmem:[#allocation11 + $0x38] sm:$0xff]
    %v1410 = vld [vmem:[#allocation11 + $0x40] sm:$0xff]
    %v1411 = vld [vmem:[#allocation11 + $0x48] sm:$0xff]
    %v1412 = vld [vmem:[#allocation11 + $0x50] sm:$0xff]
    %v1413 = vld [vmem:[#allocation11 + $0x58] sm:$0xff]
    %v1414 = vld [vmem:[#allocation11 + $0x60] sm:$0xff]
    %v1415 = vld [vmem:[#allocation11 + $0x68] sm:$0xff]
    %v1416 = vld [vmem:[#allocation11 + $0x70] sm:$0xff]
    %v1417 = vld [vmem:[#allocation11 + $0x78] sm:$0xff]
    %v1418 = vld [vmem:[#allocation11 + $0x80] sm:$0xff]
    %v1419 = vld [vmem:[#allocation11 + $0x88] sm:$0xff]
    %v1420 = vld [vmem:[#allocation11 + $0x90] sm:$0xff]
    %v1421 = vld [vmem:[#allocation11 + $0x98] sm:$0xff]
    %v1422 = vld [vmem:[#allocation11 + $0xa0] sm:$0xff]
    %v1423 = vld [vmem:[#allocation11 + $0xa8] sm:$0xff]
    %v1424 = vld [vmem:[#allocation11 + $0xb0] sm:$0xff]
    %v1425 = vld [vmem:[#allocation11 + $0xb8] sm:$0xff]
    %v1426 = vld [vmem:[#allocation11 + $0xc0] sm:$0xff]
    %v1427 = vld [vmem:[#allocation11 + $0xc8] sm:$0xff]
    %v1428 = vld [vmem:[#allocation11 + $0xd0] sm:$0xff]
    %v1429 = vld [vmem:[#allocation11 + $0xd8] sm:$0xff]
    %v1430 = vld [vmem:[#allocation11 + $0xe0] sm:$0xff]
    %v1431 = vld [vmem:[#allocation11 + $0xe8] sm:$0xff]
    %v1432 = vld [vmem:[#allocation11 + $0xf0] sm:$0xff]
    %v1433 = vld [vmem:[#allocation11 + $0xf8] sm:$0xff]
    %v1434 = vld [vmem:[#allocation11 + $0x100] sm:$0xff]
    %v1435 = vld [vmem:[#allocation11 + $0x108] sm:$0xff]
    %v1436 = vld [vmem:[#allocation11 + $0x110] sm:$0xff]
    %v1437 = vld [vmem:[#allocation11 + $0x118] sm:$0xff]
    %v1438 = vld [vmem:[#allocation11 + $0x120] sm:$0xff]
    %v1439 = vld [vmem:[#allocation11 + $0x128] sm:$0xff]
    %v1440 = vld [vmem:[#allocation11 + $0x130] sm:$0xff]
    %v1441 = vld [vmem:[#allocation11 + $0x138] sm:$0xff]
    %v1442 = vld [vmem:[#allocation11 + $0x140] sm:$0xff]
    %v1443 = vld [vmem:[#allocation11 + $0x148] sm:$0xff]
    %v1444 = vld [vmem:[#allocation11 + $0x150] sm:$0xff]
    %v1445 = vld [vmem:[#allocation11 + $0x158] sm:$0xff]
    %v1446 = vld [vmem:[#allocation11 + $0x160] sm:$0xff]
    %v1447 = vld [vmem:[#allocation11 + $0x168] sm:$0xff]
    %v1448 = vld [vmem:[#allocation11 + $0x170] sm:$0xff]
    %v1449 = vld [vmem:[#allocation11 + $0x178] sm:$0xff]
    %v1450 = vld [vmem:[#allocation11 + $0x180] sm:$0xff]
    %v1451 = vld [vmem:[#allocation11 + $0x188] sm:$0xff]
    %v1452 = vld [vmem:[#allocation11 + $0x190] sm:$0xff]
    %v1453 = vld [vmem:[#allocation11 + $0x198] sm:$0xff]
    %v1454 = vld [vmem:[#allocation11 + $0x1a0] sm:$0xff]
    %v1455 = vld [vmem:[#allocation11 + $0x1a8] sm:$0xff]
    %v1456 = vld [vmem:[#allocation11 + $0x1b0] sm:$0xff]
    %v1457 = vld [vmem:[#allocation11 + $0x1b8] sm:$0xff]
    %v1458 = vld [vmem:[#allocation11 + $0x1c0] sm:$0xff]
    %v1459 = vld [vmem:[#allocation11 + $0x1c8] sm:$0xff]
    %v1460 = vld [vmem:[#allocation11 + $0x1d0] sm:$0xff]
    %v1461 = vld [vmem:[#allocation11 + $0x1d8] sm:$0xff]
    %v1462 = vld [vmem:[#allocation11 + $0x1e0] sm:$0xff]
    %v1463 = vld [vmem:[#allocation11 + $0x1e8] sm:$0xff]
    %v1464 = vld [vmem:[#allocation11 + $0x1f0] sm:$0xff]
    %v1465 = vld [vmem:[#allocation11 + $0x1f8] sm:$0xff]
    %s1466 = smul.u32 4, 4
    %s1467 = smul.addr %s1466, 8
    %s1468 = scalar_lea.vmem [#allocation4], %s1467
    %v1469 = vld [vmem:[%s1468] sm:$0xff]
    %v1470 = vld [vmem:[%s1468 + $0x8] sm:$0xff]
    %v1471 = vld [vmem:[%s1468 + $0x10] sm:$0xff]
    %v1472 = vld [vmem:[%s1468 + $0x18] sm:$0xff]
    %1473 = vmatprep.subr.mxu0 %v1403
    %1474 = vmatpush1.msra.mxu0 %v1402
    %1475 = vmatprep.subr.mxu0 %v1407
    %1476 = vmatpush1.msra.mxu0 %v1406
    %1477 = vmatprep.subr.mxu0 %v1411
    %1478 = vmatpush1.msra.mxu0 %v1410
    %1479 = vmatprep.subr.mxu0 %v1415
    %1480 = vmatpush1.msra.mxu0 %v1414
    %1481 = vmatprep.subr.mxu0 %v1419
    %1482 = vmatpush1.msra.mxu0 %v1418
    %1483 = vmatprep.subr.mxu0 %v1423
    %1484 = vmatpush1.msra.mxu0 %v1422
    %1485 = vmatprep.subr.mxu0 %v1427
    %1486 = vmatpush1.msra.mxu0 %v1426
    %1487 = vmatprep.subr.mxu0 %v1431
    %1488 = vmatpush1.msra.mxu0 %v1430
    %1489 = vmatprep.subr.mxu0 %v1435
    %1490 = vmatpush1.msra.mxu0 %v1434
    %1491 = vmatprep.subr.mxu0 %v1439
    %1492 = vmatpush1.msra.mxu0 %v1438
    %1493 = vmatprep.subr.mxu0 %v1443
    %1494 = vmatpush1.msra.mxu0 %v1442
    %1495 = vmatprep.subr.mxu0 %v1447
    %1496 = vmatpush1.msra.mxu0 %v1446
    %1497 = vmatprep.subr.mxu0 %v1451
    %1498 = vmatpush1.msra.mxu0 %v1450
    %1499 = vmatprep.subr.mxu0 %v1455
    %1500 = vmatpush1.msra.mxu0 %v1454
    %1501 = vmatprep.subr.mxu0 %v1459
    %1502 = vmatpush1.msra.mxu0 %v1458
    %1503 = vmatprep.subr.mxu0 %v1463
    %1504 = vmatpush1.msra.mxu0 %v1462
    %1505 = vmatprep.subr.mxu0 0.0
    %1506 = vmatpush1.msra.mxu0 0.0
    %1507 = vmatprep.subr.mxu0 0.0
    %1508 = vmatpush1.msra.mxu0 0.0
    %1509 = vmatprep.subr.mxu0 0.0
    %1510 = vmatpush1.msra.mxu0 0.0
    %1511 = vmatprep.subr.mxu0 0.0
    %1512 = vmatpush1.msra.mxu0 0.0
    %1513 = vmatprep.subr.mxu0 0.0
    %1514 = vmatpush1.msra.mxu0 0.0
    %1515 = vmatprep.subr.mxu0 0.0
    %1516 = vmatpush1.msra.mxu0 0.0
    %1517 = vmatprep.subr.mxu0 0.0
    %1518 = vmatpush1.msra.mxu0 0.0
    %1519 = vmatprep.subr.mxu0 0.0
    %1520 = vmatpush1.msra.mxu0 0.0
    %1521 = vmatprep.subr.mxu0 0.0
    %1522 = vmatpush1.msra.mxu0 0.0
    %1523 = vmatprep.subr.mxu0 0.0
    %1524 = vmatpush1.msra.mxu0 0.0
    %1525 = vmatprep.subr.mxu0 0.0
    %1526 = vmatpush1.msra.mxu0 0.0
    %1527 = vmatprep.subr.mxu0 0.0
    %1528 = vmatpush1.msra.mxu0 0.0
    %1529 = vmatprep.subr.mxu0 0.0
    %1530 = vmatpush1.msra.mxu0 0.0
    %1531 = vmatprep.subr.mxu0 0.0
    %1532 = vmatpush1.msra.mxu0 0.0
    %1533 = vmatprep.subr.mxu0 0.0
    %1534 = vmatpush1.msra.mxu0 0.0
    %1535 = vmatprep.subr.mxu0 0.0
    %1536 = vmatpush1.msra.mxu0 0.0
    %1537 = vmatprep.mubr.f32.mxu0 0.0
    %1538 = vmatmul.mubr.f32.gmra.mrb[0].mxu0 %v1399
    %v1539 = vpop.f32.mrb[0].mxu0
    %v1540 = vadd.f32 %v1469, %v1539
    %v1541 = vpop.f32.mrb[0].mxu0
    %v1542 = vadd.f32 %v1470, %v1541
    %1543 = vdwg.mxu0
    %1544 = vmatprep.subr.mxu0 %v1405
    %1545 = vmatpush1.msra.mxu0 %v1404
    %1546 = vmatprep.subr.mxu0 %v1409
    %1547 = vmatpush1.msra.mxu0 %v1408
    %1548 = vmatprep.subr.mxu0 %v1413
    %1549 = vmatpush1.msra.mxu0 %v1412
    %1550 = vmatprep.subr.mxu0 %v1417
    %1551 = vmatpush1.msra.mxu0 %v1416
    %1552 = vmatprep.subr.mxu0 %v1421
    %1553 = vmatpush1.msra.mxu0 %v1420
    %1554 = vmatprep.subr.mxu0 %v1425
    %1555 = vmatpush1.msra.mxu0 %v1424
    %1556 = vmatprep.subr.mxu0 %v1429
    %1557 = vmatpush1.msra.mxu0 %v1428
    %1558 = vmatprep.subr.mxu0 %v1433
    %1559 = vmatpush1.msra.mxu0 %v1432
    %1560 = vmatprep.subr.mxu0 %v1437
    %1561 = vmatpush1.msra.mxu0 %v1436
    %1562 = vmatprep.subr.mxu0 %v1441
    %1563 = vmatpush1.msra.mxu0 %v1440
    %1564 = vmatprep.subr.mxu0 %v1445
    %1565 = vmatpush1.msra.mxu0 %v1444
    %1566 = vmatprep.subr.mxu0 %v1449
    %1567 = vmatpush1.msra.mxu0 %v1448
    %1568 = vmatprep.subr.mxu0 %v1453
    %1569 = vmatpush1.msra.mxu0 %v1452
    %1570 = vmatprep.subr.mxu0 %v1457
    %1571 = vmatpush1.msra.mxu0 %v1456
    %1572 = vmatprep.subr.mxu0 %v1461
    %1573 = vmatpush1.msra.mxu0 %v1460
    %1574 = vmatprep.subr.mxu0 %v1465
    %1575 = vmatpush1.msra.mxu0 %v1464
    %1576 = vmatprep.subr.mxu0 0.0
    %1577 = vmatpush1.msra.mxu0 0.0
    %1578 = vmatprep.subr.mxu0 0.0
    %1579 = vmatpush1.msra.mxu0 0.0
    %1580 = vmatprep.subr.mxu0 0.0
    %1581 = vmatpush1.msra.mxu0 0.0
    %1582 = vmatprep.subr.mxu0 0.0
    %1583 = vmatpush1.msra.mxu0 0.0
    %1584 = vmatprep.subr.mxu0 0.0
    %1585 = vmatpush1.msra.mxu0 0.0
    %1586 = vmatprep.subr.mxu0 0.0
    %1587 = vmatpush1.msra.mxu0 0.0
    %1588 = vmatprep.subr.mxu0 0.0
    %1589 = vmatpush1.msra.mxu0 0.0
    %1590 = vmatprep.subr.mxu0 0.0
    %1591 = vmatpush1.msra.mxu0 0.0
    %1592 = vmatprep.subr.mxu0 0.0
    %1593 = vmatpush1.msra.mxu0 0.0
    %1594 = vmatprep.subr.mxu0 0.0
    %1595 = vmatpush1.msra.mxu0 0.0
    %1596 = vmatprep.subr.mxu0 0.0
    %1597 = vmatpush1.msra.mxu0 0.0
    %1598 = vmatprep.subr.mxu0 0.0
    %1599 = vmatpush1.msra.mxu0 0.0
    %1600 = vmatprep.subr.mxu0 0.0
    %1601 = vmatpush1.msra.mxu0 0.0
    %1602 = vmatprep.subr.mxu0 0.0
    %1603 = vmatpush1.msra.mxu0 0.0
    %1604 = vmatprep.subr.mxu0 0.0
    %1605 = vmatpush1.msra.mxu0 0.0
    %1606 = vmatprep.subr.mxu0 0.0
    %1607 = vmatpush1.msra.mxu0 0.0
    %1608 = vmatprep.mubr.f32.mxu0 0.0
    %1609 = vmatmul.mubr.f32.gmra.mrb[0].mxu0 %v1399
    %v1610 = vpop.f32.mrb[0].mxu0
    %v1611 = vadd.f32 %v1471, %v1610
    %v1612 = vpop.f32.mrb[0].mxu0
    %v1613 = vadd.f32 %v1472, %v1612
    %1614 = vdwg.mxu0
    %v1615 = vxor.u32 %v1540, 2147483648
    %v1616 = vmul.f32 %v1615, 1.442695
    %v1617 = vpow.pop %v1616
    %v1618 = vadd.f32 %v1617, 1.0
    %v1619 = vrcp.pop %v1618
    %v1620 = vmul.f32 1.0, %v1619
    %v1621 = vxor.u32 %v1542, 2147483648
    %v1622 = vmul.f32 %v1621, 1.442695
    %v1623 = vpow.pop %v1622
    %v1624 = vadd.f32 %v1623, 1.0
    %v1625 = vrcp.pop %v1624
    %v1626 = vmul.f32 1.0, %v1625
    %v1627 = vtanh.pop %v1611
    %v1628 = vxor.u32 %v1613, 2147483648
    %v1629 = vmul.f32 %v1628, 1.442695
    %v1630 = vpow.pop %v1629
    %v1631 = vadd.f32 %v1630, 1.0
    %v1632 = vrcp.pop %v1631
    %v1633 = vmul.f32 1.0, %v1632
    %v1634 = vmul.f32 %v1626, %v1397
    %v1635 = vmul.f32 %v1620, %v1627
    %v1636 = vadd.f32 %v1634, %v1635
    %v1637 = vtanh.pop %v1636
    %v1638 = vmul.f32 %v1633, %v1637
    %s1639 = scalar_lea.vmem [#allocation5], 32
    %1640 = vst [vmem:[%s1639] sm:$0xff] %v1638
    %v1641 = vld [vmem:[#allocation11] sm:$0xff]
    %v1642 = vld [vmem:[#allocation11 + $0x8] sm:$0xff]
    %v1643 = vld [vmem:[#allocation11 + $0x10] sm:$0xff]
    %v1644 = vld [vmem:[#allocation11 + $0x18] sm:$0xff]
    %v1645 = vld [vmem:[#allocation11 + $0x20] sm:$0xff]
    %v1646 = vld [vmem:[#allocation11 + $0x28] sm:$0xff]
    %v1647 = vld [vmem:[#allocation11 + $0x30] sm:$0xff]
    %v1648 = vld [vmem:[#allocation11 + $0x38] sm:$0xff]
    %v1649 = vld [vmem:[#allocation11 + $0x40] sm:$0xff]
    %v1650 = vld [vmem:[#allocation11 + $0x48] sm:$0xff]
    %v1651 = vld [vmem:[#allocation11 + $0x50] sm:$0xff]
    %v1652 = vld [vmem:[#allocation11 + $0x58] sm:$0xff]
    %v1653 = vld [vmem:[#allocation11 + $0x60] sm:$0xff]
    %v1654 = vld [vmem:[#allocation11 + $0x68] sm:$0xff]
    %v1655 = vld [vmem:[#allocation11 + $0x70] sm:$0xff]
    %v1656 = vld [vmem:[#allocation11 + $0x78] sm:$0xff]
    %v1657 = vld [vmem:[#allocation11 + $0x80] sm:$0xff]
    %v1658 = vld [vmem:[#allocation11 + $0x88] sm:$0xff]
    %v1659 = vld [vmem:[#allocation11 + $0x90] sm:$0xff]
    %v1660 = vld [vmem:[#allocation11 + $0x98] sm:$0xff]
    %v1661 = vld [vmem:[#allocation11 + $0xa0] sm:$0xff]
    %v1662 = vld [vmem:[#allocation11 + $0xa8] sm:$0xff]
    %v1663 = vld [vmem:[#allocation11 + $0xb0] sm:$0xff]
    %v1664 = vld [vmem:[#allocation11 + $0xb8] sm:$0xff]
    %v1665 = vld [vmem:[#allocation11 + $0xc0] sm:$0xff]
    %v1666 = vld [vmem:[#allocation11 + $0xc8] sm:$0xff]
    %v1667 = vld [vmem:[#allocation11 + $0xd0] sm:$0xff]
    %v1668 = vld [vmem:[#allocation11 + $0xd8] sm:$0xff]
    %v1669 = vld [vmem:[#allocation11 + $0xe0] sm:$0xff]
    %v1670 = vld [vmem:[#allocation11 + $0xe8] sm:$0xff]
    %v1671 = vld [vmem:[#allocation11 + $0xf0] sm:$0xff]
    %v1672 = vld [vmem:[#allocation11 + $0xf8] sm:$0xff]
    %v1673 = vld [vmem:[#allocation11 + $0x100] sm:$0xff]
    %v1674 = vld [vmem:[#allocation11 + $0x108] sm:$0xff]
    %v1675 = vld [vmem:[#allocation11 + $0x110] sm:$0xff]
    %v1676 = vld [vmem:[#allocation11 + $0x118] sm:$0xff]
    %v1677 = vld [vmem:[#allocation11 + $0x120] sm:$0xff]
    %v1678 = vld [vmem:[#allocation11 + $0x128] sm:$0xff]
    %v1679 = vld [vmem:[#allocation11 + $0x130] sm:$0xff]
    %v1680 = vld [vmem:[#allocation11 + $0x138] sm:$0xff]
    %v1681 = vld [vmem:[#allocation11 + $0x140] sm:$0xff]
    %v1682 = vld [vmem:[#allocation11 + $0x148] sm:$0xff]
    %v1683 = vld [vmem:[#allocation11 + $0x150] sm:$0xff]
    %v1684 = vld [vmem:[#allocation11 + $0x158] sm:$0xff]
    %v1685 = vld [vmem:[#allocation11 + $0x160] sm:$0xff]
    %v1686 = vld [vmem:[#allocation11 + $0x168] sm:$0xff]
    %v1687 = vld [vmem:[#allocation11 + $0x170] sm:$0xff]
    %v1688 = vld [vmem:[#allocation11 + $0x178] sm:$0xff]
    %v1689 = vld [vmem:[#allocation11 + $0x180] sm:$0xff]
    %v1690 = vld [vmem:[#allocation11 + $0x188] sm:$0xff]
    %v1691 = vld [vmem:[#allocation11 + $0x190] sm:$0xff]
    %v1692 = vld [vmem:[#allocation11 + $0x198] sm:$0xff]
    %v1693 = vld [vmem:[#allocation11 + $0x1a0] sm:$0xff]
    %v1694 = vld [vmem:[#allocation11 + $0x1a8] sm:$0xff]
    %v1695 = vld [vmem:[#allocation11 + $0x1b0] sm:$0xff]
    %v1696 = vld [vmem:[#allocation11 + $0x1b8] sm:$0xff]
    %v1697 = vld [vmem:[#allocation11 + $0x1c0] sm:$0xff]
    %v1698 = vld [vmem:[#allocation11 + $0x1c8] sm:$0xff]
    %v1699 = vld [vmem:[#allocation11 + $0x1d0] sm:$0xff]
    %v1700 = vld [vmem:[#allocation11 + $0x1d8] sm:$0xff]
    %v1701 = vld [vmem:[#allocation11 + $0x1e0] sm:$0xff]
    %v1702 = vld [vmem:[#allocation11 + $0x1e8] sm:$0xff]
    %v1703 = vld [vmem:[#allocation11 + $0x1f0] sm:$0xff]
    %v1704 = vld [vmem:[#allocation11 + $0x1f8] sm:$0xff]
    %s1705 = smul.u32 5, 4
    %s1706 = smul.addr %s1705, 8
    %s1707 = scalar_lea.vmem [#allocation4], %s1706
    %v1708 = vld [vmem:[%s1707] sm:$0xff]
    %v1709 = vld [vmem:[%s1707 + $0x8] sm:$0xff]
    %v1710 = vld [vmem:[%s1707 + $0x10] sm:$0xff]
    %v1711 = vld [vmem:[%s1707 + $0x18] sm:$0xff]
    %1712 = vmatprep.subr.mxu0 %v1642
    %1713 = vmatpush1.msra.mxu0 %v1641
    %1714 = vmatprep.subr.mxu0 %v1646
    %1715 = vmatpush1.msra.mxu0 %v1645
    %1716 = vmatprep.subr.mxu0 %v1650
    %1717 = vmatpush1.msra.mxu0 %v1649
    %1718 = vmatprep.subr.mxu0 %v1654
    %1719 = vmatpush1.msra.mxu0 %v1653
    %1720 = vmatprep.subr.mxu0 %v1658
    %1721 = vmatpush1.msra.mxu0 %v1657
    %1722 = vmatprep.subr.mxu0 %v1662
    %1723 = vmatpush1.msra.mxu0 %v1661
    %1724 = vmatprep.subr.mxu0 %v1666
    %1725 = vmatpush1.msra.mxu0 %v1665
    %1726 = vmatprep.subr.mxu0 %v1670
    %1727 = vmatpush1.msra.mxu0 %v1669
    %1728 = vmatprep.subr.mxu0 %v1674
    %1729 = vmatpush1.msra.mxu0 %v1673
    %1730 = vmatprep.subr.mxu0 %v1678
    %1731 = vmatpush1.msra.mxu0 %v1677
    %1732 = vmatprep.subr.mxu0 %v1682
    %1733 = vmatpush1.msra.mxu0 %v1681
    %1734 = vmatprep.subr.mxu0 %v1686
    %1735 = vmatpush1.msra.mxu0 %v1685
    %1736 = vmatprep.subr.mxu0 %v1690
    %1737 = vmatpush1.msra.mxu0 %v1689
    %1738 = vmatprep.subr.mxu0 %v1694
    %1739 = vmatpush1.msra.mxu0 %v1693
    %1740 = vmatprep.subr.mxu0 %v1698
    %1741 = vmatpush1.msra.mxu0 %v1697
    %1742 = vmatprep.subr.mxu0 %v1702
    %1743 = vmatpush1.msra.mxu0 %v1701
    %1744 = vmatprep.subr.mxu0 0.0
    %1745 = vmatpush1.msra.mxu0 0.0
    %1746 = vmatprep.subr.mxu0 0.0
    %1747 = vmatpush1.msra.mxu0 0.0
    %1748 = vmatprep.subr.mxu0 0.0
    %1749 = vmatpush1.msra.mxu0 0.0
    %1750 = vmatprep.subr.mxu0 0.0
    %1751 = vmatpush1.msra.mxu0 0.0
    %1752 = vmatprep.subr.mxu0 0.0
    %1753 = vmatpush1.msra.mxu0 0.0
    %1754 = vmatprep.subr.mxu0 0.0
    %1755 = vmatpush1.msra.mxu0 0.0
    %1756 = vmatprep.subr.mxu0 0.0
    %1757 = vmatpush1.msra.mxu0 0.0
    %1758 = vmatprep.subr.mxu0 0.0
    %1759 = vmatpush1.msra.mxu0 0.0
    %1760 = vmatprep.subr.mxu0 0.0
    %1761 = vmatpush1.msra.mxu0 0.0
    %1762 = vmatprep.subr.mxu0 0.0
    %1763 = vmatpush1.msra.mxu0 0.0
    %1764 = vmatprep.subr.mxu0 0.0
    %1765 = vmatpush1.msra.mxu0 0.0
    %1766 = vmatprep.subr.mxu0 0.0
    %1767 = vmatpush1.msra.mxu0 0.0
    %1768 = vmatprep.subr.mxu0 0.0
    %1769 = vmatpush1.msra.mxu0 0.0
    %1770 = vmatprep.subr.mxu0 0.0
    %1771 = vmatpush1.msra.mxu0 0.0
    %1772 = vmatprep.subr.mxu0 0.0
    %1773 = vmatpush1.msra.mxu0 0.0
    %1774 = vmatprep.subr.mxu0 0.0
    %1775 = vmatpush1.msra.mxu0 0.0
    %1776 = vmatprep.mubr.f32.mxu0 0.0
    %1777 = vmatmul.mubr.f32.gmra.mrb[0].mxu0 %v1638
    %v1778 = vpop.f32.mrb[0].mxu0
    %v1779 = vadd.f32 %v1708, %v1778
    %v1780 = vpop.f32.mrb[0].mxu0
    %v1781 = vadd.f32 %v1709, %v1780
    %1782 = vdwg.mxu0
    %1783 = vmatprep.subr.mxu0 %v1644
    %1784 = vmatpush1.msra.mxu0 %v1643
    %1785 = vmatprep.subr.mxu0 %v1648
    %1786 = vmatpush1.msra.mxu0 %v1647
    %1787 = vmatprep.subr.mxu0 %v1652
    %1788 = vmatpush1.msra.mxu0 %v1651
    %1789 = vmatprep.subr.mxu0 %v1656
    %1790 = vmatpush1.msra.mxu0 %v1655
    %1791 = vmatprep.subr.mxu0 %v1660
    %1792 = vmatpush1.msra.mxu0 %v1659
    %1793 = vmatprep.subr.mxu0 %v1664
    %1794 = vmatpush1.msra.mxu0 %v1663
    %1795 = vmatprep.subr.mxu0 %v1668
    %1796 = vmatpush1.msra.mxu0 %v1667
    %1797 = vmatprep.subr.mxu0 %v1672
    %1798 = vmatpush1.msra.mxu0 %v1671
    %1799 = vmatprep.subr.mxu0 %v1676
    %1800 = vmatpush1.msra.mxu0 %v1675
    %1801 = vmatprep.subr.mxu0 %v1680
    %1802 = vmatpush1.msra.mxu0 %v1679
    %1803 = vmatprep.subr.mxu0 %v1684
    %1804 = vmatpush1.msra.mxu0 %v1683
    %1805 = vmatprep.subr.mxu0 %v1688
    %1806 = vmatpush1.msra.mxu0 %v1687
    %1807 = vmatprep.subr.mxu0 %v1692
    %1808 = vmatpush1.msra.mxu0 %v1691
    %1809 = vmatprep.subr.mxu0 %v1696
    %1810 = vmatpush1.msra.mxu0 %v1695
    %1811 = vmatprep.subr.mxu0 %v1700
    %1812 = vmatpush1.msra.mxu0 %v1699
    %1813 = vmatprep.subr.mxu0 %v1704
    %1814 = vmatpush1.msra.mxu0 %v1703
    %1815 = vmatprep.subr.mxu0 0.0
    %1816 = vmatpush1.msra.mxu0 0.0
    %1817 = vmatprep.subr.mxu0 0.0
    %1818 = vmatpush1.msra.mxu0 0.0
    %1819 = vmatprep.subr.mxu0 0.0
    %1820 = vmatpush1.msra.mxu0 0.0
    %1821 = vmatprep.subr.mxu0 0.0
    %1822 = vmatpush1.msra.mxu0 0.0
    %1823 = vmatprep.subr.mxu0 0.0
    %1824 = vmatpush1.msra.mxu0 0.0
    %1825 = vmatprep.subr.mxu0 0.0
    %1826 = vmatpush1.msra.mxu0 0.0
    %1827 = vmatprep.subr.mxu0 0.0
    %1828 = vmatpush1.msra.mxu0 0.0
    %1829 = vmatprep.subr.mxu0 0.0
    %1830 = vmatpush1.msra.mxu0 0.0
    %1831 = vmatprep.subr.mxu0 0.0
    %1832 = vmatpush1.msra.mxu0 0.0
    %1833 = vmatprep.subr.mxu0 0.0
    %1834 = vmatpush1.msra.mxu0 0.0
    %1835 = vmatprep.subr.mxu0 0.0
    %1836 = vmatpush1.msra.mxu0 0.0
    %1837 = vmatprep.subr.mxu0 0.0
    %1838 = vmatpush1.msra.mxu0 0.0
    %1839 = vmatprep.subr.mxu0 0.0
    %1840 = vmatpush1.msra.mxu0 0.0
    %1841 = vmatprep.subr.mxu0 0.0
    %1842 = vmatpush1.msra.mxu0 0.0
    %1843 = vmatprep.subr.mxu0 0.0
    %1844 = vmatpush1.msra.mxu0 0.0
    %1845 = vmatprep.subr.mxu0 0.0
    %1846 = vmatpush1.msra.mxu0 0.0
    %1847 = vmatprep.mubr.f32.mxu0 0.0
    %1848 = vmatmul.mubr.f32.gmra.mrb[0].mxu0 %v1638
    %v1849 = vpop.f32.mrb[0].mxu0
    %v1850 = vadd.f32 %v1710, %v1849
    %v1851 = vpop.f32.mrb[0].mxu0
    %v1852 = vadd.f32 %v1711, %v1851
    %1853 = vdwg.mxu0
    %v1854 = vxor.u32 %v1779, 2147483648
    %v1855 = vmul.f32 %v1854, 1.442695
    %v1856 = vpow.pop %v1855
    %v1857 = vadd.f32 %v1856, 1.0
    %v1858 = vrcp.pop %v1857
    %v1859 = vmul.f32 1.0, %v1858
    %v1860 = vxor.u32 %v1781, 2147483648
    %v1861 = vmul.f32 %v1860, 1.442695
    %v1862 = vpow.pop %v1861
    %v1863 = vadd.f32 %v1862, 1.0
    %v1864 = vrcp.pop %v1863
    %v1865 = vmul.f32 1.0, %v1864
    %v1866 = vtanh.pop %v1850
    %v1867 = vxor.u32 %v1852, 2147483648
    %v1868 = vmul.f32 %v1867, 1.442695
    %v1869 = vpow.pop %v1868
    %v1870 = vadd.f32 %v1869, 1.0
    %v1871 = vrcp.pop %v1870
    %v1872 = vmul.f32 1.0, %v1871
    %v1873 = vmul.f32 %v1865, %v1636
    %v1874 = vmul.f32 %v1859, %v1866
    %v1875 = vadd.f32 %v1873, %v1874
    %v1876 = vtanh.pop %v1875
    %v1877 = vmul.f32 %v1872, %v1876
    %s1878 = scalar_lea.vmem [#allocation5], 40
    %1879 = vst [vmem:[%s1878] sm:$0xff] %v1877
    %v1880 = vld [vmem:[#allocation11] sm:$0xff]
    %v1881 = vld [vmem:[#allocation11 + $0x8] sm:$0xff]
    %v1882 = vld [vmem:[#allocation11 + $0x10] sm:$0xff]
    %v1883 = vld [vmem:[#allocation11 + $0x18] sm:$0xff]
    %v1884 = vld [vmem:[#allocation11 + $0x20] sm:$0xff]
    %v1885 = vld [vmem:[#allocation11 + $0x28] sm:$0xff]
    %v1886 = vld [vmem:[#allocation11 + $0x30] sm:$0xff]
    %v1887 = vld [vmem:[#allocation11 + $0x38] sm:$0xff]
    %v1888 = vld [vmem:[#allocation11 + $0x40] sm:$0xff]
    %v1889 = vld [vmem:[#allocation11 + $0x48] sm:$0xff]
    %v1890 = vld [vmem:[#allocation11 + $0x50] sm:$0xff]
    %v1891 = vld [vmem:[#allocation11 + $0x58] sm:$0xff]
    %v1892 = vld [vmem:[#allocation11 + $0x60] sm:$0xff]
    %v1893 = vld [vmem:[#allocation11 + $0x68] sm:$0xff]
    %v1894 = vld [vmem:[#allocation11 + $0x70] sm:$0xff]
    %v1895 = vld [vmem:[#allocation11 + $0x78] sm:$0xff]
    %v1896 = vld [vmem:[#allocation11 + $0x80] sm:$0xff]
    %v1897 = vld [vmem:[#allocation11 + $0x88] sm:$0xff]
    %v1898 = vld [vmem:[#allocation11 + $0x90] sm:$0xff]
    %v1899 = vld [vmem:[#allocation11 + $0x98] sm:$0xff]
    %v1900 = vld [vmem:[#allocation11 + $0xa0] sm:$0xff]
    %v1901 = vld [vmem:[#allocation11 + $0xa8] sm:$0xff]
    %v1902 = vld [vmem:[#allocation11 + $0xb0] sm:$0xff]
    %v1903 = vld [vmem:[#allocation11 + $0xb8] sm:$0xff]
    %v1904 = vld [vmem:[#allocation11 + $0xc0] sm:$0xff]
    %v1905 = vld [vmem:[#allocation11 + $0xc8] sm:$0xff]
    %v1906 = vld [vmem:[#allocation11 + $0xd0] sm:$0xff]
    %v1907 = vld [vmem:[#allocation11 + $0xd8] sm:$0xff]
    %v1908 = vld [vmem:[#allocation11 + $0xe0] sm:$0xff]
    %v1909 = vld [vmem:[#allocation11 + $0xe8] sm:$0xff]
    %v1910 = vld [vmem:[#allocation11 + $0xf0] sm:$0xff]
    %v1911 = vld [vmem:[#allocation11 + $0xf8] sm:$0xff]
    %v1912 = vld [vmem:[#allocation11 + $0x100] sm:$0xff]
    %v1913 = vld [vmem:[#allocation11 + $0x108] sm:$0xff]
    %v1914 = vld [vmem:[#allocation11 + $0x110] sm:$0xff]
    %v1915 = vld [vmem:[#allocation11 + $0x118] sm:$0xff]
    %v1916 = vld [vmem:[#allocation11 + $0x120] sm:$0xff]
    %v1917 = vld [vmem:[#allocation11 + $0x128] sm:$0xff]
    %v1918 = vld [vmem:[#allocation11 + $0x130] sm:$0xff]
    %v1919 = vld [vmem:[#allocation11 + $0x138] sm:$0xff]
    %v1920 = vld [vmem:[#allocation11 + $0x140] sm:$0xff]
    %v1921 = vld [vmem:[#allocation11 + $0x148] sm:$0xff]
    %v1922 = vld [vmem:[#allocation11 + $0x150] sm:$0xff]
    %v1923 = vld [vmem:[#allocation11 + $0x158] sm:$0xff]
    %v1924 = vld [vmem:[#allocation11 + $0x160] sm:$0xff]
    %v1925 = vld [vmem:[#allocation11 + $0x168] sm:$0xff]
    %v1926 = vld [vmem:[#allocation11 + $0x170] sm:$0xff]
    %v1927 = vld [vmem:[#allocation11 + $0x178] sm:$0xff]
    %v1928 = vld [vmem:[#allocation11 + $0x180] sm:$0xff]
    %v1929 = vld [vmem:[#allocation11 + $0x188] sm:$0xff]
    %v1930 = vld [vmem:[#allocation11 + $0x190] sm:$0xff]
    %v1931 = vld [vmem:[#allocation11 + $0x198] sm:$0xff]
    %v1932 = vld [vmem:[#allocation11 + $0x1a0] sm:$0xff]
    %v1933 = vld [vmem:[#allocation11 + $0x1a8] sm:$0xff]
    %v1934 = vld [vmem:[#allocation11 + $0x1b0] sm:$0xff]
    %v1935 = vld [vmem:[#allocation11 + $0x1b8] sm:$0xff]
    %v1936 = vld [vmem:[#allocation11 + $0x1c0] sm:$0xff]
    %v1937 = vld [vmem:[#allocation11 + $0x1c8] sm:$0xff]
    %v1938 = vld [vmem:[#allocation11 + $0x1d0] sm:$0xff]
    %v1939 = vld [vmem:[#allocation11 + $0x1d8] sm:$0xff]
    %v1940 = vld [vmem:[#allocation11 + $0x1e0] sm:$0xff]
    %v1941 = vld [vmem:[#allocation11 + $0x1e8] sm:$0xff]
    %v1942 = vld [vmem:[#allocation11 + $0x1f0] sm:$0xff]
    %v1943 = vld [vmem:[#allocation11 + $0x1f8] sm:$0xff]
    %s1944 = smul.u32 6, 4
    %s1945 = smul.addr %s1944, 8
    %s1946 = scalar_lea.vmem [#allocation4], %s1945
    %v1947 = vld [vmem:[%s1946] sm:$0xff]
    %v1948 = vld [vmem:[%s1946 + $0x8] sm:$0xff]
    %v1949 = vld [vmem:[%s1946 + $0x10] sm:$0xff]
    %v1950 = vld [vmem:[%s1946 + $0x18] sm:$0xff]
    %1951 = vmatprep.subr.mxu0 %v1881
    %1952 = vmatpush1.msra.mxu0 %v1880
    %1953 = vmatprep.subr.mxu0 %v1885
    %1954 = vmatpush1.msra.mxu0 %v1884
    %1955 = vmatprep.subr.mxu0 %v1889
    %1956 = vmatpush1.msra.mxu0 %v1888
    %1957 = vmatprep.subr.mxu0 %v1893
    %1958 = vmatpush1.msra.mxu0 %v1892
    %1959 = vmatprep.subr.mxu0 %v1897
    %1960 = vmatpush1.msra.mxu0 %v1896
    %1961 = vmatprep.subr.mxu0 %v1901
    %1962 = vmatpush1.msra.mxu0 %v1900
    %1963 = vmatprep.subr.mxu0 %v1905
    %1964 = vmatpush1.msra.mxu0 %v1904
    %1965 = vmatprep.subr.mxu0 %v1909
    %1966 = vmatpush1.msra.mxu0 %v1908
    %1967 = vmatprep.subr.mxu0 %v1913
    %1968 = vmatpush1.msra.mxu0 %v1912
    %1969 = vmatprep.subr.mxu0 %v1917
    %1970 = vmatpush1.msra.mxu0 %v1916
    %1971 = vmatprep.subr.mxu0 %v1921
    %1972 = vmatpush1.msra.mxu0 %v1920
    %1973 = vmatprep.subr.mxu0 %v1925
    %1974 = vmatpush1.msra.mxu0 %v1924
    %1975 = vmatprep.subr.mxu0 %v1929
    %1976 = vmatpush1.msra.mxu0 %v1928
    %1977 = vmatprep.subr.mxu0 %v1933
    %1978 = vmatpush1.msra.mxu0 %v1932
    %1979 = vmatprep.subr.mxu0 %v1937
    %1980 = vmatpush1.msra.mxu0 %v1936
    %1981 = vmatprep.subr.mxu0 %v1941
    %1982 = vmatpush1.msra.mxu0 %v1940
    %1983 = vmatprep.subr.mxu0 0.0
    %1984 = vmatpush1.msra.mxu0 0.0
    %1985 = vmatprep.subr.mxu0 0.0
    %1986 = vmatpush1.msra.mxu0 0.0
    %1987 = vmatprep.subr.mxu0 0.0
    %1988 = vmatpush1.msra.mxu0 0.0
    %1989 = vmatprep.subr.mxu0 0.0
    %1990 = vmatpush1.msra.mxu0 0.0
    %1991 = vmatprep.subr.mxu0 0.0
    %1992 = vmatpush1.msra.mxu0 0.0
    %1993 = vmatprep.subr.mxu0 0.0
    %1994 = vmatpush1.msra.mxu0 0.0
    %1995 = vmatprep.subr.mxu0 0.0
    %1996 = vmatpush1.msra.mxu0 0.0
    %1997 = vmatprep.subr.mxu0 0.0
    %1998 = vmatpush1.msra.mxu0 0.0
    %1999 = vmatprep.subr.mxu0 0.0
    %2000 = vmatpush1.msra.mxu0 0.0
    %2001 = vmatprep.subr.mxu0 0.0
    %2002 = vmatpush1.msra.mxu0 0.0
    %2003 = vmatprep.subr.mxu0 0.0
    %2004 = vmatpush1.msra.mxu0 0.0
    %2005 = vmatprep.subr.mxu0 0.0
    %2006 = vmatpush1.msra.mxu0 0.0
    %2007 = vmatprep.subr.mxu0 0.0
    %2008 = vmatpush1.msra.mxu0 0.0
    %2009 = vmatprep.subr.mxu0 0.0
    %2010 = vmatpush1.msra.mxu0 0.0
    %2011 = vmatprep.subr.mxu0 0.0
    %2012 = vmatpush1.msra.mxu0 0.0
    %2013 = vmatprep.subr.mxu0 0.0
    %2014 = vmatpush1.msra.mxu0 0.0
    %2015 = vmatprep.mubr.f32.mxu0 0.0
    %2016 = vmatmul.mubr.f32.gmra.mrb[0].mxu0 %v1877
    %v2017 = vpop.f32.mrb[0].mxu0
    %v2018 = vadd.f32 %v1947, %v2017
    %v2019 = vpop.f32.mrb[0].mxu0
    %v2020 = vadd.f32 %v1948, %v2019
    %2021 = vdwg.mxu0
    %2022 = vmatprep.subr.mxu0 %v1883
    %2023 = vmatpush1.msra.mxu0 %v1882
    %2024 = vmatprep.subr.mxu0 %v1887
    %2025 = vmatpush1.msra.mxu0 %v1886
    %2026 = vmatprep.subr.mxu0 %v1891
    %2027 = vmatpush1.msra.mxu0 %v1890
    %2028 = vmatprep.subr.mxu0 %v1895
    %2029 = vmatpush1.msra.mxu0 %v1894
    %2030 = vmatprep.subr.mxu0 %v1899
    %2031 = vmatpush1.msra.mxu0 %v1898
    %2032 = vmatprep.subr.mxu0 %v1903
    %2033 = vmatpush1.msra.mxu0 %v1902
    %2034 = vmatprep.subr.mxu0 %v1907
    %2035 = vmatpush1.msra.mxu0 %v1906
    %2036 = vmatprep.subr.mxu0 %v1911
    %2037 = vmatpush1.msra.mxu0 %v1910
    %2038 = vmatprep.subr.mxu0 %v1915
    %2039 = vmatpush1.msra.mxu0 %v1914
    %2040 = vmatprep.subr.mxu0 %v1919
    %2041 = vmatpush1.msra.mxu0 %v1918
    %2042 = vmatprep.subr.mxu0 %v1923
    %2043 = vmatpush1.msra.mxu0 %v1922
    %2044 = vmatprep.subr.mxu0 %v1927
    %2045 = vmatpush1.msra.mxu0 %v1926
    %2046 = vmatprep.subr.mxu0 %v1931
    %2047 = vmatpush1.msra.mxu0 %v1930
    %2048 = vmatprep.subr.mxu0 %v1935
    %2049 = vmatpush1.msra.mxu0 %v1934
    %2050 = vmatprep.subr.mxu0 %v1939
    %2051 = vmatpush1.msra.mxu0 %v1938
    %2052 = vmatprep.subr.mxu0 %v1943
    %2053 = vmatpush1.msra.mxu0 %v1942
    %2054 = vmatprep.subr.mxu0 0.0
    %2055 = vmatpush1.msra.mxu0 0.0
    %2056 = vmatprep.subr.mxu0 0.0
    %2057 = vmatpush1.msra.mxu0 0.0
    %2058 = vmatprep.subr.mxu0 0.0
    %2059 = vmatpush1.msra.mxu0 0.0
    %2060 = vmatprep.subr.mxu0 0.0
    %2061 = vmatpush1.msra.mxu0 0.0
    %2062 = vmatprep.subr.mxu0 0.0
    %2063 = vmatpush1.msra.mxu0 0.0
    %2064 = vmatprep.subr.mxu0 0.0
    %2065 = vmatpush1.msra.mxu0 0.0
    %2066 = vmatprep.subr.mxu0 0.0
    %2067 = vmatpush1.msra.mxu0 0.0
    %2068 = vmatprep.subr.mxu0 0.0
    %2069 = vmatpush1.msra.mxu0 0.0
    %2070 = vmatprep.subr.mxu0 0.0
    %2071 = vmatpush1.msra.mxu0 0.0
    %2072 = vmatprep.subr.mxu0 0.0
    %2073 = vmatpush1.msra.mxu0 0.0
    %2074 = vmatprep.subr.mxu0 0.0
    %2075 = vmatpush1.msra.mxu0 0.0
    %2076 = vmatprep.subr.mxu0 0.0
    %2077 = vmatpush1.msra.mxu0 0.0
    %2078 = vmatprep.subr.mxu0 0.0
    %2079 = vmatpush1.msra.mxu0 0.0
    %2080 = vmatprep.subr.mxu0 0.0
    %2081 = vmatpush1.msra.mxu0 0.0
    %2082 = vmatprep.subr.mxu0 0.0
    %2083 = vmatpush1.msra.mxu0 0.0
    %2084 = vmatprep.subr.mxu0 0.0
    %2085 = vmatpush1.msra.mxu0 0.0
    %2086 = vmatprep.mubr.f32.mxu0 0.0
    %2087 = vmatmul.mubr.f32.gmra.mrb[0].mxu0 %v1877
    %v2088 = vpop.f32.mrb[0].mxu0
    %v2089 = vadd.f32 %v1949, %v2088
    %v2090 = vpop.f32.mrb[0].mxu0
    %v2091 = vadd.f32 %v1950, %v2090
    %2092 = vdwg.mxu0
    %v2093 = vxor.u32 %v2018, 2147483648
    %v2094 = vmul.f32 %v2093, 1.442695
    %v2095 = vpow.pop %v2094
    %v2096 = vadd.f32 %v2095, 1.0
    %v2097 = vrcp.pop %v2096
    %v2098 = vmul.f32 1.0, %v2097
    %v2099 = vxor.u32 %v2020, 2147483648
    %v2100 = vmul.f32 %v2099, 1.442695
    %v2101 = vpow.pop %v2100
    %v2102 = vadd.f32 %v2101, 1.0
    %v2103 = vrcp.pop %v2102
    %v2104 = vmul.f32 1.0, %v2103
    %v2105 = vtanh.pop %v2089
    %v2106 = vxor.u32 %v2091, 2147483648
    %v2107 = vmul.f32 %v2106, 1.442695
    %v2108 = vpow.pop %v2107
    %v2109 = vadd.f32 %v2108, 1.0
    %v2110 = vrcp.pop %v2109
    %v2111 = vmul.f32 1.0, %v2110
    %v2112 = vmul.f32 %v2104, %v1875
    %v2113 = vmul.f32 %v2098, %v2105
    %v2114 = vadd.f32 %v2112, %v2113
    %v2115 = vtanh.pop %v2114
    %v2116 = vmul.f32 %v2111, %v2115
    %s2117 = scalar_lea.vmem [#allocation5], 48
    %2118 = vst [vmem:[%s2117] sm:$0xff] %v2116
    %v2119 = vld [vmem:[#allocation11] sm:$0xff]
    %v2120 = vld [vmem:[#allocation11 + $0x8] sm:$0xff]
    %v2121 = vld [vmem:[#allocation11 + $0x10] sm:$0xff]
    %v2122 = vld [vmem:[#allocation11 + $0x18] sm:$0xff]
    %v2123 = vld [vmem:[#allocation11 + $0x20] sm:$0xff]
    %v2124 = vld [vmem:[#allocation11 + $0x28] sm:$0xff]
    %v2125 = vld [vmem:[#allocation11 + $0x30] sm:$0xff]
    %v2126 = vld [vmem:[#allocation11 + $0x38] sm:$0xff]
    %v2127 = vld [vmem:[#allocation11 + $0x40] sm:$0xff]
    %v2128 = vld [vmem:[#allocation11 + $0x48] sm:$0xff]
    %v2129 = vld [vmem:[#allocation11 + $0x50] sm:$0xff]
    %v2130 = vld [vmem:[#allocation11 + $0x58] sm:$0xff]
    %v2131 = vld [vmem:[#allocation11 + $0x60] sm:$0xff]
    %v2132 = vld [vmem:[#allocation11 + $0x68] sm:$0xff]
    %v2133 = vld [vmem:[#allocation11 + $0x70] sm:$0xff]
    %v2134 = vld [vmem:[#allocation11 + $0x78] sm:$0xff]
    %v2135 = vld [vmem:[#allocation11 + $0x80] sm:$0xff]
    %v2136 = vld [vmem:[#allocation11 + $0x88] sm:$0xff]
    %v2137 = vld [vmem:[#allocation11 + $0x90] sm:$0xff]
    %v2138 = vld [vmem:[#allocation11 + $0x98] sm:$0xff]
    %v2139 = vld [vmem:[#allocation11 + $0xa0] sm:$0xff]
    %v2140 = vld [vmem:[#allocation11 + $0xa8] sm:$0xff]
    %v2141 = vld [vmem:[#allocation11 + $0xb0] sm:$0xff]
    %v2142 = vld [vmem:[#allocation11 + $0xb8] sm:$0xff]
    %v2143 = vld [vmem:[#allocation11 + $0xc0] sm:$0xff]
    %v2144 = vld [vmem:[#allocation11 + $0xc8] sm:$0xff]
    %v2145 = vld [vmem:[#allocation11 + $0xd0] sm:$0xff]
    %v2146 = vld [vmem:[#allocation11 + $0xd8] sm:$0xff]
    %v2147 = vld [vmem:[#allocation11 + $0xe0] sm:$0xff]
    %v2148 = vld [vmem:[#allocation11 + $0xe8] sm:$0xff]
    %v2149 = vld [vmem:[#allocation11 + $0xf0] sm:$0xff]
    %v2150 = vld [vmem:[#allocation11 + $0xf8] sm:$0xff]
    %v2151 = vld [vmem:[#allocation11 + $0x100] sm:$0xff]
    %v2152 = vld [vmem:[#allocation11 + $0x108] sm:$0xff]
    %v2153 = vld [vmem:[#allocation11 + $0x110] sm:$0xff]
    %v2154 = vld [vmem:[#allocation11 + $0x118] sm:$0xff]
    %v2155 = vld [vmem:[#allocation11 + $0x120] sm:$0xff]
    %v2156 = vld [vmem:[#allocation11 + $0x128] sm:$0xff]
    %v2157 = vld [vmem:[#allocation11 + $0x130] sm:$0xff]
    %v2158 = vld [vmem:[#allocation11 + $0x138] sm:$0xff]
    %v2159 = vld [vmem:[#allocation11 + $0x140] sm:$0xff]
    %v2160 = vld [vmem:[#allocation11 + $0x148] sm:$0xff]
    %v2161 = vld [vmem:[#allocation11 + $0x150] sm:$0xff]
    %v2162 = vld [vmem:[#allocation11 + $0x158] sm:$0xff]
    %v2163 = vld [vmem:[#allocation11 + $0x160] sm:$0xff]
    %v2164 = vld [vmem:[#allocation11 + $0x168] sm:$0xff]
    %v2165 = vld [vmem:[#allocation11 + $0x170] sm:$0xff]
    %v2166 = vld [vmem:[#allocation11 + $0x178] sm:$0xff]
    %v2167 = vld [vmem:[#allocation11 + $0x180] sm:$0xff]
    %v2168 = vld [vmem:[#allocation11 + $0x188] sm:$0xff]
    %v2169 = vld [vmem:[#allocation11 + $0x190] sm:$0xff]
    %v2170 = vld [vmem:[#allocation11 + $0x198] sm:$0xff]
    %v2171 = vld [vmem:[#allocation11 + $0x1a0] sm:$0xff]
    %v2172 = vld [vmem:[#allocation11 + $0x1a8] sm:$0xff]
    %v2173 = vld [vmem:[#allocation11 + $0x1b0] sm:$0xff]
    %v2174 = vld [vmem:[#allocation11 + $0x1b8] sm:$0xff]
    %v2175 = vld [vmem:[#allocation11 + $0x1c0] sm:$0xff]
    %v2176 = vld [vmem:[#allocation11 + $0x1c8] sm:$0xff]
    %v2177 = vld [vmem:[#allocation11 + $0x1d0] sm:$0xff]
    %v2178 = vld [vmem:[#allocation11 + $0x1d8] sm:$0xff]
    %v2179 = vld [vmem:[#allocation11 + $0x1e0] sm:$0xff]
    %v2180 = vld [vmem:[#allocation11 + $0x1e8] sm:$0xff]
    %v2181 = vld [vmem:[#allocation11 + $0x1f0] sm:$0xff]
    %v2182 = vld [vmem:[#allocation11 + $0x1f8] sm:$0xff]
    %s2183 = smul.u32 7, 4
    %s2184 = smul.addr %s2183, 8
    %s2185 = scalar_lea.vmem [#allocation4], %s2184
    %v2186 = vld [vmem:[%s2185] sm:$0xff]
    %v2187 = vld [vmem:[%s2185 + $0x8] sm:$0xff]
    %v2188 = vld [vmem:[%s2185 + $0x10] sm:$0xff]
    %v2189 = vld [vmem:[%s2185 + $0x18] sm:$0xff]
    %2190 = vmatprep.subr.mxu0 %v2120
    %2191 = vmatpush1.msra.mxu0 %v2119
    %2192 = vmatprep.subr.mxu0 %v2124
    %2193 = vmatpush1.msra.mxu0 %v2123
    %2194 = vmatprep.subr.mxu0 %v2128
    %2195 = vmatpush1.msra.mxu0 %v2127
    %2196 = vmatprep.subr.mxu0 %v2132
    %2197 = vmatpush1.msra.mxu0 %v2131
    %2198 = vmatprep.subr.mxu0 %v2136
    %2199 = vmatpush1.msra.mxu0 %v2135
    %2200 = vmatprep.subr.mxu0 %v2140
    %2201 = vmatpush1.msra.mxu0 %v2139
    %2202 = vmatprep.subr.mxu0 %v2144
    %2203 = vmatpush1.msra.mxu0 %v2143
    %2204 = vmatprep.subr.mxu0 %v2148
    %2205 = vmatpush1.msra.mxu0 %v2147
    %2206 = vmatprep.subr.mxu0 %v2152
    %2207 = vmatpush1.msra.mxu0 %v2151
    %2208 = vmatprep.subr.mxu0 %v2156
    %2209 = vmatpush1.msra.mxu0 %v2155
    %2210 = vmatprep.subr.mxu0 %v2160
    %2211 = vmatpush1.msra.mxu0 %v2159
    %2212 = vmatprep.subr.mxu0 %v2164
    %2213 = vmatpush1.msra.mxu0 %v2163
    %2214 = vmatprep.subr.mxu0 %v2168
    %2215 = vmatpush1.msra.mxu0 %v2167
    %2216 = vmatprep.subr.mxu0 %v2172
    %2217 = vmatpush1.msra.mxu0 %v2171
    %2218 = vmatprep.subr.mxu0 %v2176
    %2219 = vmatpush1.msra.mxu0 %v2175
    %2220 = vmatprep.subr.mxu0 %v2180
    %2221 = vmatpush1.msra.mxu0 %v2179
    %2222 = vmatprep.subr.mxu0 0.0
    %2223 = vmatpush1.msra.mxu0 0.0
    %2224 = vmatprep.subr.mxu0 0.0
    %2225 = vmatpush1.msra.mxu0 0.0
    %2226 = vmatprep.subr.mxu0 0.0
    %2227 = vmatpush1.msra.mxu0 0.0
    %2228 = vmatprep.subr.mxu0 0.0
    %2229 = vmatpush1.msra.mxu0 0.0
    %2230 = vmatprep.subr.mxu0 0.0
    %2231 = vmatpush1.msra.mxu0 0.0
    %2232 = vmatprep.subr.mxu0 0.0
    %2233 = vmatpush1.msra.mxu0 0.0
    %2234 = vmatprep.subr.mxu0 0.0
    %2235 = vmatpush1.msra.mxu0 0.0
    %2236 = vmatprep.subr.mxu0 0.0
    %2237 = vmatpush1.msra.mxu0 0.0
    %2238 = vmatprep.subr.mxu0 0.0
    %2239 = vmatpush1.msra.mxu0 0.0
    %2240 = vmatprep.subr.mxu0 0.0
    %2241 = vmatpush1.msra.mxu0 0.0
    %2242 = vmatprep.subr.mxu0 0.0
    %2243 = vmatpush1.msra.mxu0 0.0
    %2244 = vmatprep.subr.mxu0 0.0
    %2245 = vmatpush1.msra.mxu0 0.0
    %2246 = vmatprep.subr.mxu0 0.0
    %2247 = vmatpush1.msra.mxu0 0.0
    %2248 = vmatprep.subr.mxu0 0.0
    %2249 = vmatpush1.msra.mxu0 0.0
    %2250 = vmatprep.subr.mxu0 0.0
    %2251 = vmatpush1.msra.mxu0 0.0
    %2252 = vmatprep.subr.mxu0 0.0
    %2253 = vmatpush1.msra.mxu0 0.0
    %2254 = vmatprep.mubr.f32.mxu0 0.0
    %2255 = vmatmul.mubr.f32.gmra.mrb[0].mxu0 %v2116
    %v2256 = vpop.f32.mrb[0].mxu0
    %v2257 = vadd.f32 %v2186, %v2256
    %v2258 = vpop.f32.mrb[0].mxu0
    %v2259 = vadd.f32 %v2187, %v2258
    %2260 = vdwg.mxu0
    %2261 = vmatprep.subr.mxu0 %v2122
    %2262 = vmatpush1.msra.mxu0 %v2121
    %2263 = vmatprep.subr.mxu0 %v2126
    %2264 = vmatpush1.msra.mxu0 %v2125
    %2265 = vmatprep.subr.mxu0 %v2130
    %2266 = vmatpush1.msra.mxu0 %v2129
    %2267 = vmatprep.subr.mxu0 %v2134
    %2268 = vmatpush1.msra.mxu0 %v2133
    %2269 = vmatprep.subr.mxu0 %v2138
    %2270 = vmatpush1.msra.mxu0 %v2137
    %2271 = vmatprep.subr.mxu0 %v2142
    %2272 = vmatpush1.msra.mxu0 %v2141
    %2273 = vmatprep.subr.mxu0 %v2146
    %2274 = vmatpush1.msra.mxu0 %v2145
    %2275 = vmatprep.subr.mxu0 %v2150
    %2276 = vmatpush1.msra.mxu0 %v2149
    %2277 = vmatprep.subr.mxu0 %v2154
    %2278 = vmatpush1.msra.mxu0 %v2153
    %2279 = vmatprep.subr.mxu0 %v2158
    %2280 = vmatpush1.msra.mxu0 %v2157
    %2281 = vmatprep.subr.mxu0 %v2162
    %2282 = vmatpush1.msra.mxu0 %v2161
    %2283 = vmatprep.subr.mxu0 %v2166
    %2284 = vmatpush1.msra.mxu0 %v2165
    %2285 = vmatprep.subr.mxu0 %v2170
    %2286 = vmatpush1.msra.mxu0 %v2169
    %2287 = vmatprep.subr.mxu0 %v2174
    %2288 = vmatpush1.msra.mxu0 %v2173
    %2289 = vmatprep.subr.mxu0 %v2178
    %2290 = vmatpush1.msra.mxu0 %v2177
    %2291 = vmatprep.subr.mxu0 %v2182
    %2292 = vmatpush1.msra.mxu0 %v2181
    %2293 = vmatprep.subr.mxu0 0.0
    %2294 = vmatpush1.msra.mxu0 0.0
    %2295 = vmatprep.subr.mxu0 0.0
    %2296 = vmatpush1.msra.mxu0 0.0
    %2297 = vmatprep.subr.mxu0 0.0
    %2298 = vmatpush1.msra.mxu0 0.0
    %2299 = vmatprep.subr.mxu0 0.0
    %2300 = vmatpush1.msra.mxu0 0.0
    %2301 = vmatprep.subr.mxu0 0.0
    %2302 = vmatpush1.msra.mxu0 0.0
    %2303 = vmatprep.subr.mxu0 0.0
    %2304 = vmatpush1.msra.mxu0 0.0
    %2305 = vmatprep.subr.mxu0 0.0
    %2306 = vmatpush1.msra.mxu0 0.0
    %2307 = vmatprep.subr.mxu0 0.0
    %2308 = vmatpush1.msra.mxu0 0.0
    %2309 = vmatprep.subr.mxu0 0.0
    %2310 = vmatpush1.msra.mxu0 0.0
    %2311 = vmatprep.subr.mxu0 0.0
    %2312 = vmatpush1.msra.mxu0 0.0
    %2313 = vmatprep.subr.mxu0 0.0
    %2314 = vmatpush1.msra.mxu0 0.0
    %2315 = vmatprep.subr.mxu0 0.0
    %2316 = vmatpush1.msra.mxu0 0.0
    %2317 = vmatprep.subr.mxu0 0.0
    %2318 = vmatpush1.msra.mxu0 0.0
    %2319 = vmatprep.subr.mxu0 0.0
    %2320 = vmatpush1.msra.mxu0 0.0
    %2321 = vmatprep.subr.mxu0 0.0
    %2322 = vmatpush1.msra.mxu0 0.0
    %2323 = vmatprep.subr.mxu0 0.0
    %2324 = vmatpush1.msra.mxu0 0.0
    %2325 = vmatprep.mubr.f32.mxu0 0.0
    %2326 = vmatmul.mubr.f32.gmra.mrb[0].mxu0 %v2116
    %v2327 = vpop.f32.mrb[0].mxu0
    %v2328 = vadd.f32 %v2188, %v2327
    %v2329 = vpop.f32.mrb[0].mxu0
    %v2330 = vadd.f32 %v2189, %v2329
    %2331 = vdwg.mxu0
    %v2332 = vxor.u32 %v2257, 2147483648
    %v2333 = vmul.f32 %v2332, 1.442695
    %v2334 = vpow.pop %v2333
    %v2335 = vadd.f32 %v2334, 1.0
    %v2336 = vrcp.pop %v2335
    %v2337 = vmul.f32 1.0, %v2336
    %v2338 = vxor.u32 %v2259, 2147483648
    %v2339 = vmul.f32 %v2338, 1.442695
    %v2340 = vpow.pop %v2339
    %v2341 = vadd.f32 %v2340, 1.0
    %v2342 = vrcp.pop %v2341
    %v2343 = vmul.f32 1.0, %v2342
    %v2344 = vtanh.pop %v2328
    %v2345 = vxor.u32 %v2330, 2147483648
    %v2346 = vmul.f32 %v2345, 1.442695
    %v2347 = vpow.pop %v2346
    %v2348 = vadd.f32 %v2347, 1.0
    %v2349 = vrcp.pop %v2348
    %v2350 = vmul.f32 1.0, %v2349
    %v2351 = vmul.f32 %v2343, %v2114
    %v2352 = vmul.f32 %v2337, %v2344
    %v2353 = vadd.f32 %v2351, %v2352
    %v2354 = vtanh.pop %v2353
    %v2355 = vmul.f32 %v2350, %v2354
    %s2356 = scalar_lea.vmem [#allocation5], 56
    %2357 = vst [vmem:[%s2356] sm:$0xff] %v2355
    %2358 = vst [vmem:[#allocation2] sm:$0xff] %v2355
    %2359 = vst [vmem:[#allocation3] sm:$0xff] %v2353
    %v2360 = vld [vmem:[#allocation5] sm:$0xff]
    %v2361 = vld [vmem:[#allocation5 + $0x8] sm:$0xff]
    %v2362 = vld [vmem:[#allocation5 + $0x10] sm:$0xff]
    %v2363 = vld [vmem:[#allocation5 + $0x18] sm:$0xff]
    %v2364 = vld [vmem:[#allocation5 + $0x20] sm:$0xff]
    %v2365 = vld [vmem:[#allocation5 + $0x28] sm:$0xff]
    %v2366 = vld [vmem:[#allocation5 + $0x30] sm:$0xff]
    %v2367 = vld [vmem:[#allocation5 + $0x38] sm:$0xff]
    %v2368 = vld [vmem:[#allocation12] sm:$0xff]
    %v2369 = vld [vmem:[#allocation12 + $0x8] sm:$0xff]
    %v2370 = vld [vmem:[#allocation12 + $0x10] sm:$0xff]
    %v2371 = vld [vmem:[#allocation12 + $0x18] sm:$0xff]
    %v2372 = vld [vmem:[#allocation12 + $0x20] sm:$0xff]
    %v2373 = vld [vmem:[#allocation12 + $0x28] sm:$0xff]
    %v2374 = vld [vmem:[#allocation12 + $0x30] sm:$0xff]
    %v2375 = vld [vmem:[#allocation12 + $0x38] sm:$0xff]
    %v2376 = vld [vmem:[#allocation12 + $0x40] sm:$0xff]
    %v2377 = vld [vmem:[#allocation12 + $0x48] sm:$0xff]
    %v2378 = vld [vmem:[#allocation12 + $0x50] sm:$0xff]
    %v2379 = vld [vmem:[#allocation12 + $0x58] sm:$0xff]
    %v2380 = vld [vmem:[#allocation12 + $0x60] sm:$0xff]
    %v2381 = vld [vmem:[#allocation12 + $0x68] sm:$0xff]
    %v2382 = vld [vmem:[#allocation12 + $0x70] sm:$0xff]
    %v2383 = vld [vmem:[#allocation12 + $0x78] sm:$0xff]
    %v2384 = vld [vmem:[%s5] sm:$0x1]
    %v2386 = vlaneseq
    %v2387 = vshrl.u32 %v2386, 7
    %v2388 = vsub.s32 0, %v2387
    %v2389 = vrot.slane %v2384, %v2388
    %2391 = vmatprep.subr.mxu0 0.0
    %2392 = vmatpush1.msra.mxu0 %v2368
    %2393 = vmatprep.subr.mxu0 0.0
    %2394 = vmatpush1.msra.mxu0 %v2369
    %2395 = vmatprep.subr.mxu0 0.0
    %2396 = vmatpush1.msra.mxu0 %v2370
    %2397 = vmatprep.subr.mxu0 0.0
    %2398 = vmatpush1.msra.mxu0 %v2371
    %2399 = vmatprep.subr.mxu0 0.0
    %2400 = vmatpush1.msra.mxu0 %v2372
    %2401 = vmatprep.subr.mxu0 0.0
    %2402 = vmatpush1.msra.mxu0 %v2373
    %2403 = vmatprep.subr.mxu0 0.0
    %2404 = vmatpush1.msra.mxu0 %v2374
    %2405 = vmatprep.subr.mxu0 0.0
    %2406 = vmatpush1.msra.mxu0 %v2375
    %2407 = vmatprep.subr.mxu0 0.0
    %2408 = vmatpush1.msra.mxu0 %v2376
    %2409 = vmatprep.subr.mxu0 0.0
    %2410 = vmatpush1.msra.mxu0 %v2377
    %2411 = vmatprep.subr.mxu0 0.0
    %2412 = vmatpush1.msra.mxu0 %v2378
    %2413 = vmatprep.subr.mxu0 0.0
    %2414 = vmatpush1.msra.mxu0 %v2379
    %2415 = vmatprep.subr.mxu0 0.0
    %2416 = vmatpush1.msra.mxu0 %v2380
    %2417 = vmatprep.subr.mxu0 0.0
    %2418 = vmatpush1.msra.mxu0 %v2381
    %2419 = vmatprep.subr.mxu0 0.0
    %2420 = vmatpush1.msra.mxu0 %v2382
    %2421 = vmatprep.subr.mxu0 0.0
    %2422 = vmatpush1.msra.mxu0 %v2383
    %2423 = vmatprep.subr.mxu0 0.0
    %2424 = vmatpush1.msra.mxu0 0.0
    %2425 = vmatprep.subr.mxu0 0.0
    %2426 = vmatpush1.msra.mxu0 0.0
    %2427 = vmatprep.subr.mxu0 0.0
    %2428 = vmatpush1.msra.mxu0 0.0
    %2429 = vmatprep.subr.mxu0 0.0
    %2430 = vmatpush1.msra.mxu0 0.0
    %2431 = vmatprep.subr.mxu0 0.0
    %2432 = vmatpush1.msra.mxu0 0.0
    %2433 = vmatprep.subr.mxu0 0.0
    %2434 = vmatpush1.msra.mxu0 0.0
    %2435 = vmatprep.subr.mxu0 0.0
    %2436 = vmatpush1.msra.mxu0 0.0
    %2437 = vmatprep.subr.mxu0 0.0
    %2438 = vmatpush1.msra.mxu0 0.0
    %2439 = vmatprep.subr.mxu0 0.0
    %2440 = vmatpush1.msra.mxu0 0.0
    %2441 = vmatprep.subr.mxu0 0.0
    %2442 = vmatpush1.msra.mxu0 0.0
    %2443 = vmatprep.subr.mxu0 0.0
    %2444 = vmatpush1.msra.mxu0 0.0
    %2445 = vmatprep.subr.mxu0 0.0
    %2446 = vmatpush1.msra.mxu0 0.0
    %2447 = vmatprep.subr.mxu0 0.0
    %2448 = vmatpush1.msra.mxu0 0.0
    %2449 = vmatprep.subr.mxu0 0.0
    %2450 = vmatpush1.msra.mxu0 0.0
    %2451 = vmatprep.subr.mxu0 0.0
    %2452 = vmatpush1.msra.mxu0 0.0
    %2453 = vmatprep.subr.mxu0 0.0
    %2454 = vmatpush1.msra.mxu0 0.0
    %2455 = vmatprep.mubr.f32.mxu0 0.0
    %2456 = vmatmul.mubr.f32.gmra.mrb[0].mxu0 %v2360
    %v2457 = vpop.f32.mrb[0].mxu0
    %v2458 = vadd.f32 %v2389, %v2457
    %v2459 = vpop.f32.mrb[0].mxu0
    %2460 = vmatprep.mubr.f32.mxu0 0.0
    %2461 = vmatmul.mubr.f32.gmra.mrb[0].mxu0 %v2361
    %v2462 = vpop.f32.mrb[0].mxu0
    %v2463 = vadd.f32 %v2389, %v2462
    %v2464 = vpop.f32.mrb[0].mxu0
    %2465 = vmatprep.mubr.f32.mxu0 0.0
    %2466 = vmatmul.mubr.f32.gmra.mrb[0].mxu0 %v2362
    %v2467 = vpop.f32.mrb[0].mxu0
    %v2468 = vadd.f32 %v2389, %v2467
    %v2469 = vpop.f32.mrb[0].mxu0
    %2470 = vmatprep.mubr.f32.mxu0 0.0
    %2471 = vmatmul.mubr.f32.gmra.mrb[0].mxu0 %v2363
    %v2472 = vpop.f32.mrb[0].mxu0
    %v2473 = vadd.f32 %v2389, %v2472
    %v2474 = vpop.f32.mrb[0].mxu0
    %2475 = vmatprep.mubr.f32.mxu0 0.0
    %2476 = vmatmul.mubr.f32.gmra.mrb[0].mxu0 %v2364
    %v2477 = vpop.f32.mrb[0].mxu0
    %v2478 = vadd.f32 %v2389, %v2477
    %v2479 = vpop.f32.mrb[0].mxu0
    %2480 = vmatprep.mubr.f32.mxu0 0.0
    %2481 = vmatmul.mubr.f32.gmra.mrb[0].mxu0 %v2365
    %v2482 = vpop.f32.mrb[0].mxu0
    %v2483 = vadd.f32 %v2389, %v2482
    %v2484 = vpop.f32.mrb[0].mxu0
    %2485 = vmatprep.mubr.f32.mxu0 0.0
    %2486 = vmatmul.mubr.f32.gmra.mrb[0].mxu0 %v2366
    %v2487 = vpop.f32.mrb[0].mxu0
    %v2488 = vadd.f32 %v2389, %v2487
    %v2489 = vpop.f32.mrb[0].mxu0
    %2490 = vmatprep.mubr.f32.mxu0 0.0
    %2491 = vmatmul.mubr.f32.gmra.mrb[0].mxu0 %v2367
    %v2492 = vpop.f32.mrb[0].mxu0
    %v2493 = vadd.f32 %v2389, %v2492
    %v2494 = vpop.f32.mrb[0].mxu0
    %2495 = vdwg.mxu0
    %2496 = vst [vmem:[#allocation14] sm:$0xff] %v2458
    %2497 = vst [vmem:[#allocation14 + $0x8] sm:$0xff] %v2463
    %2498 = vst [vmem:[#allocation14 + $0x10] sm:$0xff] %v2468
    %2499 = vst [vmem:[#allocation14 + $0x18] sm:$0xff] %v2473
    %2500 = vst [vmem:[#allocation14 + $0x20] sm:$0xff] %v2478
    %2501 = vst [vmem:[#allocation14 + $0x28] sm:$0xff] %v2483
    %2502 = vst [vmem:[#allocation14 + $0x30] sm:$0xff] %v2488
    %2503 = vst [vmem:[#allocation14 + $0x38] sm:$0xff] %v2493
    // Predicated region
    $region46: #{tpu_custom_call.1} parent=1 // pred_check
      _
    $region47: #{tpu_custom_call.1} parent=1 // pred_check_branch
      %2505 = sbr.rel (0) target = $region49
    $region48: #{tpu_custom_call.1} parent=1 // pred_region
      %s2506 = sadd.s32 0, 0
      %s2507 = smul.u32 8, %s2506
      %s2509 = ssub.s32 1024, 1024
      %2510 = vsyncadd [#allocation8], %s2509
      %s2511 = smul.addr %s2507, 128
      %s2512 = scalar_lea.hbm %s6, %s2511
      %s2513 = sshll.u32 [#allocation14], 4
      %s2514 = int_to_ptr.vmem [resolvable:$true] %s2513
      %2519 = dma.vmem_to_hbm [thread:$0]  %s2514, 1024, %s2512, [#allocation8], 128, 128, 8
    $region49: #{tpu_custom_call.1} parent=1 // pred_fallthru
      _
    // Predicated region
    $region50: #{tpu_custom_call.1} parent=1 // pred_check
      _
    $region51: #{tpu_custom_call.1} parent=1 // pred_check_branch
      %2521 = sbr.rel (0) target = $region53
    $region52: #{tpu_custom_call.1} parent=1 // pred_region
      %2522 = dma.done [#allocation8], 1024
    $region53: #{tpu_custom_call.1} parent=1 // pred_fallthru
      _
    %2523 = vsyncpa [#allocation7], 1
    %2524 = vsyncpa [#allocation10], 1
    %2525 = vsyncpa [#allocation13], 1
    %2526 = vsyncpa [#allocation8], 1

</llo_original>
